<compile_context>
chip_gen: v6e
topology: v6e:2x2x1
jax: 0.10.0
libtpu: 0.0.40
codegen_flags: <defaults>
</compile_context>

<pallas_src>
import jax
import jax.numpy as jnp
from jax.experimental import pallas as pl
from jax.experimental.pallas import tpu as pltpu


def gru_block_kernel(x_ref, wx_ref, wh_ref, bx_ref, bhn_ref, h0_ref,
                     out_ref, h_scr):
    """One grid step = U consecutive tokens of the sequence.

    x_ref   : VMEM (U, H)    param_dtype  pre-gathered embedding rows
    wx_ref  : VMEM (H, 3H)   param_dtype  input-side weights  [r|z|n]  (resident)
    wh_ref  : VMEM (H, 3H)   recur_dtype  hidden-side weights [r|z|n]  (resident)
    bx_ref  : VMEM (1, 3H)   f32          [b_ir+b_hr | b_iz+b_hz | b_in]
    bhn_ref : VMEM (1, H)    f32          b_hn (kept separate for r*(...))
    h0_ref  : VMEM (1, H)    f32          initial hidden state (resident)
    out_ref : VMEM (U, H)    f32          hidden states for these U steps
    h_scr   : VMEM (1, H)    f32          hidden carry across grid steps
    """
    U, H = x_ref.shape

    @pl.when(pl.program_id(0) == 0)
    def _init():
        h_scr[...] = h0_ref[...]

    # x-side gate pre-activations for all U tokens in ONE amortized MXU dot.
    gx = jnp.dot(x_ref[...], wx_ref[...],
                 preferred_element_type=jnp.float32) + bx_ref[...]   # (U, 3H)

    wh = wh_ref[...]            # (H, 3H)
    b_hn = bhn_ref[...]         # (1, H)
    h = h_scr[...]              # (1, H) f32 carry

    rows = []
    for u in range(U):          # short, fully unrolled recurrence
        gh = jnp.dot(h.astype(wh.dtype), wh,
                     preferred_element_type=jnp.float32)             # (1, 3H)
        gxu = gx[u:u + 1, :]                                          # (1, 3H)
        r = jax.nn.sigmoid(gxu[:, 0:H] + gh[:, 0:H])
        z = jax.nn.sigmoid(gxu[:, H:2 * H] + gh[:, H:2 * H])
        n = jnp.tanh(gxu[:, 2 * H:3 * H] + r * (gh[:, 2 * H:3 * H] + b_hn))
        h = (1.0 - z) * n + z * h
        rows.append(h)

    # Single (U, H) store: lane-dense, full sublanes, unmasked vst.
    out_ref[...] = jnp.concatenate(rows, axis=0)
    h_scr[...] = h


def _prepare_gru_params(params, param_dtype, recur_dtype):
    """Split/transposed GRU weights (no zero blocks) + folded r/z biases."""
    w_ih = params["w_ih"].astype(jnp.float32)   # (3H, H), gates [r|z|n]
    w_hh = params["w_hh"].astype(jnp.float32)
    b_ih = params["b_ih"].astype(jnp.float32)
    b_hh = params["b_hh"].astype(jnp.float32)
    H = w_ih.shape[1]

    wx = w_ih.T.astype(param_dtype)             # (H, 3H): x @ wx = [gi_r|gi_z|gi_n]
    wh = w_hh.T.astype(recur_dtype)             # (H, 3H): h @ wh = [gh_r|gh_z|gh_n]
    bx = jnp.concatenate([
        b_ih[0:2 * H] + b_hh[0:2 * H],          # r, z biases folded once
        b_ih[2 * H:3 * H],                      # b_in (goes with gi_n)
    ]).reshape(1, 3 * H).astype(jnp.float32)
    bhn = b_hh[2 * H:3 * H].reshape(1, H).astype(jnp.float32)   # inside r*(...)
    return wx, wh, bx, bhn


def encoder_rnn_forward_seq(tokens, hidden, params, *,
                            param_dtype=jnp.bfloat16,
                            recur_dtype=jnp.float32,
                            tokens_per_step=16):
    """Run the GRU encoder over a token sequence in ONE pallas_call.

    tokens : (T,) int32, hidden : (1,1,H) f32
    returns (outputs (T,1,H) f32, final hidden (1,1,H) f32)
    """
    emb = params["embedding"].astype(param_dtype)
    _, H = emb.shape
    tokens = jnp.asarray(tokens, dtype=jnp.int32).reshape(-1)
    T = int(tokens.shape[0])

    U = int(tokens_per_step)
    T_pad = U * pl.cdiv(T, U)
    if T_pad != T:
        tokens = jnp.concatenate(
            [tokens, jnp.zeros((T_pad - T,), jnp.int32)])

    # XLA pre-gather of embedding rows (moderate vocab: no in-kernel HBM gather).
    x_seq = jnp.take(emb, tokens, axis=0)                    # (T_pad, H)
    h0 = hidden.reshape(1, H).astype(jnp.float32)
    wx, wh, bx, bhn = _prepare_gru_params(params, param_dtype, recur_dtype)

    grid_spec = pltpu.PrefetchScalarGridSpec(
        num_scalar_prefetch=0,
        grid=(T_pad // U,),
        in_specs=[
            pl.BlockSpec((U, H), lambda i: (i, 0)),            # embedded tokens
            pl.BlockSpec((H, 3 * H), lambda i: (0, 0)),        # Wx (resident)
            pl.BlockSpec((H, 3 * H), lambda i: (0, 0)),        # Wh (resident)
            pl.BlockSpec((1, 3 * H), lambda i: (0, 0)),        # fused r/z/in bias
            pl.BlockSpec((1, H), lambda i: (0, 0)),            # b_hn
            pl.BlockSpec((1, H), lambda i: (0, 0)),            # h0
        ],
        out_specs=pl.BlockSpec((U, H), lambda i: (i, 0)),
        scratch_shapes=[pltpu.VMEM((1, H), jnp.float32)],      # hidden carry
    )

    outs = pl.pallas_call(
        gru_block_kernel,
        out_shape=jax.ShapeDtypeStruct((T_pad, H), jnp.float32),
        grid_spec=grid_spec,
        compiler_params=pltpu.CompilerParams(
            # recurrence across the grid axis -> must stay sequential
            dimension_semantics=("arbitrary",),
        ),
    )(x_seq, wx, wh, bx, bhn, h0)

    outputs = outs[:T].reshape(T, 1, H)
    h_T = outs[T - 1].reshape(1, 1, H)
    return outputs, h_T


def encoder_rnn_forward(token_id, hidden, params, *,
                        param_dtype=jnp.bfloat16, recur_dtype=jnp.float32):
    """Mirrors EncoderRNN.forward(input, hidden) -> (output, hidden); seq=1, batch=1."""
    H = params["embedding"].shape[1]
    tokens = jnp.asarray(token_id, dtype=jnp.int32).reshape(1)
    outs, h_new = encoder_rnn_forward_seq(tokens, hidden, params,
                                          param_dtype=param_dtype,
                                          recur_dtype=recur_dtype)
    return outs.reshape(1, 1, H), h_new


# ----------------------------- plain-JAX reference -----------------------------

def _gru_cell_ref(x, h, params):
    H = h.shape[-1]
    gi = x @ params["w_ih"].T + params["b_ih"]
    gh = h @ params["w_hh"].T + params["b_hh"]
    r = jax.nn.sigmoid(gi[:, 0:H] + gh[:, 0:H])
    z = jax.nn.sigmoid(gi[:, H:2 * H] + gh[:, H:2 * H])
    n = jnp.tanh(gi[:, 2 * H:3 * H] + r * gh[:, 2 * H:3 * H])
    return (1.0 - z) * n + z * h


def reference_forward_seq(tokens, hidden, params):
    H = params["embedding"].shape[1]
    h = hidden.reshape(1, H)
    outs = []
    for t in range(int(tokens.shape[0])):
        x = params["embedding"][tokens[t]].reshape(1, H)
        h = _gru_cell_ref(x, h, params)
        outs.append(h)
    return jnp.stack(outs, 0).reshape(-1, 1, H), h.reshape(1, 1, H)


def init_params(key, input_size, hidden_size):
    """Deterministic init mimicking PyTorch defaults (uniform +/- 1/sqrt(H))."""
    k_emb, k_wih, k_whh, k_bih, k_bhh = jax.random.split(key, 5)
    bound = 1.0 / jnp.sqrt(hidden_size)
    return {
        "embedding": jax.random.normal(k_emb, (input_size, hidden_size), jnp.float32),
        "w_ih": jax.random.uniform(k_wih, (3 * hidden_size, hidden_size),
                                   jnp.float32, -bound, bound),
        "w_hh": jax.random.uniform(k_whh, (3 * hidden_size, hidden_size),
                                   jnp.float32, -bound, bound),
        "b_ih": jax.random.uniform(k_bih, (3 * hidden_size,),
                                   jnp.float32, -bound, bound),
        "b_hh": jax.random.uniform(k_bhh, (3 * hidden_size,),
                                   jnp.float32, -bound, bound),
    }


if __name__ == "__main__":
    VOCAB = 32
    HIDDEN = 256          # matches the PyTorch spec's hidden_size (lane-aligned)
    SEQ = 8

    key = jax.random.PRNGKey(0)
    params = init_params(key, VOCAB, HIDDEN)
    h0 = jnp.zeros((1, 1, HIDDEN), dtype=jnp.float32)   # initHidden()
    tokens = jax.random.randint(jax.random.PRNGKey(1), (SEQ,), 0, VOCAB, jnp.int32)

    ref_outs, ref_hT = reference_forward_seq(tokens, h0, params)

    # --- full f32 path: exact vs reference ---
    outs_f32, hT_f32 = encoder_rnn_forward_seq(
        tokens, h0, params, param_dtype=jnp.float32, recur_dtype=jnp.float32)
    outs_f32 = jax.block_until_ready(outs_f32)
    hT_f32 = jax.block_until_ready(hT_f32)
    assert outs_f32.shape == (SEQ, 1, HIDDEN)
    assert jnp.allclose(outs_f32, ref_outs, atol=1e-5, rtol=1e-5)
    assert jnp.allclose(hT_f32, ref_hT, atol=1e-5, rtol=1e-5)

    # --- default path: bf16 embedding + Wx, f32 recurrent contraction ---
    outs, hT = encoder_rnn_forward_seq(tokens, h0, params)
    outs = jax.block_until_ready(outs)
    hT = jax.block_until_ready(hT)
    assert jnp.allclose(outs, ref_outs, atol=5e-2, rtol=5e-2)
    assert jnp.allclose(hT, ref_hT, atol=5e-2, rtol=5e-2)

    # --- full bf16 weights (halved Wh streaming too); looser tolerance ---
    outs_bf16, hT_bf16 = encoder_rnn_forward_seq(
        tokens, h0, params, param_dtype=jnp.bfloat16, recur_dtype=jnp.bfloat16)
    outs_bf16 = jax.block_until_ready(outs_bf16)
    assert jnp.allclose(outs_bf16, ref_outs, atol=8e-2, rtol=8e-2)

    # --- single-step forward: exact EncoderRNN.forward semantics ---
    token = jnp.array(5, dtype=jnp.int32)
    out1, h1 = encoder_rnn_forward(token, h0, params,
                                   param_dtype=jnp.float32, recur_dtype=jnp.float32)
    out1 = jax.block_until_ready(out1)
    h1 = jax.block_until_ready(h1)
    ref_out1, ref_h1 = reference_forward_seq(token.reshape(1), h0, params)
    assert out1.shape == (1, 1, HIDDEN) and h1.shape == (1, 1, HIDDEN)
    assert jnp.allclose(out1, ref_out1, atol=1e-5, rtol=1e-5)
    assert jnp.allclose(h1, ref_h1, atol=1e-5, rtol=1e-5)

    print("KERNEL_OK")
</pallas_src>

<mosaic_0001>
module attributes {stable_mosaic.version = 11 : i64} {
  func.func @gru_block_kernel(%arg0: i32, %arg1: memref<16x256xf32, #tpu.memory_space<vmem>>, %arg2: memref<256x768xf32, #tpu.memory_space<vmem>>, %arg3: memref<256x768xf32, #tpu.memory_space<vmem>>, %arg4: memref<1x768xf32, #tpu.memory_space<vmem>>, %arg5: memref<1x256xf32, #tpu.memory_space<vmem>>, %arg6: memref<1x256xf32, #tpu.memory_space<vmem>>, %arg7: memref<16x256xf32, #tpu.memory_space<vmem>>, %arg8: memref<1x256xf32, #tpu.memory_space<vmem>>) attributes {dimension_semantics = [#tpu.dimension_semantics<arbitrary>], iteration_bounds = array<i64: 1>, scalar_prefetch = 0 : i64, scratch_operands = 1 : i64, tpu.core_type = #tpu.core_type<tc>, window_params = [{transform_indices = @transform_0, window_bounds = array<i64: 16, 256>}, {pipeline_mode = #tpu.pipeline_mode<synchronous>, transform_indices = @transform_1, window_bounds = array<i64: 256, 768>}, {pipeline_mode = #tpu.pipeline_mode<synchronous>, transform_indices = @transform_2, window_bounds = array<i64: 256, 768>}, {pipeline_mode = #tpu.pipeline_mode<synchronous>, transform_indices = @transform_3, window_bounds = array<i64: 1, 768>}, {pipeline_mode = #tpu.pipeline_mode<synchronous>, transform_indices = @transform_4, window_bounds = array<i64: 1, 256>}, {pipeline_mode = #tpu.pipeline_mode<synchronous>, transform_indices = @transform_5, window_bounds = array<i64: 1, 256>}, {transform_indices = @transform_6, window_bounds = array<i64: 16, 256>}]} {
    %c0_i32 = arith.constant 0 : i32
    %0 = arith.cmpi eq, %arg0, %c0_i32 : i32
    %1 = arith.extui %0 : i1 to i32
    %c0_i32_0 = arith.constant 0 : i32
    %2 = arith.cmpi ne, %1, %c0_i32_0 : i32
    scf.if %2 {
      %c0_80 = arith.constant 0 : index
      %c0_81 = arith.constant 0 : index
      %479 = vector.load %arg6[%c0_80, %c0_81] : memref<1x256xf32, #tpu.memory_space<vmem>>, vector<1x256xf32>
      %c0_82 = arith.constant 0 : index
      %c0_83 = arith.constant 0 : index
      %480 = vector.load %arg8[%c0_82, %c0_83] : memref<1x256xf32, #tpu.memory_space<vmem>>, vector<1x256xf32>
      tpu.vector_store %arg8[%c0_82, %c0_83], %479 {strides = array<i32>} : memref<1x256xf32, #tpu.memory_space<vmem>>, vector<1x256xf32>,
    } else {
    }
    %c0 = arith.constant 0 : index
    %c0_1 = arith.constant 0 : index
    %3 = vector.load %arg1[%c0, %c0_1] : memref<16x256xf32, #tpu.memory_space<vmem>>, vector<16x256xf32>
    %c0_2 = arith.constant 0 : index
    %c0_3 = arith.constant 0 : index
    %4 = vector.load %arg2[%c0_2, %c0_3] : memref<256x768xf32, #tpu.memory_space<vmem>>, vector<256x768xf32>
    %cst = arith.constant dense<0.000000e+00> : vector<16x768xf32>
    %5 = tpu.matmul %3, %4, %cst {dimension_numbers = #tpu.dot_dimension_numbers<[1], [0], [0], [1], [0, 0, 1, 1], [], []>} : vector<16x256xf32>, vector<256x768xf32>, vector<16x768xf32> -> vector<16x768xf32>
    %c0_4 = arith.constant 0 : index
    %c0_5 = arith.constant 0 : index
    %6 = vector.load %arg4[%c0_4, %c0_5] : memref<1x768xf32, #tpu.memory_space<vmem>>, vector<1x768xf32>
    %7 = vector.broadcast %6 : vector<1x768xf32> to vector<16x768xf32>
    %8 = arith.addf %5, %7 : vector<16x768xf32>
    %c0_6 = arith.constant 0 : index
    %c0_7 = arith.constant 0 : index
    %9 = vector.load %arg3[%c0_6, %c0_7] : memref<256x768xf32, #tpu.memory_space<vmem>>, vector<256x768xf32>
    %c0_8 = arith.constant 0 : index
    %c0_9 = arith.constant 0 : index
    %10 = vector.load %arg5[%c0_8, %c0_9] : memref<1x256xf32, #tpu.memory_space<vmem>>, vector<1x256xf32>
    %c0_10 = arith.constant 0 : index
    %c0_11 = arith.constant 0 : index
    %11 = vector.load %arg8[%c0_10, %c0_11] : memref<1x256xf32, #tpu.memory_space<vmem>>, vector<1x256xf32>
    %cst_12 = arith.constant dense<0.000000e+00> : vector<1x768xf32>
    %12 = tpu.matmul %11, %9, %cst_12 {dimension_numbers = #tpu.dot_dimension_numbers<[1], [0], [0], [1], [0, 0, 1, 1], [], []>} : vector<1x256xf32>, vector<256x768xf32>, vector<1x768xf32> -> vector<1x768xf32>
    %13 = vector.extract_strided_slice %8 {offsets = [0, 0], sizes = [1, 768], strides = [1, 1]} : vector<16x768xf32> to vector<1x768xf32>
    %14 = vector.extract_strided_slice %13 {offsets = [0, 0], sizes = [1, 256], strides = [1, 1]} : vector<1x768xf32> to vector<1x256xf32>
    %15 = vector.extract_strided_slice %12 {offsets = [0, 0], sizes = [1, 256], strides = [1, 1]} : vector<1x768xf32> to vector<1x256xf32>
    %16 = arith.addf %14, %15 : vector<1x256xf32>
    %17 = arith.negf %16 : vector<1x256xf32>
    %18 = math.exp %17 : vector<1x256xf32>
    %cst_13 = arith.constant 1.000000e+00 : f32
    %19 = vector.broadcast %cst_13 : f32 to vector<1x256xf32>
    %20 = arith.addf %19, %18 : vector<1x256xf32>
    %21 = arith.divf %19, %20 : vector<1x256xf32>
    %22 = vector.extract_strided_slice %13 {offsets = [0, 256], sizes = [1, 256], strides = [1, 1]} : vector<1x768xf32> to vector<1x256xf32>
    %23 = vector.extract_strided_slice %12 {offsets = [0, 256], sizes = [1, 256], strides = [1, 1]} : vector<1x768xf32> to vector<1x256xf32>
    %24 = arith.addf %22, %23 : vector<1x256xf32>
    %25 = arith.negf %24 : vector<1x256xf32>
    %26 = math.exp %25 : vector<1x256xf32>
    %cst_14 = arith.constant 1.000000e+00 : f32
    %27 = vector.broadcast %cst_14 : f32 to vector<1x256xf32>
    %28 = arith.addf %27, %26 : vector<1x256xf32>
    %29 = arith.divf %27, %28 : vector<1x256xf32>
    %30 = vector.extract_strided_slice %13 {offsets = [0, 512], sizes = [1, 256], strides = [1, 1]} : vector<1x768xf32> to vector<1x256xf32>
    %31 = vector.extract_strided_slice %12 {offsets = [0, 512], sizes = [1, 256], strides = [1, 1]} : vector<1x768xf32> to vector<1x256xf32>
    %32 = arith.addf %31, %10 : vector<1x256xf32>
    %33 = arith.mulf %21, %32 : vector<1x256xf32>
    %34 = arith.addf %30, %33 : vector<1x256xf32>
    %35 = math.tanh %34 : vector<1x256xf32>
    %cst_15 = arith.constant 1.000000e+00 : f32
    %36 = vector.broadcast %cst_15 : f32 to vector<1x256xf32>
    %37 = arith.subf %36, %29 : vector<1x256xf32>
    %38 = arith.mulf %37, %35 : vector<1x256xf32>
    %39 = arith.mulf %29, %11 : vector<1x256xf32>
    %40 = arith.addf %38, %39 : vector<1x256xf32>
    %cst_16 = arith.constant dense<0.000000e+00> : vector<1x768xf32>
    %41 = tpu.matmul %40, %9, %cst_16 {dimension_numbers = #tpu.dot_dimension_numbers<[1], [0], [0], [1], [0, 0, 1, 1], [], []>} : vector<1x256xf32>, vector<256x768xf32>, vector<1x768xf32> -> vector<1x768xf32>
    %42 = vector.extract_strided_slice %8 {offsets = [1, 0], sizes = [1, 768], strides = [1, 1]} : vector<16x768xf32> to vector<1x768xf32>
    %43 = vector.extract_strided_slice %42 {offsets = [0, 0], sizes = [1, 256], strides = [1, 1]} : vector<1x768xf32> to vector<1x256xf32>
    %44 = vector.extract_strided_slice %41 {offsets = [0, 0], sizes = [1, 256], strides = [1, 1]} : vector<1x768xf32> to vector<1x256xf32>
    %45 = arith.addf %43, %44 : vector<1x256xf32>
    %46 = arith.negf %45 : vector<1x256xf32>
    %47 = math.exp %46 : vector<1x256xf32>
    %cst_17 = arith.constant 1.000000e+00 : f32
    %48 = vector.broadcast %cst_17 : f32 to vector<1x256xf32>
    %49 = arith.addf %48, %47 : vector<1x256xf32>
    %50 = arith.divf %48, %49 : vector<1x256xf32>
    %51 = vector.extract_strided_slice %42 {offsets = [0, 256], sizes = [1, 256], strides = [1, 1]} : vector<1x768xf32> to vector<1x256xf32>
    %52 = vector.extract_strided_slice %41 {offsets = [0, 256], sizes = [1, 256], strides = [1, 1]} : vector<1x768xf32> to vector<1x256xf32>
    %53 = arith.addf %51, %52 : vector<1x256xf32>
    %54 = arith.negf %53 : vector<1x256xf32>
    %55 = math.exp %54 : vector<1x256xf32>
    %cst_18 = arith.constant 1.000000e+00 : f32
    %56 = vector.broadcast %cst_18 : f32 to vector<1x256xf32>
    %57 = arith.addf %56, %55 : vector<1x256xf32>
    %58 = arith.divf %56, %57 : vector<1x256xf32>
    %59 = vector.extract_strided_slice %42 {offsets = [0, 512], sizes = [1, 256], strides = [1, 1]} : vector<1x768xf32> to vector<1x256xf32>
    %60 = vector.extract_strided_slice %41 {offsets = [0, 512], sizes = [1, 256], strides = [1, 1]} : vector<1x768xf32> to vector<1x256xf32>
    %61 = arith.addf %60, %10 : vector<1x256xf32>
    %62 = arith.mulf %50, %61 : vector<1x256xf32>
    %63 = arith.addf %59, %62 : vector<1x256xf32>
    %64 = math.tanh %63 : vector<1x256xf32>
    %cst_19 = arith.constant 1.000000e+00 : f32
    %65 = vector.broadcast %cst_19 : f32 to vector<1x256xf32>
    %66 = arith.subf %65, %58 : vector<1x256xf32>
    %67 = arith.mulf %66, %64 : vector<1x256xf32>
    %68 = arith.mulf %58, %40 : vector<1x256xf32>
    %69 = arith.addf %67, %68 : vector<1x256xf32>
    %cst_20 = arith.constant dense<0.000000e+00> : vector<1x768xf32>
    %70 = tpu.matmul %69, %9, %cst_20 {dimension_numbers = #tpu.dot_dimension_numbers<[1], [0], [0], [1], [0, 0, 1, 1], [], []>} : vector<1x256xf32>, vector<256x768xf32>, vector<1x768xf32> -> vector<1x768xf32>
    %71 = vector.extract_strided_slice %8 {offsets = [2, 0], sizes = [1, 768], strides = [1, 1]} : vector<16x768xf32> to vector<1x768xf32>
    %72 = vector.extract_strided_slice %71 {offsets = [0, 0], sizes = [1, 256], strides = [1, 1]} : vector<1x768xf32> to vector<1x256xf32>
    %73 = vector.extract_strided_slice %70 {offsets = [0, 0], sizes = [1, 256], strides = [1, 1]} : vector<1x768xf32> to vector<1x256xf32>
    %74 = arith.addf %72, %73 : vector<1x256xf32>
    %75 = arith.negf %74 : vector<1x256xf32>
    %76 = math.exp %75 : vector<1x256xf32>
    %cst_21 = arith.constant 1.000000e+00 : f32
    %77 = vector.broadcast %cst_21 : f32 to vector<1x256xf32>
    %78 = arith.addf %77, %76 : vector<1x256xf32>
    %79 = arith.divf %77, %78 : vector<1x256xf32>
    %80 = vector.extract_strided_slice %71 {offsets = [0, 256], sizes = [1, 256], strides = [1, 1]} : vector<1x768xf32> to vector<1x256xf32>
    %81 = vector.extract_strided_slice %70 {offsets = [0, 256], sizes = [1, 256], strides = [1, 1]} : vector<1x768xf32> to vector<1x256xf32>
    %82 = arith.addf %80, %81 : vector<1x256xf32>
    %83 = arith.negf %82 : vector<1x256xf32>
    %84 = math.exp %83 : vector<1x256xf32>
    %cst_22 = arith.constant 1.000000e+00 : f32
    %85 = vector.broadcast %cst_22 : f32 to vector<1x256xf32>
    %86 = arith.addf %85, %84 : vector<1x256xf32>
    %87 = arith.divf %85, %86 : vector<1x256xf32>
    %88 = vector.extract_strided_slice %71 {offsets = [0, 512], sizes = [1, 256], strides = [1, 1]} : vector<1x768xf32> to vector<1x256xf32>
    %89 = vector.extract_strided_slice %70 {offsets = [0, 512], sizes = [1, 256], strides = [1, 1]} : vector<1x768xf32> to vector<1x256xf32>
    %90 = arith.addf %89, %10 : vector<1x256xf32>
    %91 = arith.mulf %79, %90 : vector<1x256xf32>
    %92 = arith.addf %88, %91 : vector<1x256xf32>
    %93 = math.tanh %92 : vector<1x256xf32>
    %cst_23 = arith.constant 1.000000e+00 : f32
    %94 = vector.broadcast %cst_23 : f32 to vector<1x256xf32>
    %95 = arith.subf %94, %87 : vector<1x256xf32>
    %96 = arith.mulf %95, %93 : vector<1x256xf32>
    %97 = arith.mulf %87, %69 : vector<1x256xf32>
    %98 = arith.addf %96, %97 : vector<1x256xf32>
    %cst_24 = arith.constant dense<0.000000e+00> : vector<1x768xf32>
    %99 = tpu.matmul %98, %9, %cst_24 {dimension_numbers = #tpu.dot_dimension_numbers<[1], [0], [0], [1], [0, 0, 1, 1], [], []>} : vector<1x256xf32>, vector<256x768xf32>, vector<1x768xf32> -> vector<1x768xf32>
    %100 = vector.extract_strided_slice %8 {offsets = [3, 0], sizes = [1, 768], strides = [1, 1]} : vector<16x768xf32> to vector<1x768xf32>
    %101 = vector.extract_strided_slice %100 {offsets = [0, 0], sizes = [1, 256], strides = [1, 1]} : vector<1x768xf32> to vector<1x256xf32>
    %102 = vector.extract_strided_slice %99 {offsets = [0, 0], sizes = [1, 256], strides = [1, 1]} : vector<1x768xf32> to vector<1x256xf32>
    %103 = arith.addf %101, %102 : vector<1x256xf32>
    %104 = arith.negf %103 : vector<1x256xf32>
    %105 = math.exp %104 : vector<1x256xf32>
    %cst_25 = arith.constant 1.000000e+00 : f32
    %106 = vector.broadcast %cst_25 : f32 to vector<1x256xf32>
    %107 = arith.addf %106, %105 : vector<1x256xf32>
    %108 = arith.divf %106, %107 : vector<1x256xf32>
    %109 = vector.extract_strided_slice %100 {offsets = [0, 256], sizes = [1, 256], strides = [1, 1]} : vector<1x768xf32> to vector<1x256xf32>
    %110 = vector.extract_strided_slice %99 {offsets = [0, 256], sizes = [1, 256], strides = [1, 1]} : vector<1x768xf32> to vector<1x256xf32>
    %111 = arith.addf %109, %110 : vector<1x256xf32>
    %112 = arith.negf %111 : vector<1x256xf32>
    %113 = math.exp %112 : vector<1x256xf32>
    %cst_26 = arith.constant 1.000000e+00 : f32
    %114 = vector.broadcast %cst_26 : f32 to vector<1x256xf32>
    %115 = arith.addf %114, %113 : vector<1x256xf32>
    %116 = arith.divf %114, %115 : vector<1x256xf32>
    %117 = vector.extract_strided_slice %100 {offsets = [0, 512], sizes = [1, 256], strides = [1, 1]} : vector<1x768xf32> to vector<1x256xf32>
    %118 = vector.extract_strided_slice %99 {offsets = [0, 512], sizes = [1, 256], strides = [1, 1]} : vector<1x768xf32> to vector<1x256xf32>
    %119 = arith.addf %118, %10 : vector<1x256xf32>
    %120 = arith.mulf %108, %119 : vector<1x256xf32>
    %121 = arith.addf %117, %120 : vector<1x256xf32>
    %122 = math.tanh %121 : vector<1x256xf32>
    %cst_27 = arith.constant 1.000000e+00 : f32
    %123 = vector.broadcast %cst_27 : f32 to vector<1x256xf32>
    %124 = arith.subf %123, %116 : vector<1x256xf32>
    %125 = arith.mulf %124, %122 : vector<1x256xf32>
    %126 = arith.mulf %116, %98 : vector<1x256xf32>
    %127 = arith.addf %125, %126 : vector<1x256xf32>
    %cst_28 = arith.constant dense<0.000000e+00> : vector<1x768xf32>
    %128 = tpu.matmul %127, %9, %cst_28 {dimension_numbers = #tpu.dot_dimension_numbers<[1], [0], [0], [1], [0, 0, 1, 1], [], []>} : vector<1x256xf32>, vector<256x768xf32>, vector<1x768xf32> -> vector<1x768xf32>
    %129 = vector.extract_strided_slice %8 {offsets = [4, 0], sizes = [1, 768], strides = [1, 1]} : vector<16x768xf32> to vector<1x768xf32>
    %130 = vector.extract_strided_slice %129 {offsets = [0, 0], sizes = [1, 256], strides = [1, 1]} : vector<1x768xf32> to vector<1x256xf32>
    %131 = vector.extract_strided_slice %128 {offsets = [0, 0], sizes = [1, 256], strides = [1, 1]} : vector<1x768xf32> to vector<1x256xf32>
    %132 = arith.addf %130, %131 : vector<1x256xf32>
    %133 = arith.negf %132 : vector<1x256xf32>
    %134 = math.exp %133 : vector<1x256xf32>
    %cst_29 = arith.constant 1.000000e+00 : f32
    %135 = vector.broadcast %cst_29 : f32 to vector<1x256xf32>
    %136 = arith.addf %135, %134 : vector<1x256xf32>
    %137 = arith.divf %135, %136 : vector<1x256xf32>
    %138 = vector.extract_strided_slice %129 {offsets = [0, 256], sizes = [1, 256], strides = [1, 1]} : vector<1x768xf32> to vector<1x256xf32>
    %139 = vector.extract_strided_slice %128 {offsets = [0, 256], sizes = [1, 256], strides = [1, 1]} : vector<1x768xf32> to vector<1x256xf32>
    %140 = arith.addf %138, %139 : vector<1x256xf32>
    %141 = arith.negf %140 : vector<1x256xf32>
    %142 = math.exp %141 : vector<1x256xf32>
    %cst_30 = arith.constant 1.000000e+00 : f32
    %143 = vector.broadcast %cst_30 : f32 to vector<1x256xf32>
    %144 = arith.addf %143, %142 : vector<1x256xf32>
    %145 = arith.divf %143, %144 : vector<1x256xf32>
    %146 = vector.extract_strided_slice %129 {offsets = [0, 512], sizes = [1, 256], strides = [1, 1]} : vector<1x768xf32> to vector<1x256xf32>
    %147 = vector.extract_strided_slice %128 {offsets = [0, 512], sizes = [1, 256], strides = [1, 1]} : vector<1x768xf32> to vector<1x256xf32>
    %148 = arith.addf %147, %10 : vector<1x256xf32>
    %149 = arith.mulf %137, %148 : vector<1x256xf32>
    %150 = arith.addf %146, %149 : vector<1x256xf32>
    %151 = math.tanh %150 : vector<1x256xf32>
    %cst_31 = arith.constant 1.000000e+00 : f32
    %152 = vector.broadcast %cst_31 : f32 to vector<1x256xf32>
    %153 = arith.subf %152, %145 : vector<1x256xf32>
    %154 = arith.mulf %153, %151 : vector<1x256xf32>
    %155 = arith.mulf %145, %127 : vector<1x256xf32>
    %156 = arith.addf %154, %155 : vector<1x256xf32>
    %cst_32 = arith.constant dense<0.000000e+00> : vector<1x768xf32>
    %157 = tpu.matmul %156, %9, %cst_32 {dimension_numbers = #tpu.dot_dimension_numbers<[1], [0], [0], [1], [0, 0, 1, 1], [], []>} : vector<1x256xf32>, vector<256x768xf32>, vector<1x768xf32> -> vector<1x768xf32>
    %158 = vector.extract_strided_slice %8 {offsets = [5, 0], sizes = [1, 768], strides = [1, 1]} : vector<16x768xf32> to vector<1x768xf32>
    %159 = vector.extract_strided_slice %158 {offsets = [0, 0], sizes = [1, 256], strides = [1, 1]} : vector<1x768xf32> to vector<1x256xf32>
    %160 = vector.extract_strided_slice %157 {offsets = [0, 0], sizes = [1, 256], strides = [1, 1]} : vector<1x768xf32> to vector<1x256xf32>
    %161 = arith.addf %159, %160 : vector<1x256xf32>
    %162 = arith.negf %161 : vector<1x256xf32>
    %163 = math.exp %162 : vector<1x256xf32>
    %cst_33 = arith.constant 1.000000e+00 : f32
    %164 = vector.broadcast %cst_33 : f32 to vector<1x256xf32>
    %165 = arith.addf %164, %163 : vector<1x256xf32>
    %166 = arith.divf %164, %165 : vector<1x256xf32>
    %167 = vector.extract_strided_slice %158 {offsets = [0, 256], sizes = [1, 256], strides = [1, 1]} : vector<1x768xf32> to vector<1x256xf32>
    %168 = vector.extract_strided_slice %157 {offsets = [0, 256], sizes = [1, 256], strides = [1, 1]} : vector<1x768xf32> to vector<1x256xf32>
    %169 = arith.addf %167, %168 : vector<1x256xf32>
    %170 = arith.negf %169 : vector<1x256xf32>
    %171 = math.exp %170 : vector<1x256xf32>
    %cst_34 = arith.constant 1.000000e+00 : f32
    %172 = vector.broadcast %cst_34 : f32 to vector<1x256xf32>
    %173 = arith.addf %172, %171 : vector<1x256xf32>
    %174 = arith.divf %172, %173 : vector<1x256xf32>
    %175 = vector.extract_strided_slice %158 {offsets = [0, 512], sizes = [1, 256], strides = [1, 1]} : vector<1x768xf32> to vector<1x256xf32>
    %176 = vector.extract_strided_slice %157 {offsets = [0, 512], sizes = [1, 256], strides = [1, 1]} : vector<1x768xf32> to vector<1x256xf32>
    %177 = arith.addf %176, %10 : vector<1x256xf32>
    %178 = arith.mulf %166, %177 : vector<1x256xf32>
    %179 = arith.addf %175, %178 : vector<1x256xf32>
    %180 = math.tanh %179 : vector<1x256xf32>
    %cst_35 = arith.constant 1.000000e+00 : f32
    %181 = vector.broadcast %cst_35 : f32 to vector<1x256xf32>
    %182 = arith.subf %181, %174 : vector<1x256xf32>
    %183 = arith.mulf %182, %180 : vector<1x256xf32>
    %184 = arith.mulf %174, %156 : vector<1x256xf32>
    %185 = arith.addf %183, %184 : vector<1x256xf32>
    %cst_36 = arith.constant dense<0.000000e+00> : vector<1x768xf32>
    %186 = tpu.matmul %185, %9, %cst_36 {dimension_numbers = #tpu.dot_dimension_numbers<[1], [0], [0], [1], [0, 0, 1, 1], [], []>} : vector<1x256xf32>, vector<256x768xf32>, vector<1x768xf32> -> vector<1x768xf32>
    %187 = vector.extract_strided_slice %8 {offsets = [6, 0], sizes = [1, 768], strides = [1, 1]} : vector<16x768xf32> to vector<1x768xf32>
    %188 = vector.extract_strided_slice %187 {offsets = [0, 0], sizes = [1, 256], strides = [1, 1]} : vector<1x768xf32> to vector<1x256xf32>
    %189 = vector.extract_strided_slice %186 {offsets = [0, 0], sizes = [1, 256], strides = [1, 1]} : vector<1x768xf32> to vector<1x256xf32>
    %190 = arith.addf %188, %189 : vector<1x256xf32>
    %191 = arith.negf %190 : vector<1x256xf32>
    %192 = math.exp %191 : vector<1x256xf32>
    %cst_37 = arith.constant 1.000000e+00 : f32
    %193 = vector.broadcast %cst_37 : f32 to vector<1x256xf32>
    %194 = arith.addf %193, %192 : vector<1x256xf32>
    %195 = arith.divf %193, %194 : vector<1x256xf32>
    %196 = vector.extract_strided_slice %187 {offsets = [0, 256], sizes = [1, 256], strides = [1, 1]} : vector<1x768xf32> to vector<1x256xf32>
    %197 = vector.extract_strided_slice %186 {offsets = [0, 256], sizes = [1, 256], strides = [1, 1]} : vector<1x768xf32> to vector<1x256xf32>
    %198 = arith.addf %196, %197 : vector<1x256xf32>
    %199 = arith.negf %198 : vector<1x256xf32>
    %200 = math.exp %199 : vector<1x256xf32>
    %cst_38 = arith.constant 1.000000e+00 : f32
    %201 = vector.broadcast %cst_38 : f32 to vector<1x256xf32>
    %202 = arith.addf %201, %200 : vector<1x256xf32>
    %203 = arith.divf %201, %202 : vector<1x256xf32>
    %204 = vector.extract_strided_slice %187 {offsets = [0, 512], sizes = [1, 256], strides = [1, 1]} : vector<1x768xf32> to vector<1x256xf32>
    %205 = vector.extract_strided_slice %186 {offsets = [0, 512], sizes = [1, 256], strides = [1, 1]} : vector<1x768xf32> to vector<1x256xf32>
    %206 = arith.addf %205, %10 : vector<1x256xf32>
    %207 = arith.mulf %195, %206 : vector<1x256xf32>
    %208 = arith.addf %204, %207 : vector<1x256xf32>
    %209 = math.tanh %208 : vector<1x256xf32>
    %cst_39 = arith.constant 1.000000e+00 : f32
    %210 = vector.broadcast %cst_39 : f32 to vector<1x256xf32>
    %211 = arith.subf %210, %203 : vector<1x256xf32>
    %212 = arith.mulf %211, %209 : vector<1x256xf32>
    %213 = arith.mulf %203, %185 : vector<1x256xf32>
    %214 = arith.addf %212, %213 : vector<1x256xf32>
    %cst_40 = arith.constant dense<0.000000e+00> : vector<1x768xf32>
    %215 = tpu.matmul %214, %9, %cst_40 {dimension_numbers = #tpu.dot_dimension_numbers<[1], [0], [0], [1], [0, 0, 1, 1], [], []>} : vector<1x256xf32>, vector<256x768xf32>, vector<1x768xf32> -> vector<1x768xf32>
    %216 = vector.extract_strided_slice %8 {offsets = [7, 0], sizes = [1, 768], strides = [1, 1]} : vector<16x768xf32> to vector<1x768xf32>
    %217 = vector.extract_strided_slice %216 {offsets = [0, 0], sizes = [1, 256], strides = [1, 1]} : vector<1x768xf32> to vector<1x256xf32>
    %218 = vector.extract_strided_slice %215 {offsets = [0, 0], sizes = [1, 256], strides = [1, 1]} : vector<1x768xf32> to vector<1x256xf32>
    %219 = arith.addf %217, %218 : vector<1x256xf32>
    %220 = arith.negf %219 : vector<1x256xf32>
    %221 = math.exp %220 : vector<1x256xf32>
    %cst_41 = arith.constant 1.000000e+00 : f32
    %222 = vector.broadcast %cst_41 : f32 to vector<1x256xf32>
    %223 = arith.addf %222, %221 : vector<1x256xf32>
    %224 = arith.divf %222, %223 : vector<1x256xf32>
    %225 = vector.extract_strided_slice %216 {offsets = [0, 256], sizes = [1, 256], strides = [1, 1]} : vector<1x768xf32> to vector<1x256xf32>
    %226 = vector.extract_strided_slice %215 {offsets = [0, 256], sizes = [1, 256], strides = [1, 1]} : vector<1x768xf32> to vector<1x256xf32>
    %227 = arith.addf %225, %226 : vector<1x256xf32>
    %228 = arith.negf %227 : vector<1x256xf32>
    %229 = math.exp %228 : vector<1x256xf32>
    %cst_42 = arith.constant 1.000000e+00 : f32
    %230 = vector.broadcast %cst_42 : f32 to vector<1x256xf32>
    %231 = arith.addf %230, %229 : vector<1x256xf32>
    %232 = arith.divf %230, %231 : vector<1x256xf32>
    %233 = vector.extract_strided_slice %216 {offsets = [0, 512], sizes = [1, 256], strides = [1, 1]} : vector<1x768xf32> to vector<1x256xf32>
    %234 = vector.extract_strided_slice %215 {offsets = [0, 512], sizes = [1, 256], strides = [1, 1]} : vector<1x768xf32> to vector<1x256xf32>
    %235 = arith.addf %234, %10 : vector<1x256xf32>
    %236 = arith.mulf %224, %235 : vector<1x256xf32>
    %237 = arith.addf %233, %236 : vector<1x256xf32>
    %238 = math.tanh %237 : vector<1x256xf32>
    %cst_43 = arith.constant 1.000000e+00 : f32
    %239 = vector.broadcast %cst_43 : f32 to vector<1x256xf32>
    %240 = arith.subf %239, %232 : vector<1x256xf32>
    %241 = arith.mulf %240, %238 : vector<1x256xf32>
    %242 = arith.mulf %232, %214 : vector<1x256xf32>
    %243 = arith.addf %241, %242 : vector<1x256xf32>
    %cst_44 = arith.constant dense<0.000000e+00> : vector<1x768xf32>
    %244 = tpu.matmul %243, %9, %cst_44 {dimension_numbers = #tpu.dot_dimension_numbers<[1], [0], [0], [1], [0, 0, 1, 1], [], []>} : vector<1x256xf32>, vector<256x768xf32>, vector<1x768xf32> -> vector<1x768xf32>
    %245 = vector.extract_strided_slice %8 {offsets = [8, 0], sizes = [1, 768], strides = [1, 1]} : vector<16x768xf32> to vector<1x768xf32>
    %246 = vector.extract_strided_slice %245 {offsets = [0, 0], sizes = [1, 256], strides = [1, 1]} : vector<1x768xf32> to vector<1x256xf32>
    %247 = vector.extract_strided_slice %244 {offsets = [0, 0], sizes = [1, 256], strides = [1, 1]} : vector<1x768xf32> to vector<1x256xf32>
    %248 = arith.addf %246, %247 : vector<1x256xf32>
    %249 = arith.negf %248 : vector<1x256xf32>
    %250 = math.exp %249 : vector<1x256xf32>
    %cst_45 = arith.constant 1.000000e+00 : f32
    %251 = vector.broadcast %cst_45 : f32 to vector<1x256xf32>
    %252 = arith.addf %251, %250 : vector<1x256xf32>
    %253 = arith.divf %251, %252 : vector<1x256xf32>
    %254 = vector.extract_strided_slice %245 {offsets = [0, 256], sizes = [1, 256], strides = [1, 1]} : vector<1x768xf32> to vector<1x256xf32>
    %255 = vector.extract_strided_slice %244 {offsets = [0, 256], sizes = [1, 256], strides = [1, 1]} : vector<1x768xf32> to vector<1x256xf32>
    %256 = arith.addf %254, %255 : vector<1x256xf32>
    %257 = arith.negf %256 : vector<1x256xf32>
    %258 = math.exp %257 : vector<1x256xf32>
    %cst_46 = arith.constant 1.000000e+00 : f32
    %259 = vector.broadcast %cst_46 : f32 to vector<1x256xf32>
    %260 = arith.addf %259, %258 : vector<1x256xf32>
    %261 = arith.divf %259, %260 : vector<1x256xf32>
    %262 = vector.extract_strided_slice %245 {offsets = [0, 512], sizes = [1, 256], strides = [1, 1]} : vector<1x768xf32> to vector<1x256xf32>
    %263 = vector.extract_strided_slice %244 {offsets = [0, 512], sizes = [1, 256], strides = [1, 1]} : vector<1x768xf32> to vector<1x256xf32>
    %264 = arith.addf %263, %10 : vector<1x256xf32>
    %265 = arith.mulf %253, %264 : vector<1x256xf32>
    %266 = arith.addf %262, %265 : vector<1x256xf32>
    %267 = math.tanh %266 : vector<1x256xf32>
    %cst_47 = arith.constant 1.000000e+00 : f32
    %268 = vector.broadcast %cst_47 : f32 to vector<1x256xf32>
    %269 = arith.subf %268, %261 : vector<1x256xf32>
    %270 = arith.mulf %269, %267 : vector<1x256xf32>
    %271 = arith.mulf %261, %243 : vector<1x256xf32>
    %272 = arith.addf %270, %271 : vector<1x256xf32>
    %cst_48 = arith.constant dense<0.000000e+00> : vector<1x768xf32>
    %273 = tpu.matmul %272, %9, %cst_48 {dimension_numbers = #tpu.dot_dimension_numbers<[1], [0], [0], [1], [0, 0, 1, 1], [], []>} : vector<1x256xf32>, vector<256x768xf32>, vector<1x768xf32> -> vector<1x768xf32>
    %274 = vector.extract_strided_slice %8 {offsets = [9, 0], sizes = [1, 768], strides = [1, 1]} : vector<16x768xf32> to vector<1x768xf32>
    %275 = vector.extract_strided_slice %274 {offsets = [0, 0], sizes = [1, 256], strides = [1, 1]} : vector<1x768xf32> to vector<1x256xf32>
    %276 = vector.extract_strided_slice %273 {offsets = [0, 0], sizes = [1, 256], strides = [1, 1]} : vector<1x768xf32> to vector<1x256xf32>
    %277 = arith.addf %275, %276 : vector<1x256xf32>
    %278 = arith.negf %277 : vector<1x256xf32>
    %279 = math.exp %278 : vector<1x256xf32>
    %cst_49 = arith.constant 1.000000e+00 : f32
    %280 = vector.broadcast %cst_49 : f32 to vector<1x256xf32>
    %281 = arith.addf %280, %279 : vector<1x256xf32>
    %282 = arith.divf %280, %281 : vector<1x256xf32>
    %283 = vector.extract_strided_slice %274 {offsets = [0, 256], sizes = [1, 256], strides = [1, 1]} : vector<1x768xf32> to vector<1x256xf32>
    %284 = vector.extract_strided_slice %273 {offsets = [0, 256], sizes = [1, 256], strides = [1, 1]} : vector<1x768xf32> to vector<1x256xf32>
    %285 = arith.addf %283, %284 : vector<1x256xf32>
    %286 = arith.negf %285 : vector<1x256xf32>
    %287 = math.exp %286 : vector<1x256xf32>
    %cst_50 = arith.constant 1.000000e+00 : f32
    %288 = vector.broadcast %cst_50 : f32 to vector<1x256xf32>
    %289 = arith.addf %288, %287 : vector<1x256xf32>
    %290 = arith.divf %288, %289 : vector<1x256xf32>
    %291 = vector.extract_strided_slice %274 {offsets = [0, 512], sizes = [1, 256], strides = [1, 1]} : vector<1x768xf32> to vector<1x256xf32>
    %292 = vector.extract_strided_slice %273 {offsets = [0, 512], sizes = [1, 256], strides = [1, 1]} : vector<1x768xf32> to vector<1x256xf32>
    %293 = arith.addf %292, %10 : vector<1x256xf32>
    %294 = arith.mulf %282, %293 : vector<1x256xf32>
    %295 = arith.addf %291, %294 : vector<1x256xf32>
    %296 = math.tanh %295 : vector<1x256xf32>
    %cst_51 = arith.constant 1.000000e+00 : f32
    %297 = vector.broadcast %cst_51 : f32 to vector<1x256xf32>
    %298 = arith.subf %297, %290 : vector<1x256xf32>
    %299 = arith.mulf %298, %296 : vector<1x256xf32>
    %300 = arith.mulf %290, %272 : vector<1x256xf32>
    %301 = arith.addf %299, %300 : vector<1x256xf32>
    %cst_52 = arith.constant dense<0.000000e+00> : vector<1x768xf32>
    %302 = tpu.matmul %301, %9, %cst_52 {dimension_numbers = #tpu.dot_dimension_numbers<[1], [0], [0], [1], [0, 0, 1, 1], [], []>} : vector<1x256xf32>, vector<256x768xf32>, vector<1x768xf32> -> vector<1x768xf32>
    %303 = vector.extract_strided_slice %8 {offsets = [10, 0], sizes = [1, 768], strides = [1, 1]} : vector<16x768xf32> to vector<1x768xf32>
    %304 = vector.extract_strided_slice %303 {offsets = [0, 0], sizes = [1, 256], strides = [1, 1]} : vector<1x768xf32> to vector<1x256xf32>
    %305 = vector.extract_strided_slice %302 {offsets = [0, 0], sizes = [1, 256], strides = [1, 1]} : vector<1x768xf32> to vector<1x256xf32>
    %306 = arith.addf %304, %305 : vector<1x256xf32>
    %307 = arith.negf %306 : vector<1x256xf32>
    %308 = math.exp %307 : vector<1x256xf32>
    %cst_53 = arith.constant 1.000000e+00 : f32
    %309 = vector.broadcast %cst_53 : f32 to vector<1x256xf32>
    %310 = arith.addf %309, %308 : vector<1x256xf32>
    %311 = arith.divf %309, %310 : vector<1x256xf32>
    %312 = vector.extract_strided_slice %303 {offsets = [0, 256], sizes = [1, 256], strides = [1, 1]} : vector<1x768xf32> to vector<1x256xf32>
    %313 = vector.extract_strided_slice %302 {offsets = [0, 256], sizes = [1, 256], strides = [1, 1]} : vector<1x768xf32> to vector<1x256xf32>
    %314 = arith.addf %312, %313 : vector<1x256xf32>
    %315 = arith.negf %314 : vector<1x256xf32>
    %316 = math.exp %315 : vector<1x256xf32>
    %cst_54 = arith.constant 1.000000e+00 : f32
    %317 = vector.broadcast %cst_54 : f32 to vector<1x256xf32>
    %318 = arith.addf %317, %316 : vector<1x256xf32>
    %319 = arith.divf %317, %318 : vector<1x256xf32>
    %320 = vector.extract_strided_slice %303 {offsets = [0, 512], sizes = [1, 256], strides = [1, 1]} : vector<1x768xf32> to vector<1x256xf32>
    %321 = vector.extract_strided_slice %302 {offsets = [0, 512], sizes = [1, 256], strides = [1, 1]} : vector<1x768xf32> to vector<1x256xf32>
    %322 = arith.addf %321, %10 : vector<1x256xf32>
    %323 = arith.mulf %311, %322 : vector<1x256xf32>
    %324 = arith.addf %320, %323 : vector<1x256xf32>
    %325 = math.tanh %324 : vector<1x256xf32>
    %cst_55 = arith.constant 1.000000e+00 : f32
    %326 = vector.broadcast %cst_55 : f32 to vector<1x256xf32>
    %327 = arith.subf %326, %319 : vector<1x256xf32>
    %328 = arith.mulf %327, %325 : vector<1x256xf32>
    %329 = arith.mulf %319, %301 : vector<1x256xf32>
    %330 = arith.addf %328, %329 : vector<1x256xf32>
    %cst_56 = arith.constant dense<0.000000e+00> : vector<1x768xf32>
    %331 = tpu.matmul %330, %9, %cst_56 {dimension_numbers = #tpu.dot_dimension_numbers<[1], [0], [0], [1], [0, 0, 1, 1], [], []>} : vector<1x256xf32>, vector<256x768xf32>, vector<1x768xf32> -> vector<1x768xf32>
    %332 = vector.extract_strided_slice %8 {offsets = [11, 0], sizes = [1, 768], strides = [1, 1]} : vector<16x768xf32> to vector<1x768xf32>
    %333 = vector.extract_strided_slice %332 {offsets = [0, 0], sizes = [1, 256], strides = [1, 1]} : vector<1x768xf32> to vector<1x256xf32>
    %334 = vector.extract_strided_slice %331 {offsets = [0, 0], sizes = [1, 256], strides = [1, 1]} : vector<1x768xf32> to vector<1x256xf32>
    %335 = arith.addf %333, %334 : vector<1x256xf32>
    %336 = arith.negf %335 : vector<1x256xf32>
    %337 = math.exp %336 : vector<1x256xf32>
    %cst_57 = arith.constant 1.000000e+00 : f32
    %338 = vector.broadcast %cst_57 : f32 to vector<1x256xf32>
    %339 = arith.addf %338, %337 : vector<1x256xf32>
    %340 = arith.divf %338, %339 : vector<1x256xf32>
    %341 = vector.extract_strided_slice %332 {offsets = [0, 256], sizes = [1, 256], strides = [1, 1]} : vector<1x768xf32> to vector<1x256xf32>
    %342 = vector.extract_strided_slice %331 {offsets = [0, 256], sizes = [1, 256], strides = [1, 1]} : vector<1x768xf32> to vector<1x256xf32>
    %343 = arith.addf %341, %342 : vector<1x256xf32>
    %344 = arith.negf %343 : vector<1x256xf32>
    %345 = math.exp %344 : vector<1x256xf32>
    %cst_58 = arith.constant 1.000000e+00 : f32
    %346 = vector.broadcast %cst_58 : f32 to vector<1x256xf32>
    %347 = arith.addf %346, %345 : vector<1x256xf32>
    %348 = arith.divf %346, %347 : vector<1x256xf32>
    %349 = vector.extract_strided_slice %332 {offsets = [0, 512], sizes = [1, 256], strides = [1, 1]} : vector<1x768xf32> to vector<1x256xf32>
    %350 = vector.extract_strided_slice %331 {offsets = [0, 512], sizes = [1, 256], strides = [1, 1]} : vector<1x768xf32> to vector<1x256xf32>
    %351 = arith.addf %350, %10 : vector<1x256xf32>
    %352 = arith.mulf %340, %351 : vector<1x256xf32>
    %353 = arith.addf %349, %352 : vector<1x256xf32>
    %354 = math.tanh %353 : vector<1x256xf32>
    %cst_59 = arith.constant 1.000000e+00 : f32
    %355 = vector.broadcast %cst_59 : f32 to vector<1x256xf32>
    %356 = arith.subf %355, %348 : vector<1x256xf32>
    %357 = arith.mulf %356, %354 : vector<1x256xf32>
    %358 = arith.mulf %348, %330 : vector<1x256xf32>
    %359 = arith.addf %357, %358 : vector<1x256xf32>
    %cst_60 = arith.constant dense<0.000000e+00> : vector<1x768xf32>
    %360 = tpu.matmul %359, %9, %cst_60 {dimension_numbers = #tpu.dot_dimension_numbers<[1], [0], [0], [1], [0, 0, 1, 1], [], []>} : vector<1x256xf32>, vector<256x768xf32>, vector<1x768xf32> -> vector<1x768xf32>
    %361 = vector.extract_strided_slice %8 {offsets = [12, 0], sizes = [1, 768], strides = [1, 1]} : vector<16x768xf32> to vector<1x768xf32>
    %362 = vector.extract_strided_slice %361 {offsets = [0, 0], sizes = [1, 256], strides = [1, 1]} : vector<1x768xf32> to vector<1x256xf32>
    %363 = vector.extract_strided_slice %360 {offsets = [0, 0], sizes = [1, 256], strides = [1, 1]} : vector<1x768xf32> to vector<1x256xf32>
    %364 = arith.addf %362, %363 : vector<1x256xf32>
    %365 = arith.negf %364 : vector<1x256xf32>
    %366 = math.exp %365 : vector<1x256xf32>
    %cst_61 = arith.constant 1.000000e+00 : f32
    %367 = vector.broadcast %cst_61 : f32 to vector<1x256xf32>
    %368 = arith.addf %367, %366 : vector<1x256xf32>
    %369 = arith.divf %367, %368 : vector<1x256xf32>
    %370 = vector.extract_strided_slice %361 {offsets = [0, 256], sizes = [1, 256], strides = [1, 1]} : vector<1x768xf32> to vector<1x256xf32>
    %371 = vector.extract_strided_slice %360 {offsets = [0, 256], sizes = [1, 256], strides = [1, 1]} : vector<1x768xf32> to vector<1x256xf32>
    %372 = arith.addf %370, %371 : vector<1x256xf32>
    %373 = arith.negf %372 : vector<1x256xf32>
    %374 = math.exp %373 : vector<1x256xf32>
    %cst_62 = arith.constant 1.000000e+00 : f32
    %375 = vector.broadcast %cst_62 : f32 to vector<1x256xf32>
    %376 = arith.addf %375, %374 : vector<1x256xf32>
    %377 = arith.divf %375, %376 : vector<1x256xf32>
    %378 = vector.extract_strided_slice %361 {offsets = [0, 512], sizes = [1, 256], strides = [1, 1]} : vector<1x768xf32> to vector<1x256xf32>
    %379 = vector.extract_strided_slice %360 {offsets = [0, 512], sizes = [1, 256], strides = [1, 1]} : vector<1x768xf32> to vector<1x256xf32>
    %380 = arith.addf %379, %10 : vector<1x256xf32>
    %381 = arith.mulf %369, %380 : vector<1x256xf32>
    %382 = arith.addf %378, %381 : vector<1x256xf32>
    %383 = math.tanh %382 : vector<1x256xf32>
    %cst_63 = arith.constant 1.000000e+00 : f32
    %384 = vector.broadcast %cst_63 : f32 to vector<1x256xf32>
    %385 = arith.subf %384, %377 : vector<1x256xf32>
    %386 = arith.mulf %385, %383 : vector<1x256xf32>
    %387 = arith.mulf %377, %359 : vector<1x256xf32>
    %388 = arith.addf %386, %387 : vector<1x256xf32>
    %cst_64 = arith.constant dense<0.000000e+00> : vector<1x768xf32>
    %389 = tpu.matmul %388, %9, %cst_64 {dimension_numbers = #tpu.dot_dimension_numbers<[1], [0], [0], [1], [0, 0, 1, 1], [], []>} : vector<1x256xf32>, vector<256x768xf32>, vector<1x768xf32> -> vector<1x768xf32>
    %390 = vector.extract_strided_slice %8 {offsets = [13, 0], sizes = [1, 768], strides = [1, 1]} : vector<16x768xf32> to vector<1x768xf32>
    %391 = vector.extract_strided_slice %390 {offsets = [0, 0], sizes = [1, 256], strides = [1, 1]} : vector<1x768xf32> to vector<1x256xf32>
    %392 = vector.extract_strided_slice %389 {offsets = [0, 0], sizes = [1, 256], strides = [1, 1]} : vector<1x768xf32> to vector<1x256xf32>
    %393 = arith.addf %391, %392 : vector<1x256xf32>
    %394 = arith.negf %393 : vector<1x256xf32>
    %395 = math.exp %394 : vector<1x256xf32>
    %cst_65 = arith.constant 1.000000e+00 : f32
    %396 = vector.broadcast %cst_65 : f32 to vector<1x256xf32>
    %397 = arith.addf %396, %395 : vector<1x256xf32>
    %398 = arith.divf %396, %397 : vector<1x256xf32>
    %399 = vector.extract_strided_slice %390 {offsets = [0, 256], sizes = [1, 256], strides = [1, 1]} : vector<1x768xf32> to vector<1x256xf32>
    %400 = vector.extract_strided_slice %389 {offsets = [0, 256], sizes = [1, 256], strides = [1, 1]} : vector<1x768xf32> to vector<1x256xf32>
    %401 = arith.addf %399, %400 : vector<1x256xf32>
    %402 = arith.negf %401 : vector<1x256xf32>
    %403 = math.exp %402 : vector<1x256xf32>
    %cst_66 = arith.constant 1.000000e+00 : f32
    %404 = vector.broadcast %cst_66 : f32 to vector<1x256xf32>
    %405 = arith.addf %404, %403 : vector<1x256xf32>
    %406 = arith.divf %404, %405 : vector<1x256xf32>
    %407 = vector.extract_strided_slice %390 {offsets = [0, 512], sizes = [1, 256], strides = [1, 1]} : vector<1x768xf32> to vector<1x256xf32>
    %408 = vector.extract_strided_slice %389 {offsets = [0, 512], sizes = [1, 256], strides = [1, 1]} : vector<1x768xf32> to vector<1x256xf32>
    %409 = arith.addf %408, %10 : vector<1x256xf32>
    %410 = arith.mulf %398, %409 : vector<1x256xf32>
    %411 = arith.addf %407, %410 : vector<1x256xf32>
    %412 = math.tanh %411 : vector<1x256xf32>
    %cst_67 = arith.constant 1.000000e+00 : f32
    %413 = vector.broadcast %cst_67 : f32 to vector<1x256xf32>
    %414 = arith.subf %413, %406 : vector<1x256xf32>
    %415 = arith.mulf %414, %412 : vector<1x256xf32>
    %416 = arith.mulf %406, %388 : vector<1x256xf32>
    %417 = arith.addf %415, %416 : vector<1x256xf32>
    %cst_68 = arith.constant dense<0.000000e+00> : vector<1x768xf32>
    %418 = tpu.matmul %417, %9, %cst_68 {dimension_numbers = #tpu.dot_dimension_numbers<[1], [0], [0], [1], [0, 0, 1, 1], [], []>} : vector<1x256xf32>, vector<256x768xf32>, vector<1x768xf32> -> vector<1x768xf32>
    %419 = vector.extract_strided_slice %8 {offsets = [14, 0], sizes = [1, 768], strides = [1, 1]} : vector<16x768xf32> to vector<1x768xf32>
    %420 = vector.extract_strided_slice %419 {offsets = [0, 0], sizes = [1, 256], strides = [1, 1]} : vector<1x768xf32> to vector<1x256xf32>
    %421 = vector.extract_strided_slice %418 {offsets = [0, 0], sizes = [1, 256], strides = [1, 1]} : vector<1x768xf32> to vector<1x256xf32>
    %422 = arith.addf %420, %421 : vector<1x256xf32>
    %423 = arith.negf %422 : vector<1x256xf32>
    %424 = math.exp %423 : vector<1x256xf32>
    %cst_69 = arith.constant 1.000000e+00 : f32
    %425 = vector.broadcast %cst_69 : f32 to vector<1x256xf32>
    %426 = arith.addf %425, %424 : vector<1x256xf32>
    %427 = arith.divf %425, %426 : vector<1x256xf32>
    %428 = vector.extract_strided_slice %419 {offsets = [0, 256], sizes = [1, 256], strides = [1, 1]} : vector<1x768xf32> to vector<1x256xf32>
    %429 = vector.extract_strided_slice %418 {offsets = [0, 256], sizes = [1, 256], strides = [1, 1]} : vector<1x768xf32> to vector<1x256xf32>
    %430 = arith.addf %428, %429 : vector<1x256xf32>
    %431 = arith.negf %430 : vector<1x256xf32>
    %432 = math.exp %431 : vector<1x256xf32>
    %cst_70 = arith.constant 1.000000e+00 : f32
    %433 = vector.broadcast %cst_70 : f32 to vector<1x256xf32>
    %434 = arith.addf %433, %432 : vector<1x256xf32>
    %435 = arith.divf %433, %434 : vector<1x256xf32>
    %436 = vector.extract_strided_slice %419 {offsets = [0, 512], sizes = [1, 256], strides = [1, 1]} : vector<1x768xf32> to vector<1x256xf32>
    %437 = vector.extract_strided_slice %418 {offsets = [0, 512], sizes = [1, 256], strides = [1, 1]} : vector<1x768xf32> to vector<1x256xf32>
    %438 = arith.addf %437, %10 : vector<1x256xf32>
    %439 = arith.mulf %427, %438 : vector<1x256xf32>
    %440 = arith.addf %436, %439 : vector<1x256xf32>
    %441 = math.tanh %440 : vector<1x256xf32>
    %cst_71 = arith.constant 1.000000e+00 : f32
    %442 = vector.broadcast %cst_71 : f32 to vector<1x256xf32>
    %443 = arith.subf %442, %435 : vector<1x256xf32>
    %444 = arith.mulf %443, %441 : vector<1x256xf32>
    %445 = arith.mulf %435, %417 : vector<1x256xf32>
    %446 = arith.addf %444, %445 : vector<1x256xf32>
    %cst_72 = arith.constant dense<0.000000e+00> : vector<1x768xf32>
    %447 = tpu.matmul %446, %9, %cst_72 {dimension_numbers = #tpu.dot_dimension_numbers<[1], [0], [0], [1], [0, 0, 1, 1], [], []>} : vector<1x256xf32>, vector<256x768xf32>, vector<1x768xf32> -> vector<1x768xf32>
    %448 = vector.extract_strided_slice %8 {offsets = [15, 0], sizes = [1, 768], strides = [1, 1]} : vector<16x768xf32> to vector<1x768xf32>
    %449 = vector.extract_strided_slice %448 {offsets = [0, 0], sizes = [1, 256], strides = [1, 1]} : vector<1x768xf32> to vector<1x256xf32>
    %450 = vector.extract_strided_slice %447 {offsets = [0, 0], sizes = [1, 256], strides = [1, 1]} : vector<1x768xf32> to vector<1x256xf32>
    %451 = arith.addf %449, %450 : vector<1x256xf32>
    %452 = arith.negf %451 : vector<1x256xf32>
    %453 = math.exp %452 : vector<1x256xf32>
    %cst_73 = arith.constant 1.000000e+00 : f32
    %454 = vector.broadcast %cst_73 : f32 to vector<1x256xf32>
    %455 = arith.addf %454, %453 : vector<1x256xf32>
    %456 = arith.divf %454, %455 : vector<1x256xf32>
    %457 = vector.extract_strided_slice %448 {offsets = [0, 256], sizes = [1, 256], strides = [1, 1]} : vector<1x768xf32> to vector<1x256xf32>
    %458 = vector.extract_strided_slice %447 {offsets = [0, 256], sizes = [1, 256], strides = [1, 1]} : vector<1x768xf32> to vector<1x256xf32>
    %459 = arith.addf %457, %458 : vector<1x256xf32>
    %460 = arith.negf %459 : vector<1x256xf32>
    %461 = math.exp %460 : vector<1x256xf32>
    %cst_74 = arith.constant 1.000000e+00 : f32
    %462 = vector.broadcast %cst_74 : f32 to vector<1x256xf32>
    %463 = arith.addf %462, %461 : vector<1x256xf32>
    %464 = arith.divf %462, %463 : vector<1x256xf32>
    %465 = vector.extract_strided_slice %448 {offsets = [0, 512], sizes = [1, 256], strides = [1, 1]} : vector<1x768xf32> to vector<1x256xf32>
    %466 = vector.extract_strided_slice %447 {offsets = [0, 512], sizes = [1, 256], strides = [1, 1]} : vector<1x768xf32> to vector<1x256xf32>
    %467 = arith.addf %466, %10 : vector<1x256xf32>
    %468 = arith.mulf %456, %467 : vector<1x256xf32>
    %469 = arith.addf %465, %468 : vector<1x256xf32>
    %470 = math.tanh %469 : vector<1x256xf32>
    %cst_75 = arith.constant 1.000000e+00 : f32
    %471 = vector.broadcast %cst_75 : f32 to vector<1x256xf32>
    %472 = arith.subf %471, %464 : vector<1x256xf32>
    %473 = arith.mulf %472, %470 : vector<1x256xf32>
    %474 = arith.mulf %464, %446 : vector<1x256xf32>
    %475 = arith.addf %473, %474 : vector<1x256xf32>
    %476 = tpu.concatenate %40, %69, %98, %127, %156, %185, %214, %243, %272, %301, %330, %359, %388, %417, %446, %475 in 0 : vector<1x256xf32>, vector<1x256xf32>, vector<1x256xf32>, vector<1x256xf32>, vector<1x256xf32>, vector<1x256xf32>, vector<1x256xf32>, vector<1x256xf32>, vector<1x256xf32>, vector<1x256xf32>, vector<1x256xf32>, vector<1x256xf32>, vector<1x256xf32>, vector<1x256xf32>, vector<1x256xf32>, vector<1x256xf32> -> vector<16x256xf32>
    %c0_76 = arith.constant 0 : index
    %c0_77 = arith.constant 0 : index
    %477 = vector.load %arg7[%c0_76, %c0_77] : memref<16x256xf32, #tpu.memory_space<vmem>>, vector<16x256xf32>
    tpu.vector_store %arg7[%c0_76, %c0_77], %476 {strides = array<i32>} : memref<16x256xf32, #tpu.memory_space<vmem>>, vector<16x256xf32>,
    %c0_78 = arith.constant 0 : index
    %c0_79 = arith.constant 0 : index
    %478 = vector.load %arg8[%c0_78, %c0_79] : memref<1x256xf32, #tpu.memory_space<vmem>>, vector<1x256xf32>
    tpu.vector_store %arg8[%c0_78, %c0_79], %475 {strides = array<i32>} : memref<1x256xf32, #tpu.memory_space<vmem>>, vector<1x256xf32>,
    return
  }
  func.func @transform_0(%arg0: i32) -> (i32, i32) {
    %c0_i32 = arith.constant 0 : i32
    %c0_i32_0 = arith.constant 0 : i32
    return %arg0, %c0_i32 : i32, i32
  }
  func.func @transform_1(%arg0: i32) -> (i32, i32) {
    %c0_i32 = arith.constant 0 : i32
    %c0_i32_0 = arith.constant 0 : i32
    %c0_i32_1 = arith.constant 0 : i32
    return %c0_i32, %c0_i32_0 : i32, i32
  }
  func.func @transform_2(%arg0: i32) -> (i32, i32) {
    %c0_i32 = arith.constant 0 : i32
    %c0_i32_0 = arith.constant 0 : i32
    %c0_i32_1 = arith.constant 0 : i32
    return %c0_i32, %c0_i32_0 : i32, i32
  }
  func.func @transform_3(%arg0: i32) -> (i32, i32) {
    %c0_i32 = arith.constant 0 : i32
    %c0_i32_0 = arith.constant 0 : i32
    %c0_i32_1 = arith.constant 0 : i32
    return %c0_i32, %c0_i32_0 : i32, i32
  }
  func.func @transform_4(%arg0: i32) -> (i32, i32) {
    %c0_i32 = arith.constant 0 : i32
    %c0_i32_0 = arith.constant 0 : i32
    %c0_i32_1 = arith.constant 0 : i32
    return %c0_i32, %c0_i32_0 : i32, i32
  }
  func.func @transform_5(%arg0: i32) -> (i32, i32) {
    %c0_i32 = arith.constant 0 : i32
    %c0_i32_0 = arith.constant 0 : i32
    %c0_i32_1 = arith.constant 0 : i32
    return %c0_i32, %c0_i32_0 : i32, i32
  }
  func.func @transform_6(%arg0: i32) -> (i32, i32) {
    %c0_i32 = arith.constant 0 : i32
    %c0_i32_0 = arith.constant 0 : i32
    return %arg0, %c0_i32 : i32, i32
  }
}

</mosaic_0001>

<llo_original>
// kernel: tpu_custom_call.1
$region0: #{tpu_custom_call.1}
  #allocation0 [shape = 'u32[]', space=smem, size = 0x4, offset = 0x4, fixed_abs, tag = 'smem constant byte address 0x4 - core index']
  #allocation1 [shape = 'u32[144,128]{1,0:T(1,128)}', space=vmem, size = 0x12000, scoped, tag = 'internal scratch']
  #allocation2 [shape = 'f32[1,256]{1,0:T(1,128)}', space=vmem, size = 0x400, scoped, tag = 'scratch operand']
  %s0 = inlined_call_operand.hbm [shape: f32[16,256], index: 0, kind: input, shape index: {}]
  %s1 = inlined_call_operand.hbm [shape: f32[256,768], index: 1, kind: input, shape index: {}]
  %s2 = inlined_call_operand.hbm [shape: f32[256,768], index: 2, kind: input, shape index: {}]
  %s3 = inlined_call_operand.hbm [shape: f32[1,768], index: 3, kind: input, shape index: {}]
  %s4 = inlined_call_operand.vmem [shape: f32[1,256], index: 4, kind: input, shape index: {}]
  %s5 = inlined_call_operand.vmem [shape: f32[1,256], index: 5, kind: input, shape index: {}]
  %s6 = inlined_call_operand.hbm [shape: f32[16,256], index: 6, kind: output, shape index: {}]
  %s7 = sld [smem:[#allocation0]]
  $region54: #{tpu_custom_call.1} parent=0
    _
  %s9 = ssub.s32 1, %s7
  %s10 = scalar_select 0, %s9, %s7
  $region1: #{tpu_custom_call.1} parent=0
    #allocation3 [shape = 'u8[16384]{0}', space=vmem, size = 0x4000, scoped, tag = 'input window, operand 0, single buffered']
    #allocation4 [shape = 's32[1]{0}', space=sflag, size = 0x4, scoped, tag = 'scoped memory for tpu_custom_call.1']
    #allocation5 [shape = 's32[1]{0}', space=sflag, size = 0x4, scoped, tag = 'scoped memory for tpu_custom_call.1']
    #allocation6 [shape = 'u8[786432]{0}', space=vmem, size = 0xc0000, scoped, tag = 'input window, operand 1, single buffered']
    #allocation7 [shape = 's32[1]{0}', space=sflag, size = 0x4, scoped, tag = 'scoped memory for tpu_custom_call.1']
    #allocation8 [shape = 'u8[786432]{0}', space=vmem, size = 0xc0000, scoped, tag = 'input window, operand 2, single buffered']
    #allocation9 [shape = 'u8[3072]{0}', space=vmem, size = 0xc00, scoped, tag = 'input window, operand 3, single buffered']
    #allocation10 [shape = 's32[1]{0}', space=sflag, size = 0x4, scoped, tag = 'scoped memory for tpu_custom_call.1']
    #allocation11 [shape = 'u8[16384]{0}', space=vmem, size = 0x4000, scoped, tag = 'output window, operand 0, single buffered']
    %11 = vsyncpa [#allocation4], 0
    %12 = vsyncpa [#allocation7], 0
    %13 = vsyncpa [#allocation10], 0
    %14 = vsyncpa [#allocation5], 0
    // Predicated region
    $region2: #{tpu_custom_call.1} parent=1 // pred_check
      _
    $region3: #{tpu_custom_call.1} parent=1 // pred_check_branch
      %16 = sbr.rel (0) target = $region5
    $region4: #{tpu_custom_call.1} parent=1 // pred_region
      %s18 = ssub.s32 512, 512
      %19 = vsyncadd [#allocation4], %s18
      %s20 = sshll.u32 [#allocation3], 4
      %s21 = int_to_ptr.vmem [resolvable:$true] %s20
      %26 = dma.hbm_to_vmem [thread:$0]  %s0, 512, %s21, [#allocation4], 256, 256, 16
    $region5: #{tpu_custom_call.1} parent=1 // pred_fallthru
      _
    // Predicated region
    $region6: #{tpu_custom_call.1} parent=1 // pred_check
      _
    $region7: #{tpu_custom_call.1} parent=1 // pred_check_branch
      %28 = sbr.rel (0) target = $region9
    $region8: #{tpu_custom_call.1} parent=1 // pred_region
      %s30 = ssub.s32 24576, 24576
      %31 = vsyncadd [#allocation7], %s30
      %s32 = sshll.u32 [#allocation6], 4
      %s33 = int_to_ptr.vmem [resolvable:$true] %s32
      %38 = dma.hbm_to_vmem [thread:$0]  %s1, 24576, %s33, [#allocation7], 768, 768, 48
    $region9: #{tpu_custom_call.1} parent=1 // pred_fallthru
      _
    // Predicated region
    $region10: #{tpu_custom_call.1} parent=1 // pred_check
      _
    $region11: #{tpu_custom_call.1} parent=1 // pred_check_branch
      %40 = sbr.rel (0) target = $region13
    $region12: #{tpu_custom_call.1} parent=1 // pred_region
      %s42 = ssub.s32 24576, 24576
      %43 = vsyncadd [#allocation7], %s42
      %s44 = sshll.u32 [#allocation8], 4
      %s45 = int_to_ptr.vmem [resolvable:$true] %s44
      %50 = dma.hbm_to_vmem [thread:$0]  %s2, 24576, %s45, [#allocation7], 768, 768, 48
    $region13: #{tpu_custom_call.1} parent=1 // pred_fallthru
      _
    // Predicated region
    $region14: #{tpu_custom_call.1} parent=1 // pred_check
      _
    $region15: #{tpu_custom_call.1} parent=1 // pred_check_branch
      %52 = sbr.rel (0) target = $region17
    $region16: #{tpu_custom_call.1} parent=1 // pred_region
      %s54 = ssub.s32 96, 96
      %55 = vsyncadd [#allocation10], %s54
      %s57 = sshll.u32 [#allocation9], 4
      %s58 = int_to_ptr.vmem [resolvable:$true] %s57
      %60 = dma.hbm_to_vmem [thread:$0]  %s3, 96, %s58, [#allocation10]
    $region17: #{tpu_custom_call.1} parent=1 // pred_fallthru
      _
    // Predicated region
    $region18: #{tpu_custom_call.1} parent=1 // pred_check
      _
    $region19: #{tpu_custom_call.1} parent=1 // pred_check_branch
      %62 = sbr.rel (0) target = $region21
    $region20: #{tpu_custom_call.1} parent=1 // pred_region
      _
    $region21: #{tpu_custom_call.1} parent=1 // pred_fallthru
      _
    // Predicated region
    $region22: #{tpu_custom_call.1} parent=1 // pred_check
      _
    $region23: #{tpu_custom_call.1} parent=1 // pred_check_branch
      %64 = sbr.rel (0) target = $region25
    $region24: #{tpu_custom_call.1} parent=1 // pred_region
      _
    $region25: #{tpu_custom_call.1} parent=1 // pred_fallthru
      _
    // Predicated region
    $region26: #{tpu_custom_call.1} parent=1 // pred_check
      _
    $region27: #{tpu_custom_call.1} parent=1 // pred_check_branch
      %66 = sbr.rel (0) target = $region29
    $region28: #{tpu_custom_call.1} parent=1 // pred_region
      %67 = dma.done [#allocation4], 512
    $region29: #{tpu_custom_call.1} parent=1 // pred_fallthru
      _
    // Predicated region
    $region30: #{tpu_custom_call.1} parent=1 // pred_check
      _
    $region31: #{tpu_custom_call.1} parent=1 // pred_check_branch
      %69 = sbr.rel (0) target = $region33
    $region32: #{tpu_custom_call.1} parent=1 // pred_region
      %70 = dma.done [#allocation7], 24576
    $region33: #{tpu_custom_call.1} parent=1 // pred_fallthru
      _
    // Predicated region
    $region34: #{tpu_custom_call.1} parent=1 // pred_check
      _
    $region35: #{tpu_custom_call.1} parent=1 // pred_check_branch
      %72 = sbr.rel (0) target = $region37
    $region36: #{tpu_custom_call.1} parent=1 // pred_region
      %73 = dma.done [#allocation7], 24576
    $region37: #{tpu_custom_call.1} parent=1 // pred_fallthru
      _
    // Predicated region
    $region38: #{tpu_custom_call.1} parent=1 // pred_check
      _
    $region39: #{tpu_custom_call.1} parent=1 // pred_check_branch
      %75 = sbr.rel (0) target = $region41
    $region40: #{tpu_custom_call.1} parent=1 // pred_region
      %76 = dma.done [#allocation10], 96
    $region41: #{tpu_custom_call.1} parent=1 // pred_fallthru
      _
    %p77 = scmp.eq.s32.totalorder 0, 0
    // Predicated region
    $region42: #{tpu_custom_call.1} parent=1 // pred_check
      %p78 = pneg %p77
    $region43: #{tpu_custom_call.1} parent=1 // pred_check_branch
      %80 = sbr.rel (%p78) target = $region45
    $region44: #{tpu_custom_call.1} parent=1 // pred_region
      %v81 = vld [vmem:[%s5] sm:$0x3]
      %v82 = vlaneseq
      %vm83 = vcmp.ge.s32.totalorder %v82, 0
      %vm84 = vcmp.lt.s32.totalorder %v82, 256
      %vm85 = vmand %vm83, %vm84
      %86 = vst.msk [vmem:[#allocation2] sm:$0x3] %vm85, %v81
    $region45: #{tpu_custom_call.1} parent=1 // pred_fallthru
      _
    %v87 = vld [vmem:[#allocation3] sm:$0xff]
    %v88 = vld [vmem:[#allocation3 + $0x8] sm:$0xff]
    %v89 = vld [vmem:[#allocation3 + $0x10] sm:$0xff]
    %v90 = vld [vmem:[#allocation3 + $0x18] sm:$0xff]
    %v91 = vld [vmem:[#allocation6] sm:$0xff]
    %v92 = vld [vmem:[#allocation6 + $0x8] sm:$0xff]
    %v93 = vld [vmem:[#allocation6 + $0x10] sm:$0xff]
    %v94 = vld [vmem:[#allocation6 + $0x18] sm:$0xff]
    %v95 = vld [vmem:[#allocation6 + $0x20] sm:$0xff]
    %v96 = vld [vmem:[#allocation6 + $0x28] sm:$0xff]
    %v97 = vld [vmem:[#allocation6 + $0x30] sm:$0xff]
    %v98 = vld [vmem:[#allocation6 + $0x38] sm:$0xff]
    %v99 = vld [vmem:[#allocation6 + $0x40] sm:$0xff]
    %v100 = vld [vmem:[#allocation6 + $0x48] sm:$0xff]
    %v101 = vld [vmem:[#allocation6 + $0x50] sm:$0xff]
    %v102 = vld [vmem:[#allocation6 + $0x58] sm:$0xff]
    %v103 = vld [vmem:[#allocation6 + $0x60] sm:$0xff]
    %v104 = vld [vmem:[#allocation6 + $0x68] sm:$0xff]
    %v105 = vld [vmem:[#allocation6 + $0x70] sm:$0xff]
    %v106 = vld [vmem:[#allocation6 + $0x78] sm:$0xff]
    %v107 = vld [vmem:[#allocation6 + $0x80] sm:$0xff]
    %v108 = vld [vmem:[#allocation6 + $0x88] sm:$0xff]
    %v109 = vld [vmem:[#allocation6 + $0x90] sm:$0xff]
    %v110 = vld [vmem:[#allocation6 + $0x98] sm:$0xff]
    %v111 = vld [vmem:[#allocation6 + $0xa0] sm:$0xff]
    %v112 = vld [vmem:[#allocation6 + $0xa8] sm:$0xff]
    %v113 = vld [vmem:[#allocation6 + $0xb0] sm:$0xff]
    %v114 = vld [vmem:[#allocation6 + $0xb8] sm:$0xff]
    %v115 = vld [vmem:[#allocation6 + $0xc0] sm:$0xff]
    %v116 = vld [vmem:[#allocation6 + $0xc8] sm:$0xff]
    %v117 = vld [vmem:[#allocation6 + $0xd0] sm:$0xff]
    %v118 = vld [vmem:[#allocation6 + $0xd8] sm:$0xff]
    %v119 = vld [vmem:[#allocation6 + $0xe0] sm:$0xff]
    %v120 = vld [vmem:[#allocation6 + $0xe8] sm:$0xff]
    %v121 = vld [vmem:[#allocation6 + $0xf0] sm:$0xff]
    %v122 = vld [vmem:[#allocation6 + $0xf8] sm:$0xff]
    %v123 = vld [vmem:[#allocation6 + $0x100] sm:$0xff]
    %v124 = vld [vmem:[#allocation6 + $0x108] sm:$0xff]
    %v125 = vld [vmem:[#allocation6 + $0x110] sm:$0xff]
    %v126 = vld [vmem:[#allocation6 + $0x118] sm:$0xff]
    %v127 = vld [vmem:[#allocation6 + $0x120] sm:$0xff]
    %v128 = vld [vmem:[#allocation6 + $0x128] sm:$0xff]
    %v129 = vld [vmem:[#allocation6 + $0x130] sm:$0xff]
    %v130 = vld [vmem:[#allocation6 + $0x138] sm:$0xff]
    %v131 = vld [vmem:[#allocation6 + $0x140] sm:$0xff]
    %v132 = vld [vmem:[#allocation6 + $0x148] sm:$0xff]
    %v133 = vld [vmem:[#allocation6 + $0x150] sm:$0xff]
    %v134 = vld [vmem:[#allocation6 + $0x158] sm:$0xff]
    %v135 = vld [vmem:[#allocation6 + $0x160] sm:$0xff]
    %v136 = vld [vmem:[#allocation6 + $0x168] sm:$0xff]
    %v137 = vld [vmem:[#allocation6 + $0x170] sm:$0xff]
    %v138 = vld [vmem:[#allocation6 + $0x178] sm:$0xff]
    %v139 = vld [vmem:[#allocation6 + $0x180] sm:$0xff]
    %v140 = vld [vmem:[#allocation6 + $0x188] sm:$0xff]
    %v141 = vld [vmem:[#allocation6 + $0x190] sm:$0xff]
    %v142 = vld [vmem:[#allocation6 + $0x198] sm:$0xff]
    %v143 = vld [vmem:[#allocation6 + $0x1a0] sm:$0xff]
    %v144 = vld [vmem:[#allocation6 + $0x1a8] sm:$0xff]
    %v145 = vld [vmem:[#allocation6 + $0x1b0] sm:$0xff]
    %v146 = vld [vmem:[#allocation6 + $0x1b8] sm:$0xff]
    %v147 = vld [vmem:[#allocation6 + $0x1c0] sm:$0xff]
    %v148 = vld [vmem:[#allocation6 + $0x1c8] sm:$0xff]
    %v149 = vld [vmem:[#allocation6 + $0x1d0] sm:$0xff]
    %v150 = vld [vmem:[#allocation6 + $0x1d8] sm:$0xff]
    %v151 = vld [vmem:[#allocation6 + $0x1e0] sm:$0xff]
    %v152 = vld [vmem:[#allocation6 + $0x1e8] sm:$0xff]
    %v153 = vld [vmem:[#allocation6 + $0x1f0] sm:$0xff]
    %v154 = vld [vmem:[#allocation6 + $0x1f8] sm:$0xff]
    %v155 = vld [vmem:[#allocation6 + $0x200] sm:$0xff]
    %v156 = vld [vmem:[#allocation6 + $0x208] sm:$0xff]
    %v157 = vld [vmem:[#allocation6 + $0x210] sm:$0xff]
    %v158 = vld [vmem:[#allocation6 + $0x218] sm:$0xff]
    %v159 = vld [vmem:[#allocation6 + $0x220] sm:$0xff]
    %v160 = vld [vmem:[#allocation6 + $0x228] sm:$0xff]
    %v161 = vld [vmem:[#allocation6 + $0x230] sm:$0xff]
    %v162 = vld [vmem:[#allocation6 + $0x238] sm:$0xff]
    %v163 = vld [vmem:[#allocation6 + $0x240] sm:$0xff]
    %v164 = vld [vmem:[#allocation6 + $0x248] sm:$0xff]
    %v165 = vld [vmem:[#allocation6 + $0x250] sm:$0xff]
    %v166 = vld [vmem:[#allocation6 + $0x258] sm:$0xff]
    %v167 = vld [vmem:[#allocation6 + $0x260] sm:$0xff]
    %v168 = vld [vmem:[#allocation6 + $0x268] sm:$0xff]
    %v169 = vld [vmem:[#allocation6 + $0x270] sm:$0xff]
    %v170 = vld [vmem:[#allocation6 + $0x278] sm:$0xff]
    %v171 = vld [vmem:[#allocation6 + $0x280] sm:$0xff]
    %v172 = vld [vmem:[#allocation6 + $0x288] sm:$0xff]
    %v173 = vld [vmem:[#allocation6 + $0x290] sm:$0xff]
    %v174 = vld [vmem:[#allocation6 + $0x298] sm:$0xff]
    %v175 = vld [vmem:[#allocation6 + $0x2a0] sm:$0xff]
    %v176 = vld [vmem:[#allocation6 + $0x2a8] sm:$0xff]
    %v177 = vld [vmem:[#allocation6 + $0x2b0] sm:$0xff]
    %v178 = vld [vmem:[#allocation6 + $0x2b8] sm:$0xff]
    %v179 = vld [vmem:[#allocation6 + $0x2c0] sm:$0xff]
    %v180 = vld [vmem:[#allocation6 + $0x2c8] sm:$0xff]
    %v181 = vld [vmem:[#allocation6 + $0x2d0] sm:$0xff]
    %v182 = vld [vmem:[#allocation6 + $0x2d8] sm:$0xff]
    %v183 = vld [vmem:[#allocation6 + $0x2e0] sm:$0xff]
    %v184 = vld [vmem:[#allocation6 + $0x2e8] sm:$0xff]
    %v185 = vld [vmem:[#allocation6 + $0x2f0] sm:$0xff]
    %v186 = vld [vmem:[#allocation6 + $0x2f8] sm:$0xff]
    %v187 = vld [vmem:[#allocation6 + $0x300] sm:$0xff]
    %v188 = vld [vmem:[#allocation6 + $0x308] sm:$0xff]
    %v189 = vld [vmem:[#allocation6 + $0x310] sm:$0xff]
    %v190 = vld [vmem:[#allocation6 + $0x318] sm:$0xff]
    %v191 = vld [vmem:[#allocation6 + $0x320] sm:$0xff]
    %v192 = vld [vmem:[#allocation6 + $0x328] sm:$0xff]
    %v193 = vld [vmem:[#allocation6 + $0x330] sm:$0xff]
    %v194 = vld [vmem:[#allocation6 + $0x338] sm:$0xff]
    %v195 = vld [vmem:[#allocation6 + $0x340] sm:$0xff]
    %v196 = vld [vmem:[#allocation6 + $0x348] sm:$0xff]
    %v197 = vld [vmem:[#allocation6 + $0x350] sm:$0xff]
    %v198 = vld [vmem:[#allocation6 + $0x358] sm:$0xff]
    %v199 = vld [vmem:[#allocation6 + $0x360] sm:$0xff]
    %v200 = vld [vmem:[#allocation6 + $0x368] sm:$0xff]
    %v201 = vld [vmem:[#allocation6 + $0x370] sm:$0xff]
    %v202 = vld [vmem:[#allocation6 + $0x378] sm:$0xff]
    %v203 = vld [vmem:[#allocation6 + $0x380] sm:$0xff]
    %v204 = vld [vmem:[#allocation6 + $0x388] sm:$0xff]
    %v205 = vld [vmem:[#allocation6 + $0x390] sm:$0xff]
    %v206 = vld [vmem:[#allocation6 + $0x398] sm:$0xff]
    %v207 = vld [vmem:[#allocation6 + $0x3a0] sm:$0xff]
    %v208 = vld [vmem:[#allocation6 + $0x3a8] sm:$0xff]
    %v209 = vld [vmem:[#allocation6 + $0x3b0] sm:$0xff]
    %v210 = vld [vmem:[#allocation6 + $0x3b8] sm:$0xff]
    %v211 = vld [vmem:[#allocation6 + $0x3c0] sm:$0xff]
    %v212 = vld [vmem:[#allocation6 + $0x3c8] sm:$0xff]
    %v213 = vld [vmem:[#allocation6 + $0x3d0] sm:$0xff]
    %v214 = vld [vmem:[#allocation6 + $0x3d8] sm:$0xff]
    %v215 = vld [vmem:[#allocation6 + $0x3e0] sm:$0xff]
    %v216 = vld [vmem:[#allocation6 + $0x3e8] sm:$0xff]
    %v217 = vld [vmem:[#allocation6 + $0x3f0] sm:$0xff]
    %v218 = vld [vmem:[#allocation6 + $0x3f8] sm:$0xff]
    %v219 = vld [vmem:[#allocation6 + $0x400] sm:$0xff]
    %v220 = vld [vmem:[#allocation6 + $0x408] sm:$0xff]
    %v221 = vld [vmem:[#allocation6 + $0x410] sm:$0xff]
    %v222 = vld [vmem:[#allocation6 + $0x418] sm:$0xff]
    %v223 = vld [vmem:[#allocation6 + $0x420] sm:$0xff]
    %v224 = vld [vmem:[#allocation6 + $0x428] sm:$0xff]
    %v225 = vld [vmem:[#allocation6 + $0x430] sm:$0xff]
    %v226 = vld [vmem:[#allocation6 + $0x438] sm:$0xff]
    %v227 = vld [vmem:[#allocation6 + $0x440] sm:$0xff]
    %v228 = vld [vmem:[#allocation6 + $0x448] sm:$0xff]
    %v229 = vld [vmem:[#allocation6 + $0x450] sm:$0xff]
    %v230 = vld [vmem:[#allocation6 + $0x458] sm:$0xff]
    %v231 = vld [vmem:[#allocation6 + $0x460] sm:$0xff]
    %v232 = vld [vmem:[#allocation6 + $0x468] sm:$0xff]
    %v233 = vld [vmem:[#allocation6 + $0x470] sm:$0xff]
    %v234 = vld [vmem:[#allocation6 + $0x478] sm:$0xff]
    %v235 = vld [vmem:[#allocation6 + $0x480] sm:$0xff]
    %v236 = vld [vmem:[#allocation6 + $0x488] sm:$0xff]
    %v237 = vld [vmem:[#allocation6 + $0x490] sm:$0xff]
    %v238 = vld [vmem:[#allocation6 + $0x498] sm:$0xff]
    %v239 = vld [vmem:[#allocation6 + $0x4a0] sm:$0xff]
    %v240 = vld [vmem:[#allocation6 + $0x4a8] sm:$0xff]
    %v241 = vld [vmem:[#allocation6 + $0x4b0] sm:$0xff]
    %v242 = vld [vmem:[#allocation6 + $0x4b8] sm:$0xff]
    %v243 = vld [vmem:[#allocation6 + $0x4c0] sm:$0xff]
    %v244 = vld [vmem:[#allocation6 + $0x4c8] sm:$0xff]
    %v245 = vld [vmem:[#allocation6 + $0x4d0] sm:$0xff]
    %v246 = vld [vmem:[#allocation6 + $0x4d8] sm:$0xff]
    %v247 = vld [vmem:[#allocation6 + $0x4e0] sm:$0xff]
    %v248 = vld [vmem:[#allocation6 + $0x4e8] sm:$0xff]
    %v249 = vld [vmem:[#allocation6 + $0x4f0] sm:$0xff]
    %v250 = vld [vmem:[#allocation6 + $0x4f8] sm:$0xff]
    %v251 = vld [vmem:[#allocation6 + $0x500] sm:$0xff]
    %v252 = vld [vmem:[#allocation6 + $0x508] sm:$0xff]
    %v253 = vld [vmem:[#allocation6 + $0x510] sm:$0xff]
    %v254 = vld [vmem:[#allocation6 + $0x518] sm:$0xff]
    %v255 = vld [vmem:[#allocation6 + $0x520] sm:$0xff]
    %v256 = vld [vmem:[#allocation6 + $0x528] sm:$0xff]
    %v257 = vld [vmem:[#allocation6 + $0x530] sm:$0xff]
    %v258 = vld [vmem:[#allocation6 + $0x538] sm:$0xff]
    %v259 = vld [vmem:[#allocation6 + $0x540] sm:$0xff]
    %v260 = vld [vmem:[#allocation6 + $0x548] sm:$0xff]
    %v261 = vld [vmem:[#allocation6 + $0x550] sm:$0xff]
    %v262 = vld [vmem:[#allocation6 + $0x558] sm:$0xff]
    %v263 = vld [vmem:[#allocation6 + $0x560] sm:$0xff]
    %v264 = vld [vmem:[#allocation6 + $0x568] sm:$0xff]
    %v265 = vld [vmem:[#allocation6 + $0x570] sm:$0xff]
    %v266 = vld [vmem:[#allocation6 + $0x578] sm:$0xff]
    %v267 = vld [vmem:[#allocation6 + $0x580] sm:$0xff]
    %v268 = vld [vmem:[#allocation6 + $0x588] sm:$0xff]
    %v269 = vld [vmem:[#allocation6 + $0x590] sm:$0xff]
    %v270 = vld [vmem:[#allocation6 + $0x598] sm:$0xff]
    %v271 = vld [vmem:[#allocation6 + $0x5a0] sm:$0xff]
    %v272 = vld [vmem:[#allocation6 + $0x5a8] sm:$0xff]
    %v273 = vld [vmem:[#allocation6 + $0x5b0] sm:$0xff]
    %v274 = vld [vmem:[#allocation6 + $0x5b8] sm:$0xff]
    %v275 = vld [vmem:[#allocation6 + $0x5c0] sm:$0xff]
    %v276 = vld [vmem:[#allocation6 + $0x5c8] sm:$0xff]
    %v277 = vld [vmem:[#allocation6 + $0x5d0] sm:$0xff]
    %v278 = vld [vmem:[#allocation6 + $0x5d8] sm:$0xff]
    %v279 = vld [vmem:[#allocation6 + $0x5e0] sm:$0xff]
    %v280 = vld [vmem:[#allocation6 + $0x5e8] sm:$0xff]
    %v281 = vld [vmem:[#allocation6 + $0x5f0] sm:$0xff]
    %v282 = vld [vmem:[#allocation6 + $0x5f8] sm:$0xff]
    %v283 = vld [vmem:[#allocation9] sm:$0x3f]
    %v285 = vlaneseq
    %v286 = vshrl.u32 %v285, 7
    %v287 = vsub.s32 0, %v286
    %v288 = vrot.slane %v283, %v287
    %v289 = vlaneseq
    %v290 = vshrl.u32 %v289, 7
    %v291 = vsub.s32 1, %v290
    %v292 = vrot.slane %v283, %v291
    %v293 = vlaneseq
    %v294 = vshrl.u32 %v293, 7
    %v295 = vsub.s32 2, %v294
    %v296 = vrot.slane %v283, %v295
    %v297 = vlaneseq
    %v298 = vshrl.u32 %v297, 7
    %v299 = vsub.s32 3, %v298
    %v300 = vrot.slane %v283, %v299
    %v301 = vlaneseq
    %v302 = vshrl.u32 %v301, 7
    %v303 = vsub.s32 4, %v302
    %v304 = vrot.slane %v283, %v303
    %v305 = vlaneseq
    %v306 = vshrl.u32 %v305, 7
    %v307 = vsub.s32 5, %v306
    %v308 = vrot.slane %v283, %v307
    %315 = vmatprep.subr.mxu0 %v182
    %316 = vmatpush1.msra.mxu0 %v181
    %317 = vmatprep.subr.mxu0 %v176
    %318 = vmatpush1.msra.mxu0 %v175
    %319 = vmatprep.subr.mxu0 %v170
    %320 = vmatpush1.msra.mxu0 %v169
    %321 = vmatprep.subr.mxu0 %v164
    %322 = vmatpush1.msra.mxu0 %v163
    %323 = vmatprep.subr.mxu0 %v158
    %324 = vmatpush1.msra.mxu0 %v157
    %325 = vmatprep.subr.mxu0 %v152
    %326 = vmatpush1.msra.mxu0 %v151
    %327 = vmatprep.subr.mxu0 %v146
    %328 = vmatpush1.msra.mxu0 %v145
    %329 = vmatprep.subr.mxu0 %v140
    %330 = vmatpush1.msra.mxu0 %v139
    %331 = vmatprep.subr.mxu0 %v134
    %332 = vmatpush1.msra.mxu0 %v133
    %333 = vmatprep.subr.mxu0 %v128
    %334 = vmatpush1.msra.mxu0 %v127
    %335 = vmatprep.subr.mxu0 %v122
    %336 = vmatpush1.msra.mxu0 %v121
    %337 = vmatprep.subr.mxu0 %v116
    %338 = vmatpush1.msra.mxu0 %v115
    %339 = vmatprep.subr.mxu0 %v110
    %340 = vmatpush1.msra.mxu0 %v109
    %341 = vmatprep.subr.mxu0 %v104
    %342 = vmatpush1.msra.mxu0 %v103
    %343 = vmatprep.subr.mxu0 %v98
    %344 = vmatpush1.msra.mxu0 %v97
    %345 = vmatprep.subr.mxu0 %v92
    %346 = vmatpush1.msra.mxu0 %v91
    %347 = vmatprep.subr.mxu0 %v278
    %348 = vmatpush2.msra.mxu0 %v277
    %349 = vmatprep.subr.mxu0 %v272
    %350 = vmatpush2.msra.mxu0 %v271
    %351 = vmatprep.subr.mxu0 %v266
    %352 = vmatpush2.msra.mxu0 %v265
    %353 = vmatprep.subr.mxu0 %v260
    %354 = vmatpush2.msra.mxu0 %v259
    %355 = vmatprep.subr.mxu0 %v254
    %356 = vmatpush2.msra.mxu0 %v253
    %357 = vmatprep.subr.mxu0 %v248
    %358 = vmatpush2.msra.mxu0 %v247
    %359 = vmatprep.subr.mxu0 %v242
    %360 = vmatpush2.msra.mxu0 %v241
    %361 = vmatprep.subr.mxu0 %v236
    %362 = vmatpush2.msra.mxu0 %v235
    %363 = vmatprep.subr.mxu0 %v230
    %364 = vmatpush2.msra.mxu0 %v229
    %365 = vmatprep.subr.mxu0 %v224
    %366 = vmatpush2.msra.mxu0 %v223
    %367 = vmatprep.subr.mxu0 %v218
    %368 = vmatpush2.msra.mxu0 %v217
    %369 = vmatprep.subr.mxu0 %v212
    %370 = vmatpush2.msra.mxu0 %v211
    %371 = vmatprep.subr.mxu0 %v206
    %372 = vmatpush2.msra.mxu0 %v205
    %373 = vmatprep.subr.mxu0 %v200
    %374 = vmatpush2.msra.mxu0 %v199
    %375 = vmatprep.subr.mxu0 %v194
    %376 = vmatpush2.msra.mxu0 %v193
    %377 = vmatprep.subr.mxu0 %v188
    %378 = vmatpush2.msra.mxu0 %v187
    %379 = vmatprep.mubr.f32.mxu0 %v88
    %380 = vmatmul.mubr.f32.gmra.mxu0 %v87
    %v381 = vpop.f32.mrf.mxu0
    %v382 = vadd.f32 %v288, %v381
    %v383 = vpop.f32.mrf.mxu0
    %v384 = vadd.f32 %v292, %v383
    %385 = vmatprep.mubr.f32.mxu0 %v90
    %386 = vmatmul.mubr.f32.gmra.mxu0 %v89
    %v387 = vpop.f32.mrf.mxu0
    %v388 = vadd.f32 %v288, %v387
    %v389 = vpop.f32.mrf.mxu0
    %v390 = vadd.f32 %v292, %v389
    %391 = vdwg.mxu0
    %392 = vmatprep.subr.mxu0 %v184
    %393 = vmatpush1.msra.mxu0 %v183
    %394 = vmatprep.subr.mxu0 %v178
    %395 = vmatpush1.msra.mxu0 %v177
    %396 = vmatprep.subr.mxu0 %v172
    %397 = vmatpush1.msra.mxu0 %v171
    %398 = vmatprep.subr.mxu0 %v166
    %399 = vmatpush1.msra.mxu0 %v165
    %400 = vmatprep.subr.mxu0 %v160
    %401 = vmatpush1.msra.mxu0 %v159
    %402 = vmatprep.subr.mxu0 %v154
    %403 = vmatpush1.msra.mxu0 %v153
    %404 = vmatprep.subr.mxu0 %v148
    %405 = vmatpush1.msra.mxu0 %v147
    %406 = vmatprep.subr.mxu0 %v142
    %407 = vmatpush1.msra.mxu0 %v141
    %408 = vmatprep.subr.mxu0 %v136
    %409 = vmatpush1.msra.mxu0 %v135
    %410 = vmatprep.subr.mxu0 %v130
    %411 = vmatpush1.msra.mxu0 %v129
    %412 = vmatprep.subr.mxu0 %v124
    %413 = vmatpush1.msra.mxu0 %v123
    %414 = vmatprep.subr.mxu0 %v118
    %415 = vmatpush1.msra.mxu0 %v117
    %416 = vmatprep.subr.mxu0 %v112
    %417 = vmatpush1.msra.mxu0 %v111
    %418 = vmatprep.subr.mxu0 %v106
    %419 = vmatpush1.msra.mxu0 %v105
    %420 = vmatprep.subr.mxu0 %v100
    %421 = vmatpush1.msra.mxu0 %v99
    %422 = vmatprep.subr.mxu0 %v94
    %423 = vmatpush1.msra.mxu0 %v93
    %424 = vmatprep.subr.mxu0 %v280
    %425 = vmatpush2.msra.mxu0 %v279
    %426 = vmatprep.subr.mxu0 %v274
    %427 = vmatpush2.msra.mxu0 %v273
    %428 = vmatprep.subr.mxu0 %v268
    %429 = vmatpush2.msra.mxu0 %v267
    %430 = vmatprep.subr.mxu0 %v262
    %431 = vmatpush2.msra.mxu0 %v261
    %432 = vmatprep.subr.mxu0 %v256
    %433 = vmatpush2.msra.mxu0 %v255
    %434 = vmatprep.subr.mxu0 %v250
    %435 = vmatpush2.msra.mxu0 %v249
    %436 = vmatprep.subr.mxu0 %v244
    %437 = vmatpush2.msra.mxu0 %v243
    %438 = vmatprep.subr.mxu0 %v238
    %439 = vmatpush2.msra.mxu0 %v237
    %440 = vmatprep.subr.mxu0 %v232
    %441 = vmatpush2.msra.mxu0 %v231
    %442 = vmatprep.subr.mxu0 %v226
    %443 = vmatpush2.msra.mxu0 %v225
    %444 = vmatprep.subr.mxu0 %v220
    %445 = vmatpush2.msra.mxu0 %v219
    %446 = vmatprep.subr.mxu0 %v214
    %447 = vmatpush2.msra.mxu0 %v213
    %448 = vmatprep.subr.mxu0 %v208
    %449 = vmatpush2.msra.mxu0 %v207
    %450 = vmatprep.subr.mxu0 %v202
    %451 = vmatpush2.msra.mxu0 %v201
    %452 = vmatprep.subr.mxu0 %v196
    %453 = vmatpush2.msra.mxu0 %v195
    %454 = vmatprep.subr.mxu0 %v190
    %455 = vmatpush2.msra.mxu0 %v189
    %456 = vmatprep.mubr.f32.mxu0 %v88
    %457 = vmatmul.mubr.f32.gmra.mxu0 %v87
    %v458 = vpop.f32.mrf.mxu0
    %v459 = vadd.f32 %v296, %v458
    %v460 = vpop.f32.mrf.mxu0
    %v461 = vadd.f32 %v300, %v460
    %462 = vmatprep.mubr.f32.mxu0 %v90
    %463 = vmatmul.mubr.f32.gmra.mxu0 %v89
    %v464 = vpop.f32.mrf.mxu0
    %v465 = vadd.f32 %v296, %v464
    %v466 = vpop.f32.mrf.mxu0
    %v467 = vadd.f32 %v300, %v466
    %468 = vdwg.mxu0
    %469 = vmatprep.subr.mxu0 %v186
    %470 = vmatpush1.msra.mxu0 %v185
    %471 = vmatprep.subr.mxu0 %v180
    %472 = vmatpush1.msra.mxu0 %v179
    %473 = vmatprep.subr.mxu0 %v174
    %474 = vmatpush1.msra.mxu0 %v173
    %475 = vmatprep.subr.mxu0 %v168
    %476 = vmatpush1.msra.mxu0 %v167
    %477 = vmatprep.subr.mxu0 %v162
    %478 = vmatpush1.msra.mxu0 %v161
    %479 = vmatprep.subr.mxu0 %v156
    %480 = vmatpush1.msra.mxu0 %v155
    %481 = vmatprep.subr.mxu0 %v150
    %482 = vmatpush1.msra.mxu0 %v149
    %483 = vmatprep.subr.mxu0 %v144
    %484 = vmatpush1.msra.mxu0 %v143
    %485 = vmatprep.subr.mxu0 %v138
    %486 = vmatpush1.msra.mxu0 %v137
    %487 = vmatprep.subr.mxu0 %v132
    %488 = vmatpush1.msra.mxu0 %v131
    %489 = vmatprep.subr.mxu0 %v126
    %490 = vmatpush1.msra.mxu0 %v125
    %491 = vmatprep.subr.mxu0 %v120
    %492 = vmatpush1.msra.mxu0 %v119
    %493 = vmatprep.subr.mxu0 %v114
    %494 = vmatpush1.msra.mxu0 %v113
    %495 = vmatprep.subr.mxu0 %v108
    %496 = vmatpush1.msra.mxu0 %v107
    %497 = vmatprep.subr.mxu0 %v102
    %498 = vmatpush1.msra.mxu0 %v101
    %499 = vmatprep.subr.mxu0 %v96
    %500 = vmatpush1.msra.mxu0 %v95
    %501 = vmatprep.subr.mxu0 %v282
    %502 = vmatpush2.msra.mxu0 %v281
    %503 = vmatprep.subr.mxu0 %v276
    %504 = vmatpush2.msra.mxu0 %v275
    %505 = vmatprep.subr.mxu0 %v270
    %506 = vmatpush2.msra.mxu0 %v269
    %507 = vmatprep.subr.mxu0 %v264
    %508 = vmatpush2.msra.mxu0 %v263
    %509 = vmatprep.subr.mxu0 %v258
    %510 = vmatpush2.msra.mxu0 %v257
    %511 = vmatprep.subr.mxu0 %v252
    %512 = vmatpush2.msra.mxu0 %v251
    %513 = vmatprep.subr.mxu0 %v246
    %514 = vmatpush2.msra.mxu0 %v245
    %515 = vmatprep.subr.mxu0 %v240
    %516 = vmatpush2.msra.mxu0 %v239
    %517 = vmatprep.subr.mxu0 %v234
    %518 = vmatpush2.msra.mxu0 %v233
    %519 = vmatprep.subr.mxu0 %v228
    %520 = vmatpush2.msra.mxu0 %v227
    %521 = vmatprep.subr.mxu0 %v222
    %522 = vmatpush2.msra.mxu0 %v221
    %523 = vmatprep.subr.mxu0 %v216
    %524 = vmatpush2.msra.mxu0 %v215
    %525 = vmatprep.subr.mxu0 %v210
    %526 = vmatpush2.msra.mxu0 %v209
    %527 = vmatprep.subr.mxu0 %v204
    %528 = vmatpush2.msra.mxu0 %v203
    %529 = vmatprep.subr.mxu0 %v198
    %530 = vmatpush2.msra.mxu0 %v197
    %531 = vmatprep.subr.mxu0 %v192
    %532 = vmatpush2.msra.mxu0 %v191
    %533 = vmatprep.mubr.f32.mxu0 %v88
    %534 = vmatmul.mubr.f32.gmra.mxu0 %v87
    %v535 = vpop.f32.mrf.mxu0
    %v536 = vadd.f32 %v304, %v535
    %v537 = vpop.f32.mrf.mxu0
    %v538 = vadd.f32 %v308, %v537
    %539 = vmatprep.mubr.f32.mxu0 %v90
    %540 = vmatmul.mubr.f32.gmra.mxu0 %v89
    %v541 = vpop.f32.mrf.mxu0
    %v542 = vadd.f32 %v304, %v541
    %v543 = vpop.f32.mrf.mxu0
    %v544 = vadd.f32 %v308, %v543
    %545 = vdwg.mxu0
    %v546 = vld [vmem:[#allocation8] sm:$0xff]
    %v547 = vld [vmem:[#allocation8 + $0x8] sm:$0xff]
    %v548 = vld [vmem:[#allocation8 + $0x10] sm:$0xff]
    %v549 = vld [vmem:[#allocation8 + $0x18] sm:$0xff]
    %v550 = vld [vmem:[#allocation8 + $0x20] sm:$0xff]
    %v551 = vld [vmem:[#allocation8 + $0x28] sm:$0xff]
    %v552 = vld [vmem:[#allocation8 + $0x30] sm:$0xff]
    %v553 = vld [vmem:[#allocation8 + $0x38] sm:$0xff]
    %v554 = vld [vmem:[#allocation8 + $0x40] sm:$0xff]
    %v555 = vld [vmem:[#allocation8 + $0x48] sm:$0xff]
    %v556 = vld [vmem:[#allocation8 + $0x50] sm:$0xff]
    %v557 = vld [vmem:[#allocation8 + $0x58] sm:$0xff]
    %v558 = vld [vmem:[#allocation8 + $0x60] sm:$0xff]
    %v559 = vld [vmem:[#allocation8 + $0x68] sm:$0xff]
    %v560 = vld [vmem:[#allocation8 + $0x70] sm:$0xff]
    %v561 = vld [vmem:[#allocation8 + $0x78] sm:$0xff]
    %v562 = vld [vmem:[#allocation8 + $0x80] sm:$0xff]
    %v563 = vld [vmem:[#allocation8 + $0x88] sm:$0xff]
    %v564 = vld [vmem:[#allocation8 + $0x90] sm:$0xff]
    %v565 = vld [vmem:[#allocation8 + $0x98] sm:$0xff]
    %v566 = vld [vmem:[#allocation8 + $0xa0] sm:$0xff]
    %v567 = vld [vmem:[#allocation8 + $0xa8] sm:$0xff]
    %v568 = vld [vmem:[#allocation8 + $0xb0] sm:$0xff]
    %v569 = vld [vmem:[#allocation8 + $0xb8] sm:$0xff]
    %v570 = vld [vmem:[#allocation8 + $0xc0] sm:$0xff]
    %v571 = vld [vmem:[#allocation8 + $0xc8] sm:$0xff]
    %v572 = vld [vmem:[#allocation8 + $0xd0] sm:$0xff]
    %v573 = vld [vmem:[#allocation8 + $0xd8] sm:$0xff]
    %v574 = vld [vmem:[#allocation8 + $0xe0] sm:$0xff]
    %v575 = vld [vmem:[#allocation8 + $0xe8] sm:$0xff]
    %v576 = vld [vmem:[#allocation8 + $0xf0] sm:$0xff]
    %v577 = vld [vmem:[#allocation8 + $0xf8] sm:$0xff]
    %v578 = vld [vmem:[#allocation8 + $0x100] sm:$0xff]
    %v579 = vld [vmem:[#allocation8 + $0x108] sm:$0xff]
    %v580 = vld [vmem:[#allocation8 + $0x110] sm:$0xff]
    %v581 = vld [vmem:[#allocation8 + $0x118] sm:$0xff]
    %v582 = vld [vmem:[#allocation8 + $0x120] sm:$0xff]
    %v583 = vld [vmem:[#allocation8 + $0x128] sm:$0xff]
    %v584 = vld [vmem:[#allocation8 + $0x130] sm:$0xff]
    %v585 = vld [vmem:[#allocation8 + $0x138] sm:$0xff]
    %v586 = vld [vmem:[#allocation8 + $0x140] sm:$0xff]
    %v587 = vld [vmem:[#allocation8 + $0x148] sm:$0xff]
    %v588 = vld [vmem:[#allocation8 + $0x150] sm:$0xff]
    %v589 = vld [vmem:[#allocation8 + $0x158] sm:$0xff]
    %v590 = vld [vmem:[#allocation8 + $0x160] sm:$0xff]
    %v591 = vld [vmem:[#allocation8 + $0x168] sm:$0xff]
    %v592 = vld [vmem:[#allocation8 + $0x170] sm:$0xff]
    %v593 = vld [vmem:[#allocation8 + $0x178] sm:$0xff]
    %v594 = vld [vmem:[#allocation8 + $0x180] sm:$0xff]
    %v595 = vld [vmem:[#allocation8 + $0x188] sm:$0xff]
    %v596 = vld [vmem:[#allocation8 + $0x190] sm:$0xff]
    %v597 = vld [vmem:[#allocation8 + $0x198] sm:$0xff]
    %v598 = vld [vmem:[#allocation8 + $0x1a0] sm:$0xff]
    %v599 = vld [vmem:[#allocation8 + $0x1a8] sm:$0xff]
    %v600 = vld [vmem:[#allocation8 + $0x1b0] sm:$0xff]
    %v601 = vld [vmem:[#allocation8 + $0x1b8] sm:$0xff]
    %v602 = vld [vmem:[#allocation8 + $0x1c0] sm:$0xff]
    %v603 = vld [vmem:[#allocation8 + $0x1c8] sm:$0xff]
    %v604 = vld [vmem:[#allocation8 + $0x1d0] sm:$0xff]
    %v605 = vld [vmem:[#allocation8 + $0x1d8] sm:$0xff]
    %v606 = vld [vmem:[#allocation8 + $0x1e0] sm:$0xff]
    %v607 = vld [vmem:[#allocation8 + $0x1e8] sm:$0xff]
    %v608 = vld [vmem:[#allocation8 + $0x1f0] sm:$0xff]
    %v609 = vld [vmem:[#allocation8 + $0x1f8] sm:$0xff]
    %v610 = vld [vmem:[#allocation8 + $0x200] sm:$0xff]
    %v611 = vld [vmem:[#allocation8 + $0x208] sm:$0xff]
    %v612 = vld [vmem:[#allocation8 + $0x210] sm:$0xff]
    %v613 = vld [vmem:[#allocation8 + $0x218] sm:$0xff]
    %v614 = vld [vmem:[#allocation8 + $0x220] sm:$0xff]
    %v615 = vld [vmem:[#allocation8 + $0x228] sm:$0xff]
    %v616 = vld [vmem:[#allocation8 + $0x230] sm:$0xff]
    %v617 = vld [vmem:[#allocation8 + $0x238] sm:$0xff]
    %v618 = vld [vmem:[#allocation8 + $0x240] sm:$0xff]
    %v619 = vld [vmem:[#allocation8 + $0x248] sm:$0xff]
    %v620 = vld [vmem:[#allocation8 + $0x250] sm:$0xff]
    %v621 = vld [vmem:[#allocation8 + $0x258] sm:$0xff]
    %v622 = vld [vmem:[#allocation8 + $0x260] sm:$0xff]
    %v623 = vld [vmem:[#allocation8 + $0x268] sm:$0xff]
    %v624 = vld [vmem:[#allocation8 + $0x270] sm:$0xff]
    %v625 = vld [vmem:[#allocation8 + $0x278] sm:$0xff]
    %v626 = vld [vmem:[#allocation8 + $0x280] sm:$0xff]
    %v627 = vld [vmem:[#allocation8 + $0x288] sm:$0xff]
    %v628 = vld [vmem:[#allocation8 + $0x290] sm:$0xff]
    %v629 = vld [vmem:[#allocation8 + $0x298] sm:$0xff]
    %v630 = vld [vmem:[#allocation8 + $0x2a0] sm:$0xff]
    %v631 = vld [vmem:[#allocation8 + $0x2a8] sm:$0xff]
    %v632 = vld [vmem:[#allocation8 + $0x2b0] sm:$0xff]
    %v633 = vld [vmem:[#allocation8 + $0x2b8] sm:$0xff]
    %v634 = vld [vmem:[#allocation8 + $0x2c0] sm:$0xff]
    %v635 = vld [vmem:[#allocation8 + $0x2c8] sm:$0xff]
    %v636 = vld [vmem:[#allocation8 + $0x2d0] sm:$0xff]
    %v637 = vld [vmem:[#allocation8 + $0x2d8] sm:$0xff]
    %v638 = vld [vmem:[#allocation8 + $0x2e0] sm:$0xff]
    %v639 = vld [vmem:[#allocation8 + $0x2e8] sm:$0xff]
    %v640 = vld [vmem:[#allocation8 + $0x2f0] sm:$0xff]
    %v641 = vld [vmem:[#allocation8 + $0x2f8] sm:$0xff]
    %v642 = vld [vmem:[#allocation8 + $0x300] sm:$0xff]
    %v643 = vld [vmem:[#allocation8 + $0x308] sm:$0xff]
    %v644 = vld [vmem:[#allocation8 + $0x310] sm:$0xff]
    %v645 = vld [vmem:[#allocation8 + $0x318] sm:$0xff]
    %v646 = vld [vmem:[#allocation8 + $0x320] sm:$0xff]
    %v647 = vld [vmem:[#allocation8 + $0x328] sm:$0xff]
    %v648 = vld [vmem:[#allocation8 + $0x330] sm:$0xff]
    %v649 = vld [vmem:[#allocation8 + $0x338] sm:$0xff]
    %v650 = vld [vmem:[#allocation8 + $0x340] sm:$0xff]
    %v651 = vld [vmem:[#allocation8 + $0x348] sm:$0xff]
    %v652 = vld [vmem:[#allocation8 + $0x350] sm:$0xff]
    %v653 = vld [vmem:[#allocation8 + $0x358] sm:$0xff]
    %v654 = vld [vmem:[#allocation8 + $0x360] sm:$0xff]
    %v655 = vld [vmem:[#allocation8 + $0x368] sm:$0xff]
    %v656 = vld [vmem:[#allocation8 + $0x370] sm:$0xff]
    %v657 = vld [vmem:[#allocation8 + $0x378] sm:$0xff]
    %v658 = vld [vmem:[#allocation8 + $0x380] sm:$0xff]
    %v659 = vld [vmem:[#allocation8 + $0x388] sm:$0xff]
    %v660 = vld [vmem:[#allocation8 + $0x390] sm:$0xff]
    %v661 = vld [vmem:[#allocation8 + $0x398] sm:$0xff]
    %v662 = vld [vmem:[#allocation8 + $0x3a0] sm:$0xff]
    %v663 = vld [vmem:[#allocation8 + $0x3a8] sm:$0xff]
    %v664 = vld [vmem:[#allocation8 + $0x3b0] sm:$0xff]
    %v665 = vld [vmem:[#allocation8 + $0x3b8] sm:$0xff]
    %v666 = vld [vmem:[#allocation8 + $0x3c0] sm:$0xff]
    %v667 = vld [vmem:[#allocation8 + $0x3c8] sm:$0xff]
    %v668 = vld [vmem:[#allocation8 + $0x3d0] sm:$0xff]
    %v669 = vld [vmem:[#allocation8 + $0x3d8] sm:$0xff]
    %v670 = vld [vmem:[#allocation8 + $0x3e0] sm:$0xff]
    %v671 = vld [vmem:[#allocation8 + $0x3e8] sm:$0xff]
    %v672 = vld [vmem:[#allocation8 + $0x3f0] sm:$0xff]
    %v673 = vld [vmem:[#allocation8 + $0x3f8] sm:$0xff]
    %v674 = vld [vmem:[#allocation8 + $0x400] sm:$0xff]
    %v675 = vld [vmem:[#allocation8 + $0x408] sm:$0xff]
    %v676 = vld [vmem:[#allocation8 + $0x410] sm:$0xff]
    %v677 = vld [vmem:[#allocation8 + $0x418] sm:$0xff]
    %v678 = vld [vmem:[#allocation8 + $0x420] sm:$0xff]
    %v679 = vld [vmem:[#allocation8 + $0x428] sm:$0xff]
    %v680 = vld [vmem:[#allocation8 + $0x430] sm:$0xff]
    %v681 = vld [vmem:[#allocation8 + $0x438] sm:$0xff]
    %v682 = vld [vmem:[#allocation8 + $0x440] sm:$0xff]
    %v683 = vld [vmem:[#allocation8 + $0x448] sm:$0xff]
    %v684 = vld [vmem:[#allocation8 + $0x450] sm:$0xff]
    %v685 = vld [vmem:[#allocation8 + $0x458] sm:$0xff]
    %v686 = vld [vmem:[#allocation8 + $0x460] sm:$0xff]
    %v687 = vld [vmem:[#allocation8 + $0x468] sm:$0xff]
    %v688 = vld [vmem:[#allocation8 + $0x470] sm:$0xff]
    %v689 = vld [vmem:[#allocation8 + $0x478] sm:$0xff]
    %v690 = vld [vmem:[#allocation8 + $0x480] sm:$0xff]
    %v691 = vld [vmem:[#allocation8 + $0x488] sm:$0xff]
    %v692 = vld [vmem:[#allocation8 + $0x490] sm:$0xff]
    %v693 = vld [vmem:[#allocation8 + $0x498] sm:$0xff]
    %v694 = vld [vmem:[#allocation8 + $0x4a0] sm:$0xff]
    %v695 = vld [vmem:[#allocation8 + $0x4a8] sm:$0xff]
    %v696 = vld [vmem:[#allocation8 + $0x4b0] sm:$0xff]
    %v697 = vld [vmem:[#allocation8 + $0x4b8] sm:$0xff]
    %v698 = vld [vmem:[#allocation8 + $0x4c0] sm:$0xff]
    %v699 = vld [vmem:[#allocation8 + $0x4c8] sm:$0xff]
    %v700 = vld [vmem:[#allocation8 + $0x4d0] sm:$0xff]
    %v701 = vld [vmem:[#allocation8 + $0x4d8] sm:$0xff]
    %v702 = vld [vmem:[#allocation8 + $0x4e0] sm:$0xff]
    %v703 = vld [vmem:[#allocation8 + $0x4e8] sm:$0xff]
    %v704 = vld [vmem:[#allocation8 + $0x4f0] sm:$0xff]
    %v705 = vld [vmem:[#allocation8 + $0x4f8] sm:$0xff]
    %v706 = vld [vmem:[#allocation8 + $0x500] sm:$0xff]
    %v707 = vld [vmem:[#allocation8 + $0x508] sm:$0xff]
    %v708 = vld [vmem:[#allocation8 + $0x510] sm:$0xff]
    %v709 = vld [vmem:[#allocation8 + $0x518] sm:$0xff]
    %v710 = vld [vmem:[#allocation8 + $0x520] sm:$0xff]
    %v711 = vld [vmem:[#allocation8 + $0x528] sm:$0xff]
    %v712 = vld [vmem:[#allocation8 + $0x530] sm:$0xff]
    %v713 = vld [vmem:[#allocation8 + $0x538] sm:$0xff]
    %v714 = vld [vmem:[#allocation8 + $0x540] sm:$0xff]
    %v715 = vld [vmem:[#allocation8 + $0x548] sm:$0xff]
    %v716 = vld [vmem:[#allocation8 + $0x550] sm:$0xff]
    %v717 = vld [vmem:[#allocation8 + $0x558] sm:$0xff]
    %v718 = vld [vmem:[#allocation8 + $0x560] sm:$0xff]
    %v719 = vld [vmem:[#allocation8 + $0x568] sm:$0xff]
    %v720 = vld [vmem:[#allocation8 + $0x570] sm:$0xff]
    %v721 = vld [vmem:[#allocation8 + $0x578] sm:$0xff]
    %v722 = vld [vmem:[#allocation8 + $0x580] sm:$0xff]
    %v723 = vld [vmem:[#allocation8 + $0x588] sm:$0xff]
    %v724 = vld [vmem:[#allocation8 + $0x590] sm:$0xff]
    %v725 = vld [vmem:[#allocation8 + $0x598] sm:$0xff]
    %v726 = vld [vmem:[#allocation8 + $0x5a0] sm:$0xff]
    %v727 = vld [vmem:[#allocation8 + $0x5a8] sm:$0xff]
    %v728 = vld [vmem:[#allocation8 + $0x5b0] sm:$0xff]
    %v729 = vld [vmem:[#allocation8 + $0x5b8] sm:$0xff]
    %v730 = vld [vmem:[#allocation8 + $0x5c0] sm:$0xff]
    %v731 = vld [vmem:[#allocation8 + $0x5c8] sm:$0xff]
    %v732 = vld [vmem:[#allocation8 + $0x5d0] sm:$0xff]
    %v733 = vld [vmem:[#allocation8 + $0x5d8] sm:$0xff]
    %v734 = vld [vmem:[#allocation8 + $0x5e0] sm:$0xff]
    %v735 = vld [vmem:[#allocation8 + $0x5e8] sm:$0xff]
    %v736 = vld [vmem:[#allocation8 + $0x5f0] sm:$0xff]
    %v737 = vld [vmem:[#allocation8 + $0x5f8] sm:$0xff]
    %v738 = vld [vmem:[%s4] sm:$0x3]
    %v739 = vld [vmem:[#allocation2] sm:$0x3]
    %v741 = vlaneseq
    %v742 = vshrl.u32 %v741, 7
    %v743 = vsub.s32 0, %v742
    %v744 = vrot.slane %v739, %v743
    %v745 = vlaneseq
    %v746 = vshrl.u32 %v745, 7
    %v747 = vsub.s32 1, %v746
    %v748 = vrot.slane %v739, %v747
    %751 = vmatprep.subr.mxu0 %v637
    %752 = vmatpush1.msra.mxu0 %v636
    %753 = vmatprep.subr.mxu0 %v631
    %754 = vmatpush1.msra.mxu0 %v630
    %755 = vmatprep.subr.mxu0 %v625
    %756 = vmatpush1.msra.mxu0 %v624
    %757 = vmatprep.subr.mxu0 %v619
    %758 = vmatpush1.msra.mxu0 %v618
    %759 = vmatprep.subr.mxu0 %v613
    %760 = vmatpush1.msra.mxu0 %v612
    %761 = vmatprep.subr.mxu0 %v607
    %762 = vmatpush1.msra.mxu0 %v606
    %763 = vmatprep.subr.mxu0 %v601
    %764 = vmatpush1.msra.mxu0 %v600
    %765 = vmatprep.subr.mxu0 %v595
    %766 = vmatpush1.msra.mxu0 %v594
    %767 = vmatprep.subr.mxu0 %v589
    %768 = vmatpush1.msra.mxu0 %v588
    %769 = vmatprep.subr.mxu0 %v583
    %770 = vmatpush1.msra.mxu0 %v582
    %771 = vmatprep.subr.mxu0 %v577
    %772 = vmatpush1.msra.mxu0 %v576
    %773 = vmatprep.subr.mxu0 %v571
    %774 = vmatpush1.msra.mxu0 %v570
    %775 = vmatprep.subr.mxu0 %v565
    %776 = vmatpush1.msra.mxu0 %v564
    %777 = vmatprep.subr.mxu0 %v559
    %778 = vmatpush1.msra.mxu0 %v558
    %779 = vmatprep.subr.mxu0 %v553
    %780 = vmatpush1.msra.mxu0 %v552
    %781 = vmatprep.subr.mxu0 %v547
    %782 = vmatpush1.msra.mxu0 %v546
    %783 = vmatprep.subr.mxu0 %v733
    %784 = vmatpush2.msra.mxu0 %v732
    %785 = vmatprep.subr.mxu0 %v727
    %786 = vmatpush2.msra.mxu0 %v726
    %787 = vmatprep.subr.mxu0 %v721
    %788 = vmatpush2.msra.mxu0 %v720
    %789 = vmatprep.subr.mxu0 %v715
    %790 = vmatpush2.msra.mxu0 %v714
    %791 = vmatprep.subr.mxu0 %v709
    %792 = vmatpush2.msra.mxu0 %v708
    %793 = vmatprep.subr.mxu0 %v703
    %794 = vmatpush2.msra.mxu0 %v702
    %795 = vmatprep.subr.mxu0 %v697
    %796 = vmatpush2.msra.mxu0 %v696
    %797 = vmatprep.subr.mxu0 %v691
    %798 = vmatpush2.msra.mxu0 %v690
    %799 = vmatprep.subr.mxu0 %v685
    %800 = vmatpush2.msra.mxu0 %v684
    %801 = vmatprep.subr.mxu0 %v679
    %802 = vmatpush2.msra.mxu0 %v678
    %803 = vmatprep.subr.mxu0 %v673
    %804 = vmatpush2.msra.mxu0 %v672
    %805 = vmatprep.subr.mxu0 %v667
    %806 = vmatpush2.msra.mxu0 %v666
    %807 = vmatprep.subr.mxu0 %v661
    %808 = vmatpush2.msra.mxu0 %v660
    %809 = vmatprep.subr.mxu0 %v655
    %810 = vmatpush2.msra.mxu0 %v654
    %811 = vmatprep.subr.mxu0 %v649
    %812 = vmatpush2.msra.mxu0 %v648
    %813 = vmatprep.subr.mxu0 %v643
    %814 = vmatpush2.msra.mxu0 %v642
    %815 = vmatprep.mubr.f32.mxu0 %v748
    %816 = vmatmul.mubr.f32.gmra.mxu0 %v744
    %v817 = vpop.f32.mrf.mxu0
    %v818 = vadd.f32 0.0, %v817
    %v819 = vpop.f32.mrf.mxu0
    %v820 = vadd.f32 0.0, %v819
    %821 = vdwg.mxu0
    %822 = vmatprep.subr.mxu0 %v639
    %823 = vmatpush1.msra.mxu0 %v638
    %824 = vmatprep.subr.mxu0 %v633
    %825 = vmatpush1.msra.mxu0 %v632
    %826 = vmatprep.subr.mxu0 %v627
    %827 = vmatpush1.msra.mxu0 %v626
    %828 = vmatprep.subr.mxu0 %v621
    %829 = vmatpush1.msra.mxu0 %v620
    %830 = vmatprep.subr.mxu0 %v615
    %831 = vmatpush1.msra.mxu0 %v614
    %832 = vmatprep.subr.mxu0 %v609
    %833 = vmatpush1.msra.mxu0 %v608
    %834 = vmatprep.subr.mxu0 %v603
    %835 = vmatpush1.msra.mxu0 %v602
    %836 = vmatprep.subr.mxu0 %v597
    %837 = vmatpush1.msra.mxu0 %v596
    %838 = vmatprep.subr.mxu0 %v591
    %839 = vmatpush1.msra.mxu0 %v590
    %840 = vmatprep.subr.mxu0 %v585
    %841 = vmatpush1.msra.mxu0 %v584
    %842 = vmatprep.subr.mxu0 %v579
    %843 = vmatpush1.msra.mxu0 %v578
    %844 = vmatprep.subr.mxu0 %v573
    %845 = vmatpush1.msra.mxu0 %v572
    %846 = vmatprep.subr.mxu0 %v567
    %847 = vmatpush1.msra.mxu0 %v566
    %848 = vmatprep.subr.mxu0 %v561
    %849 = vmatpush1.msra.mxu0 %v560
    %850 = vmatprep.subr.mxu0 %v555
    %851 = vmatpush1.msra.mxu0 %v554
    %852 = vmatprep.subr.mxu0 %v549
    %853 = vmatpush1.msra.mxu0 %v548
    %854 = vmatprep.subr.mxu0 %v735
    %855 = vmatpush2.msra.mxu0 %v734
    %856 = vmatprep.subr.mxu0 %v729
    %857 = vmatpush2.msra.mxu0 %v728
    %858 = vmatprep.subr.mxu0 %v723
    %859 = vmatpush2.msra.mxu0 %v722
    %860 = vmatprep.subr.mxu0 %v717
    %861 = vmatpush2.msra.mxu0 %v716
    %862 = vmatprep.subr.mxu0 %v711
    %863 = vmatpush2.msra.mxu0 %v710
    %864 = vmatprep.subr.mxu0 %v705
    %865 = vmatpush2.msra.mxu0 %v704
    %866 = vmatprep.subr.mxu0 %v699
    %867 = vmatpush2.msra.mxu0 %v698
    %868 = vmatprep.subr.mxu0 %v693
    %869 = vmatpush2.msra.mxu0 %v692
    %870 = vmatprep.subr.mxu0 %v687
    %871 = vmatpush2.msra.mxu0 %v686
    %872 = vmatprep.subr.mxu0 %v681
    %873 = vmatpush2.msra.mxu0 %v680
    %874 = vmatprep.subr.mxu0 %v675
    %875 = vmatpush2.msra.mxu0 %v674
    %876 = vmatprep.subr.mxu0 %v669
    %877 = vmatpush2.msra.mxu0 %v668
    %878 = vmatprep.subr.mxu0 %v663
    %879 = vmatpush2.msra.mxu0 %v662
    %880 = vmatprep.subr.mxu0 %v657
    %881 = vmatpush2.msra.mxu0 %v656
    %882 = vmatprep.subr.mxu0 %v651
    %883 = vmatpush2.msra.mxu0 %v650
    %884 = vmatprep.subr.mxu0 %v645
    %885 = vmatpush2.msra.mxu0 %v644
    %886 = vmatprep.mubr.f32.mxu0 %v748
    %887 = vmatmul.mubr.f32.gmra.mxu0 %v744
    %v888 = vpop.f32.mrf.mxu0
    %v889 = vadd.f32 0.0, %v888
    %v890 = vpop.f32.mrf.mxu0
    %v891 = vadd.f32 0.0, %v890
    %892 = vdwg.mxu0
    %893 = vmatprep.subr.mxu0 %v641
    %894 = vmatpush1.msra.mxu0 %v640
    %895 = vmatprep.subr.mxu0 %v635
    %896 = vmatpush1.msra.mxu0 %v634
    %897 = vmatprep.subr.mxu0 %v629
    %898 = vmatpush1.msra.mxu0 %v628
    %899 = vmatprep.subr.mxu0 %v623
    %900 = vmatpush1.msra.mxu0 %v622
    %901 = vmatprep.subr.mxu0 %v617
    %902 = vmatpush1.msra.mxu0 %v616
    %903 = vmatprep.subr.mxu0 %v611
    %904 = vmatpush1.msra.mxu0 %v610
    %905 = vmatprep.subr.mxu0 %v605
    %906 = vmatpush1.msra.mxu0 %v604
    %907 = vmatprep.subr.mxu0 %v599
    %908 = vmatpush1.msra.mxu0 %v598
    %909 = vmatprep.subr.mxu0 %v593
    %910 = vmatpush1.msra.mxu0 %v592
    %911 = vmatprep.subr.mxu0 %v587
    %912 = vmatpush1.msra.mxu0 %v586
    %913 = vmatprep.subr.mxu0 %v581
    %914 = vmatpush1.msra.mxu0 %v580
    %915 = vmatprep.subr.mxu0 %v575
    %916 = vmatpush1.msra.mxu0 %v574
    %917 = vmatprep.subr.mxu0 %v569
    %918 = vmatpush1.msra.mxu0 %v568
    %919 = vmatprep.subr.mxu0 %v563
    %920 = vmatpush1.msra.mxu0 %v562
    %921 = vmatprep.subr.mxu0 %v557
    %922 = vmatpush1.msra.mxu0 %v556
    %923 = vmatprep.subr.mxu0 %v551
    %924 = vmatpush1.msra.mxu0 %v550
    %925 = vmatprep.subr.mxu0 %v737
    %926 = vmatpush2.msra.mxu0 %v736
    %927 = vmatprep.subr.mxu0 %v731
    %928 = vmatpush2.msra.mxu0 %v730
    %929 = vmatprep.subr.mxu0 %v725
    %930 = vmatpush2.msra.mxu0 %v724
    %931 = vmatprep.subr.mxu0 %v719
    %932 = vmatpush2.msra.mxu0 %v718
    %933 = vmatprep.subr.mxu0 %v713
    %934 = vmatpush2.msra.mxu0 %v712
    %935 = vmatprep.subr.mxu0 %v707
    %936 = vmatpush2.msra.mxu0 %v706
    %937 = vmatprep.subr.mxu0 %v701
    %938 = vmatpush2.msra.mxu0 %v700
    %939 = vmatprep.subr.mxu0 %v695
    %940 = vmatpush2.msra.mxu0 %v694
    %941 = vmatprep.subr.mxu0 %v689
    %942 = vmatpush2.msra.mxu0 %v688
    %943 = vmatprep.subr.mxu0 %v683
    %944 = vmatpush2.msra.mxu0 %v682
    %945 = vmatprep.subr.mxu0 %v677
    %946 = vmatpush2.msra.mxu0 %v676
    %947 = vmatprep.subr.mxu0 %v671
    %948 = vmatpush2.msra.mxu0 %v670
    %949 = vmatprep.subr.mxu0 %v665
    %950 = vmatpush2.msra.mxu0 %v664
    %951 = vmatprep.subr.mxu0 %v659
    %952 = vmatpush2.msra.mxu0 %v658
    %953 = vmatprep.subr.mxu0 %v653
    %954 = vmatpush2.msra.mxu0 %v652
    %955 = vmatprep.subr.mxu0 %v647
    %956 = vmatpush2.msra.mxu0 %v646
    %957 = vmatprep.mubr.f32.mxu0 %v748
    %958 = vmatmul.mubr.f32.gmra.mxu0 %v744
    %v959 = vpop.f32.mrf.mxu0
    %v960 = vadd.f32 0.0, %v959
    %v961 = vpop.f32.mrf.mxu0
    %v962 = vadd.f32 0.0, %v961
    %963 = vdwg.mxu0
    %v964 = vadd.f32 %v382, %v818
    %v965 = vadd.f32 %v384, %v820
    %v966 = vxor.u32 %v964, 2147483648
    %v967 = vxor.u32 %v965, 2147483648
    %v968 = vmul.f32 %v966, 1.442695
    %v969 = vpow.pop %v968
    %v970 = vmul.f32 %v967, 1.442695
    %v971 = vpow.pop %v970
    %v972 = vadd.f32 %v969, 1.0
    %v973 = vadd.f32 %v971, 1.0
    %v974 = vrcp.pop %v972
    %v975 = vmul.f32 1.0, %v974
    %v976 = vrcp.pop %v973
    %v977 = vmul.f32 1.0, %v976
    %v978 = vadd.f32 %v459, %v889
    %v979 = vadd.f32 %v461, %v891
    %v980 = vxor.u32 %v978, 2147483648
    %v981 = vxor.u32 %v979, 2147483648
    %v982 = vmul.f32 %v980, 1.442695
    %v983 = vpow.pop %v982
    %v984 = vmul.f32 %v981, 1.442695
    %v985 = vpow.pop %v984
    %v986 = vadd.f32 %v983, 1.0
    %v987 = vadd.f32 %v985, 1.0
    %v988 = vrcp.pop %v986
    %v989 = vmul.f32 1.0, %v988
    %v990 = vrcp.pop %v987
    %v991 = vmul.f32 1.0, %v990
    %v993 = vlaneseq
    %v994 = vshrl.u32 %v993, 7
    %v995 = vsub.s32 0, %v994
    %v996 = vrot.slane %v738, %v995
    %v997 = vlaneseq
    %v998 = vshrl.u32 %v997, 7
    %v999 = vsub.s32 1, %v998
    %v1000 = vrot.slane %v738, %v999
    %v1003 = vadd.f32 %v960, %v996
    %v1004 = vadd.f32 %v962, %v1000
    %v1005 = vmul.f32 %v975, %v1003
    %v1006 = vmul.f32 %v977, %v1004
    %v1007 = vadd.f32 %v536, %v1005
    %v1008 = vadd.f32 %v538, %v1006
    %v1009 = vtanh.pop %v1007
    %v1010 = vtanh.pop %v1008
    %v1011 = vsub.f32 1.0, %v989
    %v1012 = vsub.f32 1.0, %v991
    %v1013 = vmul.f32 %v1011, %v1009
    %v1014 = vmul.f32 %v1012, %v1010
    %v1015 = vmul.f32 %v989, %v744
    %v1016 = vmul.f32 %v991, %v748
    %v1017 = vadd.f32 %v1013, %v1015
    %v1018 = vadd.f32 %v1014, %v1016
    %1019 = vmatprep.subr.mxu0 %v637
    %1020 = vmatpush1.msra.mxu0 %v636
    %1021 = vmatprep.subr.mxu0 %v631
    %1022 = vmatpush1.msra.mxu0 %v630
    %1023 = vmatprep.subr.mxu0 %v625
    %1024 = vmatpush1.msra.mxu0 %v624
    %1025 = vmatprep.subr.mxu0 %v619
    %1026 = vmatpush1.msra.mxu0 %v618
    %1027 = vmatprep.subr.mxu0 %v613
    %1028 = vmatpush1.msra.mxu0 %v612
    %1029 = vmatprep.subr.mxu0 %v607
    %1030 = vmatpush1.msra.mxu0 %v606
    %1031 = vmatprep.subr.mxu0 %v601
    %1032 = vmatpush1.msra.mxu0 %v600
    %1033 = vmatprep.subr.mxu0 %v595
    %1034 = vmatpush1.msra.mxu0 %v594
    %1035 = vmatprep.subr.mxu0 %v589
    %1036 = vmatpush1.msra.mxu0 %v588
    %1037 = vmatprep.subr.mxu0 %v583
    %1038 = vmatpush1.msra.mxu0 %v582
    %1039 = vmatprep.subr.mxu0 %v577
    %1040 = vmatpush1.msra.mxu0 %v576
    %1041 = vmatprep.subr.mxu0 %v571
    %1042 = vmatpush1.msra.mxu0 %v570
    %1043 = vmatprep.subr.mxu0 %v565
    %1044 = vmatpush1.msra.mxu0 %v564
    %1045 = vmatprep.subr.mxu0 %v559
    %1046 = vmatpush1.msra.mxu0 %v558
    %1047 = vmatprep.subr.mxu0 %v553
    %1048 = vmatpush1.msra.mxu0 %v552
    %1049 = vmatprep.subr.mxu0 %v547
    %1050 = vmatpush1.msra.mxu0 %v546
    %1051 = vmatprep.subr.mxu0 %v733
    %1052 = vmatpush2.msra.mxu0 %v732
    %1053 = vmatprep.subr.mxu0 %v727
    %1054 = vmatpush2.msra.mxu0 %v726
    %1055 = vmatprep.subr.mxu0 %v721
    %1056 = vmatpush2.msra.mxu0 %v720
    %1057 = vmatprep.subr.mxu0 %v715
    %1058 = vmatpush2.msra.mxu0 %v714
    %1059 = vmatprep.subr.mxu0 %v709
    %1060 = vmatpush2.msra.mxu0 %v708
    %1061 = vmatprep.subr.mxu0 %v703
    %1062 = vmatpush2.msra.mxu0 %v702
    %1063 = vmatprep.subr.mxu0 %v697
    %1064 = vmatpush2.msra.mxu0 %v696
    %1065 = vmatprep.subr.mxu0 %v691
    %1066 = vmatpush2.msra.mxu0 %v690
    %1067 = vmatprep.subr.mxu0 %v685
    %1068 = vmatpush2.msra.mxu0 %v684
    %1069 = vmatprep.subr.mxu0 %v679
    %1070 = vmatpush2.msra.mxu0 %v678
    %1071 = vmatprep.subr.mxu0 %v673
    %1072 = vmatpush2.msra.mxu0 %v672
    %1073 = vmatprep.subr.mxu0 %v667
    %1074 = vmatpush2.msra.mxu0 %v666
    %1075 = vmatprep.subr.mxu0 %v661
    %1076 = vmatpush2.msra.mxu0 %v660
    %1077 = vmatprep.subr.mxu0 %v655
    %1078 = vmatpush2.msra.mxu0 %v654
    %1079 = vmatprep.subr.mxu0 %v649
    %1080 = vmatpush2.msra.mxu0 %v648
    %1081 = vmatprep.subr.mxu0 %v643
    %1082 = vmatpush2.msra.mxu0 %v642
    %1083 = vmatprep.mubr.f32.mxu0 %v1018
    %1084 = vmatmul.mubr.f32.gmra.mxu0 %v1017
    %v1085 = vpop.f32.mrf.mxu0
    %v1086 = vadd.f32 0.0, %v1085
    %v1087 = vpop.f32.mrf.mxu0
    %v1088 = vadd.f32 0.0, %v1087
    %1089 = vdwg.mxu0
    %1090 = vmatprep.subr.mxu0 %v639
    %1091 = vmatpush1.msra.mxu0 %v638
    %1092 = vmatprep.subr.mxu0 %v633
    %1093 = vmatpush1.msra.mxu0 %v632
    %1094 = vmatprep.subr.mxu0 %v627
    %1095 = vmatpush1.msra.mxu0 %v626
    %1096 = vmatprep.subr.mxu0 %v621
    %1097 = vmatpush1.msra.mxu0 %v620
    %1098 = vmatprep.subr.mxu0 %v615
    %1099 = vmatpush1.msra.mxu0 %v614
    %1100 = vmatprep.subr.mxu0 %v609
    %1101 = vmatpush1.msra.mxu0 %v608
    %1102 = vmatprep.subr.mxu0 %v603
    %1103 = vmatpush1.msra.mxu0 %v602
    %1104 = vmatprep.subr.mxu0 %v597
    %1105 = vmatpush1.msra.mxu0 %v596
    %1106 = vmatprep.subr.mxu0 %v591
    %1107 = vmatpush1.msra.mxu0 %v590
    %1108 = vmatprep.subr.mxu0 %v585
    %1109 = vmatpush1.msra.mxu0 %v584
    %1110 = vmatprep.subr.mxu0 %v579
    %1111 = vmatpush1.msra.mxu0 %v578
    %1112 = vmatprep.subr.mxu0 %v573
    %1113 = vmatpush1.msra.mxu0 %v572
    %1114 = vmatprep.subr.mxu0 %v567
    %1115 = vmatpush1.msra.mxu0 %v566
    %1116 = vmatprep.subr.mxu0 %v561
    %1117 = vmatpush1.msra.mxu0 %v560
    %1118 = vmatprep.subr.mxu0 %v555
    %1119 = vmatpush1.msra.mxu0 %v554
    %1120 = vmatprep.subr.mxu0 %v549
    %1121 = vmatpush1.msra.mxu0 %v548
    %1122 = vmatprep.subr.mxu0 %v735
    %1123 = vmatpush2.msra.mxu0 %v734
    %1124 = vmatprep.subr.mxu0 %v729
    %1125 = vmatpush2.msra.mxu0 %v728
    %1126 = vmatprep.subr.mxu0 %v723
    %1127 = vmatpush2.msra.mxu0 %v722
    %1128 = vmatprep.subr.mxu0 %v717
    %1129 = vmatpush2.msra.mxu0 %v716
    %1130 = vmatprep.subr.mxu0 %v711
    %1131 = vmatpush2.msra.mxu0 %v710
    %1132 = vmatprep.subr.mxu0 %v705
    %1133 = vmatpush2.msra.mxu0 %v704
    %1134 = vmatprep.subr.mxu0 %v699
    %1135 = vmatpush2.msra.mxu0 %v698
    %1136 = vmatprep.subr.mxu0 %v693
    %1137 = vmatpush2.msra.mxu0 %v692
    %1138 = vmatprep.subr.mxu0 %v687
    %1139 = vmatpush2.msra.mxu0 %v686
    %1140 = vmatprep.subr.mxu0 %v681
    %1141 = vmatpush2.msra.mxu0 %v680
    %1142 = vmatprep.subr.mxu0 %v675
    %1143 = vmatpush2.msra.mxu0 %v674
    %1144 = vmatprep.subr.mxu0 %v669
    %1145 = vmatpush2.msra.mxu0 %v668
    %1146 = vmatprep.subr.mxu0 %v663
    %1147 = vmatpush2.msra.mxu0 %v662
    %1148 = vmatprep.subr.mxu0 %v657
    %1149 = vmatpush2.msra.mxu0 %v656
    %1150 = vmatprep.subr.mxu0 %v651
    %1151 = vmatpush2.msra.mxu0 %v650
    %1152 = vmatprep.subr.mxu0 %v645
    %1153 = vmatpush2.msra.mxu0 %v644
    %1154 = vmatprep.mubr.f32.mxu0 %v1018
    %1155 = vmatmul.mubr.f32.gmra.mxu0 %v1017
    %v1156 = vpop.f32.mrf.mxu0
    %v1157 = vadd.f32 0.0, %v1156
    %v1158 = vpop.f32.mrf.mxu0
    %v1159 = vadd.f32 0.0, %v1158
    %1160 = vdwg.mxu0
    %1161 = vmatprep.subr.mxu0 %v641
    %1162 = vmatpush1.msra.mxu0 %v640
    %1163 = vmatprep.subr.mxu0 %v635
    %1164 = vmatpush1.msra.mxu0 %v634
    %1165 = vmatprep.subr.mxu0 %v629
    %1166 = vmatpush1.msra.mxu0 %v628
    %1167 = vmatprep.subr.mxu0 %v623
    %1168 = vmatpush1.msra.mxu0 %v622
    %1169 = vmatprep.subr.mxu0 %v617
    %1170 = vmatpush1.msra.mxu0 %v616
    %1171 = vmatprep.subr.mxu0 %v611
    %1172 = vmatpush1.msra.mxu0 %v610
    %1173 = vmatprep.subr.mxu0 %v605
    %1174 = vmatpush1.msra.mxu0 %v604
    %1175 = vmatprep.subr.mxu0 %v599
    %1176 = vmatpush1.msra.mxu0 %v598
    %1177 = vmatprep.subr.mxu0 %v593
    %1178 = vmatpush1.msra.mxu0 %v592
    %1179 = vmatprep.subr.mxu0 %v587
    %1180 = vmatpush1.msra.mxu0 %v586
    %1181 = vmatprep.subr.mxu0 %v581
    %1182 = vmatpush1.msra.mxu0 %v580
    %1183 = vmatprep.subr.mxu0 %v575
    %1184 = vmatpush1.msra.mxu0 %v574
    %1185 = vmatprep.subr.mxu0 %v569
    %1186 = vmatpush1.msra.mxu0 %v568
    %1187 = vmatprep.subr.mxu0 %v563
    %1188 = vmatpush1.msra.mxu0 %v562
    %1189 = vmatprep.subr.mxu0 %v557
    %1190 = vmatpush1.msra.mxu0 %v556
    %1191 = vmatprep.subr.mxu0 %v551
    %1192 = vmatpush1.msra.mxu0 %v550
    %1193 = vmatprep.subr.mxu0 %v737
    %1194 = vmatpush2.msra.mxu0 %v736
    %1195 = vmatprep.subr.mxu0 %v731
    %1196 = vmatpush2.msra.mxu0 %v730
    %1197 = vmatprep.subr.mxu0 %v725
    %1198 = vmatpush2.msra.mxu0 %v724
    %1199 = vmatprep.subr.mxu0 %v719
    %1200 = vmatpush2.msra.mxu0 %v718
    %1201 = vmatprep.subr.mxu0 %v713
    %1202 = vmatpush2.msra.mxu0 %v712
    %1203 = vmatprep.subr.mxu0 %v707
    %1204 = vmatpush2.msra.mxu0 %v706
    %1205 = vmatprep.subr.mxu0 %v701
    %1206 = vmatpush2.msra.mxu0 %v700
    %1207 = vmatprep.subr.mxu0 %v695
    %1208 = vmatpush2.msra.mxu0 %v694
    %1209 = vmatprep.subr.mxu0 %v689
    %1210 = vmatpush2.msra.mxu0 %v688
    %1211 = vmatprep.subr.mxu0 %v683
    %1212 = vmatpush2.msra.mxu0 %v682
    %1213 = vmatprep.subr.mxu0 %v677
    %1214 = vmatpush2.msra.mxu0 %v676
    %1215 = vmatprep.subr.mxu0 %v671
    %1216 = vmatpush2.msra.mxu0 %v670
    %1217 = vmatprep.subr.mxu0 %v665
    %1218 = vmatpush2.msra.mxu0 %v664
    %1219 = vmatprep.subr.mxu0 %v659
    %1220 = vmatpush2.msra.mxu0 %v658
    %1221 = vmatprep.subr.mxu0 %v653
    %1222 = vmatpush2.msra.mxu0 %v652
    %1223 = vmatprep.subr.mxu0 %v647
    %1224 = vmatpush2.msra.mxu0 %v646
    %1225 = vmatprep.mubr.f32.mxu0 %v1018
    %1226 = vmatmul.mubr.f32.gmra.mxu0 %v1017
    %v1227 = vpop.f32.mrf.mxu0
    %v1228 = vadd.f32 0.0, %v1227
    %v1229 = vpop.f32.mrf.mxu0
    %v1230 = vadd.f32 0.0, %v1229
    %1231 = vdwg.mxu0
    %v1234 = vrot.slane %v1086, 7
    %v1235 = vrot.slane %v1088, 7
    %v1238 = vadd.f32 %v382, %v1234
    %v1239 = vadd.f32 %v384, %v1235
    %v1240 = vxor.u32 %v1238, 2147483648
    %v1241 = vxor.u32 %v1239, 2147483648
    %v1242 = vmul.f32 %v1240, 1.442695
    %v1243 = vpow.pop %v1242
    %v1244 = vmul.f32 %v1241, 1.442695
    %v1245 = vpow.pop %v1244
    %v1246 = vadd.f32 %v1243, 1.0
    %v1247 = vadd.f32 %v1245, 1.0
    %v1248 = vrcp.pop %v1246
    %v1249 = vmul.f32 1.0, %v1248
    %v1250 = vrcp.pop %v1247
    %v1251 = vmul.f32 1.0, %v1250
    %v1254 = vrot.slane %v1157, 7
    %v1255 = vrot.slane %v1159, 7
    %v1258 = vadd.f32 %v459, %v1254
    %v1259 = vadd.f32 %v461, %v1255
    %v1260 = vxor.u32 %v1258, 2147483648
    %v1261 = vxor.u32 %v1259, 2147483648
    %v1262 = vmul.f32 %v1260, 1.442695
    %v1263 = vpow.pop %v1262
    %v1264 = vmul.f32 %v1261, 1.442695
    %v1265 = vpow.pop %v1264
    %v1266 = vadd.f32 %v1263, 1.0
    %v1267 = vadd.f32 %v1265, 1.0
    %v1268 = vrcp.pop %v1266
    %v1269 = vmul.f32 1.0, %v1268
    %v1270 = vrcp.pop %v1267
    %v1271 = vmul.f32 1.0, %v1270
    %v1272 = vadd.f32 %v1228, %v996
    %v1273 = vadd.f32 %v1230, %v1000
    %v1276 = vrot.slane %v1272, 7
    %v1277 = vrot.slane %v1273, 7
    %v1280 = vmul.f32 %v1249, %v1276
    %v1281 = vmul.f32 %v1251, %v1277
    %v1282 = vadd.f32 %v536, %v1280
    %v1283 = vadd.f32 %v538, %v1281
    %v1284 = vtanh.pop %v1282
    %v1285 = vtanh.pop %v1283
    %v1286 = vsub.f32 1.0, %v1269
    %v1287 = vsub.f32 1.0, %v1271
    %v1288 = vmul.f32 %v1286, %v1284
    %v1289 = vmul.f32 %v1287, %v1285
    %v1292 = vrot.slane %v1017, 7
    %v1293 = vrot.slane %v1018, 7
    %v1296 = vmul.f32 %v1269, %v1292
    %v1297 = vmul.f32 %v1271, %v1293
    %v1298 = vadd.f32 %v1288, %v1296
    %v1299 = vadd.f32 %v1289, %v1297
    %v1302 = vrot.slane %v1298, 1
    %v1303 = vrot.slane %v1299, 1
    %1306 = vmatprep.subr.mxu0 %v637
    %1307 = vmatpush1.msra.mxu0 %v636
    %1308 = vmatprep.subr.mxu0 %v631
    %1309 = vmatpush1.msra.mxu0 %v630
    %1310 = vmatprep.subr.mxu0 %v625
    %1311 = vmatpush1.msra.mxu0 %v624
    %1312 = vmatprep.subr.mxu0 %v619
    %1313 = vmatpush1.msra.mxu0 %v618
    %1314 = vmatprep.subr.mxu0 %v613
    %1315 = vmatpush1.msra.mxu0 %v612
    %1316 = vmatprep.subr.mxu0 %v607
    %1317 = vmatpush1.msra.mxu0 %v606
    %1318 = vmatprep.subr.mxu0 %v601
    %1319 = vmatpush1.msra.mxu0 %v600
    %1320 = vmatprep.subr.mxu0 %v595
    %1321 = vmatpush1.msra.mxu0 %v594
    %1322 = vmatprep.subr.mxu0 %v589
    %1323 = vmatpush1.msra.mxu0 %v588
    %1324 = vmatprep.subr.mxu0 %v583
    %1325 = vmatpush1.msra.mxu0 %v582
    %1326 = vmatprep.subr.mxu0 %v577
    %1327 = vmatpush1.msra.mxu0 %v576
    %1328 = vmatprep.subr.mxu0 %v571
    %1329 = vmatpush1.msra.mxu0 %v570
    %1330 = vmatprep.subr.mxu0 %v565
    %1331 = vmatpush1.msra.mxu0 %v564
    %1332 = vmatprep.subr.mxu0 %v559
    %1333 = vmatpush1.msra.mxu0 %v558
    %1334 = vmatprep.subr.mxu0 %v553
    %1335 = vmatpush1.msra.mxu0 %v552
    %1336 = vmatprep.subr.mxu0 %v547
    %1337 = vmatpush1.msra.mxu0 %v546
    %1338 = vmatprep.subr.mxu0 %v733
    %1339 = vmatpush2.msra.mxu0 %v732
    %1340 = vmatprep.subr.mxu0 %v727
    %1341 = vmatpush2.msra.mxu0 %v726
    %1342 = vmatprep.subr.mxu0 %v721
    %1343 = vmatpush2.msra.mxu0 %v720
    %1344 = vmatprep.subr.mxu0 %v715
    %1345 = vmatpush2.msra.mxu0 %v714
    %1346 = vmatprep.subr.mxu0 %v709
    %1347 = vmatpush2.msra.mxu0 %v708
    %1348 = vmatprep.subr.mxu0 %v703
    %1349 = vmatpush2.msra.mxu0 %v702
    %1350 = vmatprep.subr.mxu0 %v697
    %1351 = vmatpush2.msra.mxu0 %v696
    %1352 = vmatprep.subr.mxu0 %v691
    %1353 = vmatpush2.msra.mxu0 %v690
    %1354 = vmatprep.subr.mxu0 %v685
    %1355 = vmatpush2.msra.mxu0 %v684
    %1356 = vmatprep.subr.mxu0 %v679
    %1357 = vmatpush2.msra.mxu0 %v678
    %1358 = vmatprep.subr.mxu0 %v673
    %1359 = vmatpush2.msra.mxu0 %v672
    %1360 = vmatprep.subr.mxu0 %v667
    %1361 = vmatpush2.msra.mxu0 %v666
    %1362 = vmatprep.subr.mxu0 %v661
    %1363 = vmatpush2.msra.mxu0 %v660
    %1364 = vmatprep.subr.mxu0 %v655
    %1365 = vmatpush2.msra.mxu0 %v654
    %1366 = vmatprep.subr.mxu0 %v649
    %1367 = vmatpush2.msra.mxu0 %v648
    %1368 = vmatprep.subr.mxu0 %v643
    %1369 = vmatpush2.msra.mxu0 %v642
    %1370 = vmatprep.mubr.f32.mxu0 %v1303
    %1371 = vmatmul.mubr.f32.gmra.mxu0 %v1302
    %v1372 = vpop.f32.mrf.mxu0
    %v1373 = vadd.f32 0.0, %v1372
    %v1374 = vpop.f32.mrf.mxu0
    %v1375 = vadd.f32 0.0, %v1374
    %1376 = vdwg.mxu0
    %1377 = vmatprep.subr.mxu0 %v639
    %1378 = vmatpush1.msra.mxu0 %v638
    %1379 = vmatprep.subr.mxu0 %v633
    %1380 = vmatpush1.msra.mxu0 %v632
    %1381 = vmatprep.subr.mxu0 %v627
    %1382 = vmatpush1.msra.mxu0 %v626
    %1383 = vmatprep.subr.mxu0 %v621
    %1384 = vmatpush1.msra.mxu0 %v620
    %1385 = vmatprep.subr.mxu0 %v615
    %1386 = vmatpush1.msra.mxu0 %v614
    %1387 = vmatprep.subr.mxu0 %v609
    %1388 = vmatpush1.msra.mxu0 %v608
    %1389 = vmatprep.subr.mxu0 %v603
    %1390 = vmatpush1.msra.mxu0 %v602
    %1391 = vmatprep.subr.mxu0 %v597
    %1392 = vmatpush1.msra.mxu0 %v596
    %1393 = vmatprep.subr.mxu0 %v591
    %1394 = vmatpush1.msra.mxu0 %v590
    %1395 = vmatprep.subr.mxu0 %v585
    %1396 = vmatpush1.msra.mxu0 %v584
    %1397 = vmatprep.subr.mxu0 %v579
    %1398 = vmatpush1.msra.mxu0 %v578
    %1399 = vmatprep.subr.mxu0 %v573
    %1400 = vmatpush1.msra.mxu0 %v572
    %1401 = vmatprep.subr.mxu0 %v567
    %1402 = vmatpush1.msra.mxu0 %v566
    %1403 = vmatprep.subr.mxu0 %v561
    %1404 = vmatpush1.msra.mxu0 %v560
    %1405 = vmatprep.subr.mxu0 %v555
    %1406 = vmatpush1.msra.mxu0 %v554
    %1407 = vmatprep.subr.mxu0 %v549
    %1408 = vmatpush1.msra.mxu0 %v548
    %1409 = vmatprep.subr.mxu0 %v735
    %1410 = vmatpush2.msra.mxu0 %v734
    %1411 = vmatprep.subr.mxu0 %v729
    %1412 = vmatpush2.msra.mxu0 %v728
    %1413 = vmatprep.subr.mxu0 %v723
    %1414 = vmatpush2.msra.mxu0 %v722
    %1415 = vmatprep.subr.mxu0 %v717
    %1416 = vmatpush2.msra.mxu0 %v716
    %1417 = vmatprep.subr.mxu0 %v711
    %1418 = vmatpush2.msra.mxu0 %v710
    %1419 = vmatprep.subr.mxu0 %v705
    %1420 = vmatpush2.msra.mxu0 %v704
    %1421 = vmatprep.subr.mxu0 %v699
    %1422 = vmatpush2.msra.mxu0 %v698
    %1423 = vmatprep.subr.mxu0 %v693
    %1424 = vmatpush2.msra.mxu0 %v692
    %1425 = vmatprep.subr.mxu0 %v687
    %1426 = vmatpush2.msra.mxu0 %v686
    %1427 = vmatprep.subr.mxu0 %v681
    %1428 = vmatpush2.msra.mxu0 %v680
    %1429 = vmatprep.subr.mxu0 %v675
    %1430 = vmatpush2.msra.mxu0 %v674
    %1431 = vmatprep.subr.mxu0 %v669
    %1432 = vmatpush2.msra.mxu0 %v668
    %1433 = vmatprep.subr.mxu0 %v663
    %1434 = vmatpush2.msra.mxu0 %v662
    %1435 = vmatprep.subr.mxu0 %v657
    %1436 = vmatpush2.msra.mxu0 %v656
    %1437 = vmatprep.subr.mxu0 %v651
    %1438 = vmatpush2.msra.mxu0 %v650
    %1439 = vmatprep.subr.mxu0 %v645
    %1440 = vmatpush2.msra.mxu0 %v644
    %1441 = vmatprep.mubr.f32.mxu0 %v1303
    %1442 = vmatmul.mubr.f32.gmra.mxu0 %v1302
    %v1443 = vpop.f32.mrf.mxu0
    %v1444 = vadd.f32 0.0, %v1443
    %v1445 = vpop.f32.mrf.mxu0
    %v1446 = vadd.f32 0.0, %v1445
    %1447 = vdwg.mxu0
    %1448 = vmatprep.subr.mxu0 %v641
    %1449 = vmatpush1.msra.mxu0 %v640
    %1450 = vmatprep.subr.mxu0 %v635
    %1451 = vmatpush1.msra.mxu0 %v634
    %1452 = vmatprep.subr.mxu0 %v629
    %1453 = vmatpush1.msra.mxu0 %v628
    %1454 = vmatprep.subr.mxu0 %v623
    %1455 = vmatpush1.msra.mxu0 %v622
    %1456 = vmatprep.subr.mxu0 %v617
    %1457 = vmatpush1.msra.mxu0 %v616
    %1458 = vmatprep.subr.mxu0 %v611
    %1459 = vmatpush1.msra.mxu0 %v610
    %1460 = vmatprep.subr.mxu0 %v605
    %1461 = vmatpush1.msra.mxu0 %v604
    %1462 = vmatprep.subr.mxu0 %v599
    %1463 = vmatpush1.msra.mxu0 %v598
    %1464 = vmatprep.subr.mxu0 %v593
    %1465 = vmatpush1.msra.mxu0 %v592
    %1466 = vmatprep.subr.mxu0 %v587
    %1467 = vmatpush1.msra.mxu0 %v586
    %1468 = vmatprep.subr.mxu0 %v581
    %1469 = vmatpush1.msra.mxu0 %v580
    %1470 = vmatprep.subr.mxu0 %v575
    %1471 = vmatpush1.msra.mxu0 %v574
    %1472 = vmatprep.subr.mxu0 %v569
    %1473 = vmatpush1.msra.mxu0 %v568
    %1474 = vmatprep.subr.mxu0 %v563
    %1475 = vmatpush1.msra.mxu0 %v562
    %1476 = vmatprep.subr.mxu0 %v557
    %1477 = vmatpush1.msra.mxu0 %v556
    %1478 = vmatprep.subr.mxu0 %v551
    %1479 = vmatpush1.msra.mxu0 %v550
    %1480 = vmatprep.subr.mxu0 %v737
    %1481 = vmatpush2.msra.mxu0 %v736
    %1482 = vmatprep.subr.mxu0 %v731
    %1483 = vmatpush2.msra.mxu0 %v730
    %1484 = vmatprep.subr.mxu0 %v725
    %1485 = vmatpush2.msra.mxu0 %v724
    %1486 = vmatprep.subr.mxu0 %v719
    %1487 = vmatpush2.msra.mxu0 %v718
    %1488 = vmatprep.subr.mxu0 %v713
    %1489 = vmatpush2.msra.mxu0 %v712
    %1490 = vmatprep.subr.mxu0 %v707
    %1491 = vmatpush2.msra.mxu0 %v706
    %1492 = vmatprep.subr.mxu0 %v701
    %1493 = vmatpush2.msra.mxu0 %v700
    %1494 = vmatprep.subr.mxu0 %v695
    %1495 = vmatpush2.msra.mxu0 %v694
    %1496 = vmatprep.subr.mxu0 %v689
    %1497 = vmatpush2.msra.mxu0 %v688
    %1498 = vmatprep.subr.mxu0 %v683
    %1499 = vmatpush2.msra.mxu0 %v682
    %1500 = vmatprep.subr.mxu0 %v677
    %1501 = vmatpush2.msra.mxu0 %v676
    %1502 = vmatprep.subr.mxu0 %v671
    %1503 = vmatpush2.msra.mxu0 %v670
    %1504 = vmatprep.subr.mxu0 %v665
    %1505 = vmatpush2.msra.mxu0 %v664
    %1506 = vmatprep.subr.mxu0 %v659
    %1507 = vmatpush2.msra.mxu0 %v658
    %1508 = vmatprep.subr.mxu0 %v653
    %1509 = vmatpush2.msra.mxu0 %v652
    %1510 = vmatprep.subr.mxu0 %v647
    %1511 = vmatpush2.msra.mxu0 %v646
    %1512 = vmatprep.mubr.f32.mxu0 %v1303
    %1513 = vmatmul.mubr.f32.gmra.mxu0 %v1302
    %v1514 = vpop.f32.mrf.mxu0
    %v1515 = vadd.f32 0.0, %v1514
    %v1516 = vpop.f32.mrf.mxu0
    %v1517 = vadd.f32 0.0, %v1516
    %1518 = vdwg.mxu0
    %v1521 = vrot.slane %v1373, 6
    %v1522 = vrot.slane %v1375, 6
    %v1525 = vadd.f32 %v382, %v1521
    %v1526 = vadd.f32 %v384, %v1522
    %v1527 = vxor.u32 %v1525, 2147483648
    %v1528 = vxor.u32 %v1526, 2147483648
    %v1529 = vmul.f32 %v1527, 1.442695
    %v1530 = vpow.pop %v1529
    %v1531 = vmul.f32 %v1528, 1.442695
    %v1532 = vpow.pop %v1531
    %v1533 = vadd.f32 %v1530, 1.0
    %v1534 = vadd.f32 %v1532, 1.0
    %v1535 = vrcp.pop %v1533
    %v1536 = vmul.f32 1.0, %v1535
    %v1537 = vrcp.pop %v1534
    %v1538 = vmul.f32 1.0, %v1537
    %v1541 = vrot.slane %v1444, 6
    %v1542 = vrot.slane %v1446, 6
    %v1545 = vadd.f32 %v459, %v1541
    %v1546 = vadd.f32 %v461, %v1542
    %v1547 = vxor.u32 %v1545, 2147483648
    %v1548 = vxor.u32 %v1546, 2147483648
    %v1549 = vmul.f32 %v1547, 1.442695
    %v1550 = vpow.pop %v1549
    %v1551 = vmul.f32 %v1548, 1.442695
    %v1552 = vpow.pop %v1551
    %v1553 = vadd.f32 %v1550, 1.0
    %v1554 = vadd.f32 %v1552, 1.0
    %v1555 = vrcp.pop %v1553
    %v1556 = vmul.f32 1.0, %v1555
    %v1557 = vrcp.pop %v1554
    %v1558 = vmul.f32 1.0, %v1557
    %v1559 = vadd.f32 %v1515, %v996
    %v1560 = vadd.f32 %v1517, %v1000
    %v1563 = vrot.slane %v1559, 6
    %v1564 = vrot.slane %v1560, 6
    %v1567 = vmul.f32 %v1536, %v1563
    %v1568 = vmul.f32 %v1538, %v1564
    %v1569 = vadd.f32 %v536, %v1567
    %v1570 = vadd.f32 %v538, %v1568
    %v1571 = vtanh.pop %v1569
    %v1572 = vtanh.pop %v1570
    %v1573 = vsub.f32 1.0, %v1556
    %v1574 = vsub.f32 1.0, %v1558
    %v1575 = vmul.f32 %v1573, %v1571
    %v1576 = vmul.f32 %v1574, %v1572
    %v1577 = vrot.slane %v1298, 7
    %v1578 = vrot.slane %v1299, 7
    %v1581 = vmul.f32 %v1556, %v1577
    %v1582 = vmul.f32 %v1558, %v1578
    %v1583 = vadd.f32 %v1575, %v1581
    %v1584 = vadd.f32 %v1576, %v1582
    %v1587 = vrot.slane %v1583, 2
    %v1588 = vrot.slane %v1584, 2
    %1591 = vmatprep.subr.mxu0 %v637
    %1592 = vmatpush1.msra.mxu0 %v636
    %1593 = vmatprep.subr.mxu0 %v631
    %1594 = vmatpush1.msra.mxu0 %v630
    %1595 = vmatprep.subr.mxu0 %v625
    %1596 = vmatpush1.msra.mxu0 %v624
    %1597 = vmatprep.subr.mxu0 %v619
    %1598 = vmatpush1.msra.mxu0 %v618
    %1599 = vmatprep.subr.mxu0 %v613
    %1600 = vmatpush1.msra.mxu0 %v612
    %1601 = vmatprep.subr.mxu0 %v607
    %1602 = vmatpush1.msra.mxu0 %v606
    %1603 = vmatprep.subr.mxu0 %v601
    %1604 = vmatpush1.msra.mxu0 %v600
    %1605 = vmatprep.subr.mxu0 %v595
    %1606 = vmatpush1.msra.mxu0 %v594
    %1607 = vmatprep.subr.mxu0 %v589
    %1608 = vmatpush1.msra.mxu0 %v588
    %1609 = vmatprep.subr.mxu0 %v583
    %1610 = vmatpush1.msra.mxu0 %v582
    %1611 = vmatprep.subr.mxu0 %v577
    %1612 = vmatpush1.msra.mxu0 %v576
    %1613 = vmatprep.subr.mxu0 %v571
    %1614 = vmatpush1.msra.mxu0 %v570
    %1615 = vmatprep.subr.mxu0 %v565
    %1616 = vmatpush1.msra.mxu0 %v564
    %1617 = vmatprep.subr.mxu0 %v559
    %1618 = vmatpush1.msra.mxu0 %v558
    %1619 = vmatprep.subr.mxu0 %v553
    %1620 = vmatpush1.msra.mxu0 %v552
    %1621 = vmatprep.subr.mxu0 %v547
    %1622 = vmatpush1.msra.mxu0 %v546
    %1623 = vmatprep.subr.mxu0 %v733
    %1624 = vmatpush2.msra.mxu0 %v732
    %1625 = vmatprep.subr.mxu0 %v727
    %1626 = vmatpush2.msra.mxu0 %v726
    %1627 = vmatprep.subr.mxu0 %v721
    %1628 = vmatpush2.msra.mxu0 %v720
    %1629 = vmatprep.subr.mxu0 %v715
    %1630 = vmatpush2.msra.mxu0 %v714
    %1631 = vmatprep.subr.mxu0 %v709
    %1632 = vmatpush2.msra.mxu0 %v708
    %1633 = vmatprep.subr.mxu0 %v703
    %1634 = vmatpush2.msra.mxu0 %v702
    %1635 = vmatprep.subr.mxu0 %v697
    %1636 = vmatpush2.msra.mxu0 %v696
    %1637 = vmatprep.subr.mxu0 %v691
    %1638 = vmatpush2.msra.mxu0 %v690
    %1639 = vmatprep.subr.mxu0 %v685
    %1640 = vmatpush2.msra.mxu0 %v684
    %1641 = vmatprep.subr.mxu0 %v679
    %1642 = vmatpush2.msra.mxu0 %v678
    %1643 = vmatprep.subr.mxu0 %v673
    %1644 = vmatpush2.msra.mxu0 %v672
    %1645 = vmatprep.subr.mxu0 %v667
    %1646 = vmatpush2.msra.mxu0 %v666
    %1647 = vmatprep.subr.mxu0 %v661
    %1648 = vmatpush2.msra.mxu0 %v660
    %1649 = vmatprep.subr.mxu0 %v655
    %1650 = vmatpush2.msra.mxu0 %v654
    %1651 = vmatprep.subr.mxu0 %v649
    %1652 = vmatpush2.msra.mxu0 %v648
    %1653 = vmatprep.subr.mxu0 %v643
    %1654 = vmatpush2.msra.mxu0 %v642
    %1655 = vmatprep.mubr.f32.mxu0 %v1588
    %1656 = vmatmul.mubr.f32.gmra.mxu0 %v1587
    %v1657 = vpop.f32.mrf.mxu0
    %v1658 = vadd.f32 0.0, %v1657
    %v1659 = vpop.f32.mrf.mxu0
    %v1660 = vadd.f32 0.0, %v1659
    %1661 = vdwg.mxu0
    %1662 = vmatprep.subr.mxu0 %v639
    %1663 = vmatpush1.msra.mxu0 %v638
    %1664 = vmatprep.subr.mxu0 %v633
    %1665 = vmatpush1.msra.mxu0 %v632
    %1666 = vmatprep.subr.mxu0 %v627
    %1667 = vmatpush1.msra.mxu0 %v626
    %1668 = vmatprep.subr.mxu0 %v621
    %1669 = vmatpush1.msra.mxu0 %v620
    %1670 = vmatprep.subr.mxu0 %v615
    %1671 = vmatpush1.msra.mxu0 %v614
    %1672 = vmatprep.subr.mxu0 %v609
    %1673 = vmatpush1.msra.mxu0 %v608
    %1674 = vmatprep.subr.mxu0 %v603
    %1675 = vmatpush1.msra.mxu0 %v602
    %1676 = vmatprep.subr.mxu0 %v597
    %1677 = vmatpush1.msra.mxu0 %v596
    %1678 = vmatprep.subr.mxu0 %v591
    %1679 = vmatpush1.msra.mxu0 %v590
    %1680 = vmatprep.subr.mxu0 %v585
    %1681 = vmatpush1.msra.mxu0 %v584
    %1682 = vmatprep.subr.mxu0 %v579
    %1683 = vmatpush1.msra.mxu0 %v578
    %1684 = vmatprep.subr.mxu0 %v573
    %1685 = vmatpush1.msra.mxu0 %v572
    %1686 = vmatprep.subr.mxu0 %v567
    %1687 = vmatpush1.msra.mxu0 %v566
    %1688 = vmatprep.subr.mxu0 %v561
    %1689 = vmatpush1.msra.mxu0 %v560
    %1690 = vmatprep.subr.mxu0 %v555
    %1691 = vmatpush1.msra.mxu0 %v554
    %1692 = vmatprep.subr.mxu0 %v549
    %1693 = vmatpush1.msra.mxu0 %v548
    %1694 = vmatprep.subr.mxu0 %v735
    %1695 = vmatpush2.msra.mxu0 %v734
    %1696 = vmatprep.subr.mxu0 %v729
    %1697 = vmatpush2.msra.mxu0 %v728
    %1698 = vmatprep.subr.mxu0 %v723
    %1699 = vmatpush2.msra.mxu0 %v722
    %1700 = vmatprep.subr.mxu0 %v717
    %1701 = vmatpush2.msra.mxu0 %v716
    %1702 = vmatprep.subr.mxu0 %v711
    %1703 = vmatpush2.msra.mxu0 %v710
    %1704 = vmatprep.subr.mxu0 %v705
    %1705 = vmatpush2.msra.mxu0 %v704
    %1706 = vmatprep.subr.mxu0 %v699
    %1707 = vmatpush2.msra.mxu0 %v698
    %1708 = vmatprep.subr.mxu0 %v693
    %1709 = vmatpush2.msra.mxu0 %v692
    %1710 = vmatprep.subr.mxu0 %v687
    %1711 = vmatpush2.msra.mxu0 %v686
    %1712 = vmatprep.subr.mxu0 %v681
    %1713 = vmatpush2.msra.mxu0 %v680
    %1714 = vmatprep.subr.mxu0 %v675
    %1715 = vmatpush2.msra.mxu0 %v674
    %1716 = vmatprep.subr.mxu0 %v669
    %1717 = vmatpush2.msra.mxu0 %v668
    %1718 = vmatprep.subr.mxu0 %v663
    %1719 = vmatpush2.msra.mxu0 %v662
    %1720 = vmatprep.subr.mxu0 %v657
    %1721 = vmatpush2.msra.mxu0 %v656
    %1722 = vmatprep.subr.mxu0 %v651
    %1723 = vmatpush2.msra.mxu0 %v650
    %1724 = vmatprep.subr.mxu0 %v645
    %1725 = vmatpush2.msra.mxu0 %v644
    %1726 = vmatprep.mubr.f32.mxu0 %v1588
    %1727 = vmatmul.mubr.f32.gmra.mxu0 %v1587
    %v1728 = vpop.f32.mrf.mxu0
    %v1729 = vadd.f32 0.0, %v1728
    %v1730 = vpop.f32.mrf.mxu0
    %v1731 = vadd.f32 0.0, %v1730
    %1732 = vdwg.mxu0
    %1733 = vmatprep.subr.mxu0 %v641
    %1734 = vmatpush1.msra.mxu0 %v640
    %1735 = vmatprep.subr.mxu0 %v635
    %1736 = vmatpush1.msra.mxu0 %v634
    %1737 = vmatprep.subr.mxu0 %v629
    %1738 = vmatpush1.msra.mxu0 %v628
    %1739 = vmatprep.subr.mxu0 %v623
    %1740 = vmatpush1.msra.mxu0 %v622
    %1741 = vmatprep.subr.mxu0 %v617
    %1742 = vmatpush1.msra.mxu0 %v616
    %1743 = vmatprep.subr.mxu0 %v611
    %1744 = vmatpush1.msra.mxu0 %v610
    %1745 = vmatprep.subr.mxu0 %v605
    %1746 = vmatpush1.msra.mxu0 %v604
    %1747 = vmatprep.subr.mxu0 %v599
    %1748 = vmatpush1.msra.mxu0 %v598
    %1749 = vmatprep.subr.mxu0 %v593
    %1750 = vmatpush1.msra.mxu0 %v592
    %1751 = vmatprep.subr.mxu0 %v587
    %1752 = vmatpush1.msra.mxu0 %v586
    %1753 = vmatprep.subr.mxu0 %v581
    %1754 = vmatpush1.msra.mxu0 %v580
    %1755 = vmatprep.subr.mxu0 %v575
    %1756 = vmatpush1.msra.mxu0 %v574
    %1757 = vmatprep.subr.mxu0 %v569
    %1758 = vmatpush1.msra.mxu0 %v568
    %1759 = vmatprep.subr.mxu0 %v563
    %1760 = vmatpush1.msra.mxu0 %v562
    %1761 = vmatprep.subr.mxu0 %v557
    %1762 = vmatpush1.msra.mxu0 %v556
    %1763 = vmatprep.subr.mxu0 %v551
    %1764 = vmatpush1.msra.mxu0 %v550
    %1765 = vmatprep.subr.mxu0 %v737
    %1766 = vmatpush2.msra.mxu0 %v736
    %1767 = vmatprep.subr.mxu0 %v731
    %1768 = vmatpush2.msra.mxu0 %v730
    %1769 = vmatprep.subr.mxu0 %v725
    %1770 = vmatpush2.msra.mxu0 %v724
    %1771 = vmatprep.subr.mxu0 %v719
    %1772 = vmatpush2.msra.mxu0 %v718
    %1773 = vmatprep.subr.mxu0 %v713
    %1774 = vmatpush2.msra.mxu0 %v712
    %1775 = vmatprep.subr.mxu0 %v707
    %1776 = vmatpush2.msra.mxu0 %v706
    %1777 = vmatprep.subr.mxu0 %v701
    %1778 = vmatpush2.msra.mxu0 %v700
    %1779 = vmatprep.subr.mxu0 %v695
    %1780 = vmatpush2.msra.mxu0 %v694
    %1781 = vmatprep.subr.mxu0 %v689
    %1782 = vmatpush2.msra.mxu0 %v688
    %1783 = vmatprep.subr.mxu0 %v683
    %1784 = vmatpush2.msra.mxu0 %v682
    %1785 = vmatprep.subr.mxu0 %v677
    %1786 = vmatpush2.msra.mxu0 %v676
    %1787 = vmatprep.subr.mxu0 %v671
    %1788 = vmatpush2.msra.mxu0 %v670
    %1789 = vmatprep.subr.mxu0 %v665
    %1790 = vmatpush2.msra.mxu0 %v664
    %1791 = vmatprep.subr.mxu0 %v659
    %1792 = vmatpush2.msra.mxu0 %v658
    %1793 = vmatprep.subr.mxu0 %v653
    %1794 = vmatpush2.msra.mxu0 %v652
    %1795 = vmatprep.subr.mxu0 %v647
    %1796 = vmatpush2.msra.mxu0 %v646
    %1797 = vmatprep.mubr.f32.mxu0 %v1588
    %1798 = vmatmul.mubr.f32.gmra.mxu0 %v1587
    %v1799 = vpop.f32.mrf.mxu0
    %v1800 = vadd.f32 0.0, %v1799
    %v1801 = vpop.f32.mrf.mxu0
    %v1802 = vadd.f32 0.0, %v1801
    %1803 = vdwg.mxu0
    %v1806 = vrot.slane %v1658, 5
    %v1807 = vrot.slane %v1660, 5
    %v1810 = vadd.f32 %v382, %v1806
    %v1811 = vadd.f32 %v384, %v1807
    %v1812 = vxor.u32 %v1810, 2147483648
    %v1813 = vxor.u32 %v1811, 2147483648
    %v1814 = vmul.f32 %v1812, 1.442695
    %v1815 = vpow.pop %v1814
    %v1816 = vmul.f32 %v1813, 1.442695
    %v1817 = vpow.pop %v1816
    %v1818 = vadd.f32 %v1815, 1.0
    %v1819 = vadd.f32 %v1817, 1.0
    %v1820 = vrcp.pop %v1818
    %v1821 = vmul.f32 1.0, %v1820
    %v1822 = vrcp.pop %v1819
    %v1823 = vmul.f32 1.0, %v1822
    %v1826 = vrot.slane %v1729, 5
    %v1827 = vrot.slane %v1731, 5
    %v1830 = vadd.f32 %v459, %v1826
    %v1831 = vadd.f32 %v461, %v1827
    %v1832 = vxor.u32 %v1830, 2147483648
    %v1833 = vxor.u32 %v1831, 2147483648
    %v1834 = vmul.f32 %v1832, 1.442695
    %v1835 = vpow.pop %v1834
    %v1836 = vmul.f32 %v1833, 1.442695
    %v1837 = vpow.pop %v1836
    %v1838 = vadd.f32 %v1835, 1.0
    %v1839 = vadd.f32 %v1837, 1.0
    %v1840 = vrcp.pop %v1838
    %v1841 = vmul.f32 1.0, %v1840
    %v1842 = vrcp.pop %v1839
    %v1843 = vmul.f32 1.0, %v1842
    %v1844 = vadd.f32 %v1800, %v996
    %v1845 = vadd.f32 %v1802, %v1000
    %v1848 = vrot.slane %v1844, 5
    %v1849 = vrot.slane %v1845, 5
    %v1852 = vmul.f32 %v1821, %v1848
    %v1853 = vmul.f32 %v1823, %v1849
    %v1854 = vadd.f32 %v536, %v1852
    %v1855 = vadd.f32 %v538, %v1853
    %v1856 = vtanh.pop %v1854
    %v1857 = vtanh.pop %v1855
    %v1858 = vsub.f32 1.0, %v1841
    %v1859 = vsub.f32 1.0, %v1843
    %v1860 = vmul.f32 %v1858, %v1856
    %v1861 = vmul.f32 %v1859, %v1857
    %v1862 = vrot.slane %v1583, 7
    %v1863 = vrot.slane %v1584, 7
    %v1866 = vmul.f32 %v1841, %v1862
    %v1867 = vmul.f32 %v1843, %v1863
    %v1868 = vadd.f32 %v1860, %v1866
    %v1869 = vadd.f32 %v1861, %v1867
    %v1872 = vrot.slane %v1868, 3
    %v1873 = vrot.slane %v1869, 3
    %1876 = vmatprep.subr.mxu0 %v637
    %1877 = vmatpush1.msra.mxu0 %v636
    %1878 = vmatprep.subr.mxu0 %v631
    %1879 = vmatpush1.msra.mxu0 %v630
    %1880 = vmatprep.subr.mxu0 %v625
    %1881 = vmatpush1.msra.mxu0 %v624
    %1882 = vmatprep.subr.mxu0 %v619
    %1883 = vmatpush1.msra.mxu0 %v618
    %1884 = vmatprep.subr.mxu0 %v613
    %1885 = vmatpush1.msra.mxu0 %v612
    %1886 = vmatprep.subr.mxu0 %v607
    %1887 = vmatpush1.msra.mxu0 %v606
    %1888 = vmatprep.subr.mxu0 %v601
    %1889 = vmatpush1.msra.mxu0 %v600
    %1890 = vmatprep.subr.mxu0 %v595
    %1891 = vmatpush1.msra.mxu0 %v594
    %1892 = vmatprep.subr.mxu0 %v589
    %1893 = vmatpush1.msra.mxu0 %v588
    %1894 = vmatprep.subr.mxu0 %v583
    %1895 = vmatpush1.msra.mxu0 %v582
    %1896 = vmatprep.subr.mxu0 %v577
    %1897 = vmatpush1.msra.mxu0 %v576
    %1898 = vmatprep.subr.mxu0 %v571
    %1899 = vmatpush1.msra.mxu0 %v570
    %1900 = vmatprep.subr.mxu0 %v565
    %1901 = vmatpush1.msra.mxu0 %v564
    %1902 = vmatprep.subr.mxu0 %v559
    %1903 = vmatpush1.msra.mxu0 %v558
    %1904 = vmatprep.subr.mxu0 %v553
    %1905 = vmatpush1.msra.mxu0 %v552
    %1906 = vmatprep.subr.mxu0 %v547
    %1907 = vmatpush1.msra.mxu0 %v546
    %1908 = vmatprep.subr.mxu0 %v733
    %1909 = vmatpush2.msra.mxu0 %v732
    %1910 = vmatprep.subr.mxu0 %v727
    %1911 = vmatpush2.msra.mxu0 %v726
    %1912 = vmatprep.subr.mxu0 %v721
    %1913 = vmatpush2.msra.mxu0 %v720
    %1914 = vmatprep.subr.mxu0 %v715
    %1915 = vmatpush2.msra.mxu0 %v714
    %1916 = vmatprep.subr.mxu0 %v709
    %1917 = vmatpush2.msra.mxu0 %v708
    %1918 = vmatprep.subr.mxu0 %v703
    %1919 = vmatpush2.msra.mxu0 %v702
    %1920 = vmatprep.subr.mxu0 %v697
    %1921 = vmatpush2.msra.mxu0 %v696
    %1922 = vmatprep.subr.mxu0 %v691
    %1923 = vmatpush2.msra.mxu0 %v690
    %1924 = vmatprep.subr.mxu0 %v685
    %1925 = vmatpush2.msra.mxu0 %v684
    %1926 = vmatprep.subr.mxu0 %v679
    %1927 = vmatpush2.msra.mxu0 %v678
    %1928 = vmatprep.subr.mxu0 %v673
    %1929 = vmatpush2.msra.mxu0 %v672
    %1930 = vmatprep.subr.mxu0 %v667
    %1931 = vmatpush2.msra.mxu0 %v666
    %1932 = vmatprep.subr.mxu0 %v661
    %1933 = vmatpush2.msra.mxu0 %v660
    %1934 = vmatprep.subr.mxu0 %v655
    %1935 = vmatpush2.msra.mxu0 %v654
    %1936 = vmatprep.subr.mxu0 %v649
    %1937 = vmatpush2.msra.mxu0 %v648
    %1938 = vmatprep.subr.mxu0 %v643
    %1939 = vmatpush2.msra.mxu0 %v642
    %1940 = vmatprep.mubr.f32.mxu0 %v1873
    %1941 = vmatmul.mubr.f32.gmra.mxu0 %v1872
    %v1942 = vpop.f32.mrf.mxu0
    %v1943 = vadd.f32 0.0, %v1942
    %v1944 = vpop.f32.mrf.mxu0
    %v1945 = vadd.f32 0.0, %v1944
    %1946 = vdwg.mxu0
    %1947 = vmatprep.subr.mxu0 %v639
    %1948 = vmatpush1.msra.mxu0 %v638
    %1949 = vmatprep.subr.mxu0 %v633
    %1950 = vmatpush1.msra.mxu0 %v632
    %1951 = vmatprep.subr.mxu0 %v627
    %1952 = vmatpush1.msra.mxu0 %v626
    %1953 = vmatprep.subr.mxu0 %v621
    %1954 = vmatpush1.msra.mxu0 %v620
    %1955 = vmatprep.subr.mxu0 %v615
    %1956 = vmatpush1.msra.mxu0 %v614
    %1957 = vmatprep.subr.mxu0 %v609
    %1958 = vmatpush1.msra.mxu0 %v608
    %1959 = vmatprep.subr.mxu0 %v603
    %1960 = vmatpush1.msra.mxu0 %v602
    %1961 = vmatprep.subr.mxu0 %v597
    %1962 = vmatpush1.msra.mxu0 %v596
    %1963 = vmatprep.subr.mxu0 %v591
    %1964 = vmatpush1.msra.mxu0 %v590
    %1965 = vmatprep.subr.mxu0 %v585
    %1966 = vmatpush1.msra.mxu0 %v584
    %1967 = vmatprep.subr.mxu0 %v579
    %1968 = vmatpush1.msra.mxu0 %v578
    %1969 = vmatprep.subr.mxu0 %v573
    %1970 = vmatpush1.msra.mxu0 %v572
    %1971 = vmatprep.subr.mxu0 %v567
    %1972 = vmatpush1.msra.mxu0 %v566
    %1973 = vmatprep.subr.mxu0 %v561
    %1974 = vmatpush1.msra.mxu0 %v560
    %1975 = vmatprep.subr.mxu0 %v555
    %1976 = vmatpush1.msra.mxu0 %v554
    %1977 = vmatprep.subr.mxu0 %v549
    %1978 = vmatpush1.msra.mxu0 %v548
    %1979 = vmatprep.subr.mxu0 %v735
    %1980 = vmatpush2.msra.mxu0 %v734
    %1981 = vmatprep.subr.mxu0 %v729
    %1982 = vmatpush2.msra.mxu0 %v728
    %1983 = vmatprep.subr.mxu0 %v723
    %1984 = vmatpush2.msra.mxu0 %v722
    %1985 = vmatprep.subr.mxu0 %v717
    %1986 = vmatpush2.msra.mxu0 %v716
    %1987 = vmatprep.subr.mxu0 %v711
    %1988 = vmatpush2.msra.mxu0 %v710
    %1989 = vmatprep.subr.mxu0 %v705
    %1990 = vmatpush2.msra.mxu0 %v704
    %1991 = vmatprep.subr.mxu0 %v699
    %1992 = vmatpush2.msra.mxu0 %v698
    %1993 = vmatprep.subr.mxu0 %v693
    %1994 = vmatpush2.msra.mxu0 %v692
    %1995 = vmatprep.subr.mxu0 %v687
    %1996 = vmatpush2.msra.mxu0 %v686
    %1997 = vmatprep.subr.mxu0 %v681
    %1998 = vmatpush2.msra.mxu0 %v680
    %1999 = vmatprep.subr.mxu0 %v675
    %2000 = vmatpush2.msra.mxu0 %v674
    %2001 = vmatprep.subr.mxu0 %v669
    %2002 = vmatpush2.msra.mxu0 %v668
    %2003 = vmatprep.subr.mxu0 %v663
    %2004 = vmatpush2.msra.mxu0 %v662
    %2005 = vmatprep.subr.mxu0 %v657
    %2006 = vmatpush2.msra.mxu0 %v656
    %2007 = vmatprep.subr.mxu0 %v651
    %2008 = vmatpush2.msra.mxu0 %v650
    %2009 = vmatprep.subr.mxu0 %v645
    %2010 = vmatpush2.msra.mxu0 %v644
    %2011 = vmatprep.mubr.f32.mxu0 %v1873
    %2012 = vmatmul.mubr.f32.gmra.mxu0 %v1872
    %v2013 = vpop.f32.mrf.mxu0
    %v2014 = vadd.f32 0.0, %v2013
    %v2015 = vpop.f32.mrf.mxu0
    %v2016 = vadd.f32 0.0, %v2015
    %2017 = vdwg.mxu0
    %2018 = vmatprep.subr.mxu0 %v641
    %2019 = vmatpush1.msra.mxu0 %v640
    %2020 = vmatprep.subr.mxu0 %v635
    %2021 = vmatpush1.msra.mxu0 %v634
    %2022 = vmatprep.subr.mxu0 %v629
    %2023 = vmatpush1.msra.mxu0 %v628
    %2024 = vmatprep.subr.mxu0 %v623
    %2025 = vmatpush1.msra.mxu0 %v622
    %2026 = vmatprep.subr.mxu0 %v617
    %2027 = vmatpush1.msra.mxu0 %v616
    %2028 = vmatprep.subr.mxu0 %v611
    %2029 = vmatpush1.msra.mxu0 %v610
    %2030 = vmatprep.subr.mxu0 %v605
    %2031 = vmatpush1.msra.mxu0 %v604
    %2032 = vmatprep.subr.mxu0 %v599
    %2033 = vmatpush1.msra.mxu0 %v598
    %2034 = vmatprep.subr.mxu0 %v593
    %2035 = vmatpush1.msra.mxu0 %v592
    %2036 = vmatprep.subr.mxu0 %v587
    %2037 = vmatpush1.msra.mxu0 %v586
    %2038 = vmatprep.subr.mxu0 %v581
    %2039 = vmatpush1.msra.mxu0 %v580
    %2040 = vmatprep.subr.mxu0 %v575
    %2041 = vmatpush1.msra.mxu0 %v574
    %2042 = vmatprep.subr.mxu0 %v569
    %2043 = vmatpush1.msra.mxu0 %v568
    %2044 = vmatprep.subr.mxu0 %v563
    %2045 = vmatpush1.msra.mxu0 %v562
    %2046 = vmatprep.subr.mxu0 %v557
    %2047 = vmatpush1.msra.mxu0 %v556
    %2048 = vmatprep.subr.mxu0 %v551
    %2049 = vmatpush1.msra.mxu0 %v550
    %2050 = vmatprep.subr.mxu0 %v737
    %2051 = vmatpush2.msra.mxu0 %v736
    %2052 = vmatprep.subr.mxu0 %v731
    %2053 = vmatpush2.msra.mxu0 %v730
    %2054 = vmatprep.subr.mxu0 %v725
    %2055 = vmatpush2.msra.mxu0 %v724
    %2056 = vmatprep.subr.mxu0 %v719
    %2057 = vmatpush2.msra.mxu0 %v718
    %2058 = vmatprep.subr.mxu0 %v713
    %2059 = vmatpush2.msra.mxu0 %v712
    %2060 = vmatprep.subr.mxu0 %v707
    %2061 = vmatpush2.msra.mxu0 %v706
    %2062 = vmatprep.subr.mxu0 %v701
    %2063 = vmatpush2.msra.mxu0 %v700
    %2064 = vmatprep.subr.mxu0 %v695
    %2065 = vmatpush2.msra.mxu0 %v694
    %2066 = vmatprep.subr.mxu0 %v689
    %2067 = vmatpush2.msra.mxu0 %v688
    %2068 = vmatprep.subr.mxu0 %v683
    %2069 = vmatpush2.msra.mxu0 %v682
    %2070 = vmatprep.subr.mxu0 %v677
    %2071 = vmatpush2.msra.mxu0 %v676
    %2072 = vmatprep.subr.mxu0 %v671
    %2073 = vmatpush2.msra.mxu0 %v670
    %2074 = vmatprep.subr.mxu0 %v665
    %2075 = vmatpush2.msra.mxu0 %v664
    %2076 = vmatprep.subr.mxu0 %v659
    %2077 = vmatpush2.msra.mxu0 %v658
    %2078 = vmatprep.subr.mxu0 %v653
    %2079 = vmatpush2.msra.mxu0 %v652
    %2080 = vmatprep.subr.mxu0 %v647
    %2081 = vmatpush2.msra.mxu0 %v646
    %2082 = vmatprep.mubr.f32.mxu0 %v1873
    %2083 = vmatmul.mubr.f32.gmra.mxu0 %v1872
    %v2084 = vpop.f32.mrf.mxu0
    %v2085 = vadd.f32 0.0, %v2084
    %v2086 = vpop.f32.mrf.mxu0
    %v2087 = vadd.f32 0.0, %v2086
    %2088 = vdwg.mxu0
    %v2091 = vrot.slane %v1943, 4
    %v2092 = vrot.slane %v1945, 4
    %v2095 = vadd.f32 %v382, %v2091
    %v2096 = vadd.f32 %v384, %v2092
    %v2097 = vxor.u32 %v2095, 2147483648
    %v2098 = vxor.u32 %v2096, 2147483648
    %v2099 = vmul.f32 %v2097, 1.442695
    %v2100 = vpow.pop %v2099
    %v2101 = vmul.f32 %v2098, 1.442695
    %v2102 = vpow.pop %v2101
    %v2103 = vadd.f32 %v2100, 1.0
    %v2104 = vadd.f32 %v2102, 1.0
    %v2105 = vrcp.pop %v2103
    %v2106 = vmul.f32 1.0, %v2105
    %v2107 = vrcp.pop %v2104
    %v2108 = vmul.f32 1.0, %v2107
    %v2111 = vrot.slane %v2014, 4
    %v2112 = vrot.slane %v2016, 4
    %v2115 = vadd.f32 %v459, %v2111
    %v2116 = vadd.f32 %v461, %v2112
    %v2117 = vxor.u32 %v2115, 2147483648
    %v2118 = vxor.u32 %v2116, 2147483648
    %v2119 = vmul.f32 %v2117, 1.442695
    %v2120 = vpow.pop %v2119
    %v2121 = vmul.f32 %v2118, 1.442695
    %v2122 = vpow.pop %v2121
    %v2123 = vadd.f32 %v2120, 1.0
    %v2124 = vadd.f32 %v2122, 1.0
    %v2125 = vrcp.pop %v2123
    %v2126 = vmul.f32 1.0, %v2125
    %v2127 = vrcp.pop %v2124
    %v2128 = vmul.f32 1.0, %v2127
    %v2129 = vadd.f32 %v2085, %v996
    %v2130 = vadd.f32 %v2087, %v1000
    %v2133 = vrot.slane %v2129, 4
    %v2134 = vrot.slane %v2130, 4
    %v2137 = vmul.f32 %v2106, %v2133
    %v2138 = vmul.f32 %v2108, %v2134
    %v2139 = vadd.f32 %v536, %v2137
    %v2140 = vadd.f32 %v538, %v2138
    %v2141 = vtanh.pop %v2139
    %v2142 = vtanh.pop %v2140
    %v2143 = vsub.f32 1.0, %v2126
    %v2144 = vsub.f32 1.0, %v2128
    %v2145 = vmul.f32 %v2143, %v2141
    %v2146 = vmul.f32 %v2144, %v2142
    %v2147 = vrot.slane %v1868, 7
    %v2148 = vrot.slane %v1869, 7
    %v2151 = vmul.f32 %v2126, %v2147
    %v2152 = vmul.f32 %v2128, %v2148
    %v2153 = vadd.f32 %v2145, %v2151
    %v2154 = vadd.f32 %v2146, %v2152
    %v2157 = vrot.slane %v2153, 4
    %v2158 = vrot.slane %v2154, 4
    %2161 = vmatprep.subr.mxu0 %v637
    %2162 = vmatpush1.msra.mxu0 %v636
    %2163 = vmatprep.subr.mxu0 %v631
    %2164 = vmatpush1.msra.mxu0 %v630
    %2165 = vmatprep.subr.mxu0 %v625
    %2166 = vmatpush1.msra.mxu0 %v624
    %2167 = vmatprep.subr.mxu0 %v619
    %2168 = vmatpush1.msra.mxu0 %v618
    %2169 = vmatprep.subr.mxu0 %v613
    %2170 = vmatpush1.msra.mxu0 %v612
    %2171 = vmatprep.subr.mxu0 %v607
    %2172 = vmatpush1.msra.mxu0 %v606
    %2173 = vmatprep.subr.mxu0 %v601
    %2174 = vmatpush1.msra.mxu0 %v600
    %2175 = vmatprep.subr.mxu0 %v595
    %2176 = vmatpush1.msra.mxu0 %v594
    %2177 = vmatprep.subr.mxu0 %v589
    %2178 = vmatpush1.msra.mxu0 %v588
    %2179 = vmatprep.subr.mxu0 %v583
    %2180 = vmatpush1.msra.mxu0 %v582
    %2181 = vmatprep.subr.mxu0 %v577
    %2182 = vmatpush1.msra.mxu0 %v576
    %2183 = vmatprep.subr.mxu0 %v571
    %2184 = vmatpush1.msra.mxu0 %v570
    %2185 = vmatprep.subr.mxu0 %v565
    %2186 = vmatpush1.msra.mxu0 %v564
    %2187 = vmatprep.subr.mxu0 %v559
    %2188 = vmatpush1.msra.mxu0 %v558
    %2189 = vmatprep.subr.mxu0 %v553
    %2190 = vmatpush1.msra.mxu0 %v552
    %2191 = vmatprep.subr.mxu0 %v547
    %2192 = vmatpush1.msra.mxu0 %v546
    %2193 = vmatprep.subr.mxu0 %v733
    %2194 = vmatpush2.msra.mxu0 %v732
    %2195 = vmatprep.subr.mxu0 %v727
    %2196 = vmatpush2.msra.mxu0 %v726
    %2197 = vmatprep.subr.mxu0 %v721
    %2198 = vmatpush2.msra.mxu0 %v720
    %2199 = vmatprep.subr.mxu0 %v715
    %2200 = vmatpush2.msra.mxu0 %v714
    %2201 = vmatprep.subr.mxu0 %v709
    %2202 = vmatpush2.msra.mxu0 %v708
    %2203 = vmatprep.subr.mxu0 %v703
    %2204 = vmatpush2.msra.mxu0 %v702
    %2205 = vmatprep.subr.mxu0 %v697
    %2206 = vmatpush2.msra.mxu0 %v696
    %2207 = vmatprep.subr.mxu0 %v691
    %2208 = vmatpush2.msra.mxu0 %v690
    %2209 = vmatprep.subr.mxu0 %v685
    %2210 = vmatpush2.msra.mxu0 %v684
    %2211 = vmatprep.subr.mxu0 %v679
    %2212 = vmatpush2.msra.mxu0 %v678
    %2213 = vmatprep.subr.mxu0 %v673
    %2214 = vmatpush2.msra.mxu0 %v672
    %2215 = vmatprep.subr.mxu0 %v667
    %2216 = vmatpush2.msra.mxu0 %v666
    %2217 = vmatprep.subr.mxu0 %v661
    %2218 = vmatpush2.msra.mxu0 %v660
    %2219 = vmatprep.subr.mxu0 %v655
    %2220 = vmatpush2.msra.mxu0 %v654
    %2221 = vmatprep.subr.mxu0 %v649
    %2222 = vmatpush2.msra.mxu0 %v648
    %2223 = vmatprep.subr.mxu0 %v643
    %2224 = vmatpush2.msra.mxu0 %v642
    %2225 = vmatprep.mubr.f32.mxu0 %v2158
    %2226 = vmatmul.mubr.f32.gmra.mxu0 %v2157
    %v2227 = vpop.f32.mrf.mxu0
    %v2228 = vadd.f32 0.0, %v2227
    %v2229 = vpop.f32.mrf.mxu0
    %v2230 = vadd.f32 0.0, %v2229
    %2231 = vdwg.mxu0
    %2232 = vmatprep.subr.mxu0 %v639
    %2233 = vmatpush1.msra.mxu0 %v638
    %2234 = vmatprep.subr.mxu0 %v633
    %2235 = vmatpush1.msra.mxu0 %v632
    %2236 = vmatprep.subr.mxu0 %v627
    %2237 = vmatpush1.msra.mxu0 %v626
    %2238 = vmatprep.subr.mxu0 %v621
    %2239 = vmatpush1.msra.mxu0 %v620
    %2240 = vmatprep.subr.mxu0 %v615
    %2241 = vmatpush1.msra.mxu0 %v614
    %2242 = vmatprep.subr.mxu0 %v609
    %2243 = vmatpush1.msra.mxu0 %v608
    %2244 = vmatprep.subr.mxu0 %v603
    %2245 = vmatpush1.msra.mxu0 %v602
    %2246 = vmatprep.subr.mxu0 %v597
    %2247 = vmatpush1.msra.mxu0 %v596
    %2248 = vmatprep.subr.mxu0 %v591
    %2249 = vmatpush1.msra.mxu0 %v590
    %2250 = vmatprep.subr.mxu0 %v585
    %2251 = vmatpush1.msra.mxu0 %v584
    %2252 = vmatprep.subr.mxu0 %v579
    %2253 = vmatpush1.msra.mxu0 %v578
    %2254 = vmatprep.subr.mxu0 %v573
    %2255 = vmatpush1.msra.mxu0 %v572
    %2256 = vmatprep.subr.mxu0 %v567
    %2257 = vmatpush1.msra.mxu0 %v566
    %2258 = vmatprep.subr.mxu0 %v561
    %2259 = vmatpush1.msra.mxu0 %v560
    %2260 = vmatprep.subr.mxu0 %v555
    %2261 = vmatpush1.msra.mxu0 %v554
    %2262 = vmatprep.subr.mxu0 %v549
    %2263 = vmatpush1.msra.mxu0 %v548
    %2264 = vmatprep.subr.mxu0 %v735
    %2265 = vmatpush2.msra.mxu0 %v734
    %2266 = vmatprep.subr.mxu0 %v729
    %2267 = vmatpush2.msra.mxu0 %v728
    %2268 = vmatprep.subr.mxu0 %v723
    %2269 = vmatpush2.msra.mxu0 %v722
    %2270 = vmatprep.subr.mxu0 %v717
    %2271 = vmatpush2.msra.mxu0 %v716
    %2272 = vmatprep.subr.mxu0 %v711
    %2273 = vmatpush2.msra.mxu0 %v710
    %2274 = vmatprep.subr.mxu0 %v705
    %2275 = vmatpush2.msra.mxu0 %v704
    %2276 = vmatprep.subr.mxu0 %v699
    %2277 = vmatpush2.msra.mxu0 %v698
    %2278 = vmatprep.subr.mxu0 %v693
    %2279 = vmatpush2.msra.mxu0 %v692
    %2280 = vmatprep.subr.mxu0 %v687
    %2281 = vmatpush2.msra.mxu0 %v686
    %2282 = vmatprep.subr.mxu0 %v681
    %2283 = vmatpush2.msra.mxu0 %v680
    %2284 = vmatprep.subr.mxu0 %v675
    %2285 = vmatpush2.msra.mxu0 %v674
    %2286 = vmatprep.subr.mxu0 %v669
    %2287 = vmatpush2.msra.mxu0 %v668
    %2288 = vmatprep.subr.mxu0 %v663
    %2289 = vmatpush2.msra.mxu0 %v662
    %2290 = vmatprep.subr.mxu0 %v657
    %2291 = vmatpush2.msra.mxu0 %v656
    %2292 = vmatprep.subr.mxu0 %v651
    %2293 = vmatpush2.msra.mxu0 %v650
    %2294 = vmatprep.subr.mxu0 %v645
    %2295 = vmatpush2.msra.mxu0 %v644
    %2296 = vmatprep.mubr.f32.mxu0 %v2158
    %2297 = vmatmul.mubr.f32.gmra.mxu0 %v2157
    %v2298 = vpop.f32.mrf.mxu0
    %v2299 = vadd.f32 0.0, %v2298
    %v2300 = vpop.f32.mrf.mxu0
    %v2301 = vadd.f32 0.0, %v2300
    %2302 = vdwg.mxu0
    %2303 = vmatprep.subr.mxu0 %v641
    %2304 = vmatpush1.msra.mxu0 %v640
    %2305 = vmatprep.subr.mxu0 %v635
    %2306 = vmatpush1.msra.mxu0 %v634
    %2307 = vmatprep.subr.mxu0 %v629
    %2308 = vmatpush1.msra.mxu0 %v628
    %2309 = vmatprep.subr.mxu0 %v623
    %2310 = vmatpush1.msra.mxu0 %v622
    %2311 = vmatprep.subr.mxu0 %v617
    %2312 = vmatpush1.msra.mxu0 %v616
    %2313 = vmatprep.subr.mxu0 %v611
    %2314 = vmatpush1.msra.mxu0 %v610
    %2315 = vmatprep.subr.mxu0 %v605
    %2316 = vmatpush1.msra.mxu0 %v604
    %2317 = vmatprep.subr.mxu0 %v599
    %2318 = vmatpush1.msra.mxu0 %v598
    %2319 = vmatprep.subr.mxu0 %v593
    %2320 = vmatpush1.msra.mxu0 %v592
    %2321 = vmatprep.subr.mxu0 %v587
    %2322 = vmatpush1.msra.mxu0 %v586
    %2323 = vmatprep.subr.mxu0 %v581
    %2324 = vmatpush1.msra.mxu0 %v580
    %2325 = vmatprep.subr.mxu0 %v575
    %2326 = vmatpush1.msra.mxu0 %v574
    %2327 = vmatprep.subr.mxu0 %v569
    %2328 = vmatpush1.msra.mxu0 %v568
    %2329 = vmatprep.subr.mxu0 %v563
    %2330 = vmatpush1.msra.mxu0 %v562
    %2331 = vmatprep.subr.mxu0 %v557
    %2332 = vmatpush1.msra.mxu0 %v556
    %2333 = vmatprep.subr.mxu0 %v551
    %2334 = vmatpush1.msra.mxu0 %v550
    %2335 = vmatprep.subr.mxu0 %v737
    %2336 = vmatpush2.msra.mxu0 %v736
    %2337 = vmatprep.subr.mxu0 %v731
    %2338 = vmatpush2.msra.mxu0 %v730
    %2339 = vmatprep.subr.mxu0 %v725
    %2340 = vmatpush2.msra.mxu0 %v724
    %2341 = vmatprep.subr.mxu0 %v719
    %2342 = vmatpush2.msra.mxu0 %v718
    %2343 = vmatprep.subr.mxu0 %v713
    %2344 = vmatpush2.msra.mxu0 %v712
    %2345 = vmatprep.subr.mxu0 %v707
    %2346 = vmatpush2.msra.mxu0 %v706
    %2347 = vmatprep.subr.mxu0 %v701
    %2348 = vmatpush2.msra.mxu0 %v700
    %2349 = vmatprep.subr.mxu0 %v695
    %2350 = vmatpush2.msra.mxu0 %v694
    %2351 = vmatprep.subr.mxu0 %v689
    %2352 = vmatpush2.msra.mxu0 %v688
    %2353 = vmatprep.subr.mxu0 %v683
    %2354 = vmatpush2.msra.mxu0 %v682
    %2355 = vmatprep.subr.mxu0 %v677
    %2356 = vmatpush2.msra.mxu0 %v676
    %2357 = vmatprep.subr.mxu0 %v671
    %2358 = vmatpush2.msra.mxu0 %v670
    %2359 = vmatprep.subr.mxu0 %v665
    %2360 = vmatpush2.msra.mxu0 %v664
    %2361 = vmatprep.subr.mxu0 %v659
    %2362 = vmatpush2.msra.mxu0 %v658
    %2363 = vmatprep.subr.mxu0 %v653
    %2364 = vmatpush2.msra.mxu0 %v652
    %2365 = vmatprep.subr.mxu0 %v647
    %2366 = vmatpush2.msra.mxu0 %v646
    %2367 = vmatprep.mubr.f32.mxu0 %v2158
    %2368 = vmatmul.mubr.f32.gmra.mxu0 %v2157
    %v2369 = vpop.f32.mrf.mxu0
    %v2370 = vadd.f32 0.0, %v2369
    %v2371 = vpop.f32.mrf.mxu0
    %v2372 = vadd.f32 0.0, %v2371
    %2373 = vdwg.mxu0
    %v2376 = vrot.slane %v2228, 3
    %v2377 = vrot.slane %v2230, 3
    %v2380 = vadd.f32 %v382, %v2376
    %v2381 = vadd.f32 %v384, %v2377
    %v2382 = vxor.u32 %v2380, 2147483648
    %v2383 = vxor.u32 %v2381, 2147483648
    %v2384 = vmul.f32 %v2382, 1.442695
    %v2385 = vpow.pop %v2384
    %v2386 = vmul.f32 %v2383, 1.442695
    %v2387 = vpow.pop %v2386
    %v2388 = vadd.f32 %v2385, 1.0
    %v2389 = vadd.f32 %v2387, 1.0
    %v2390 = vrcp.pop %v2388
    %v2391 = vmul.f32 1.0, %v2390
    %v2392 = vrcp.pop %v2389
    %v2393 = vmul.f32 1.0, %v2392
    %v2396 = vrot.slane %v2299, 3
    %v2397 = vrot.slane %v2301, 3
    %v2400 = vadd.f32 %v459, %v2396
    %v2401 = vadd.f32 %v461, %v2397
    %v2402 = vxor.u32 %v2400, 2147483648
    %v2403 = vxor.u32 %v2401, 2147483648
    %v2404 = vmul.f32 %v2402, 1.442695
    %v2405 = vpow.pop %v2404
    %v2406 = vmul.f32 %v2403, 1.442695
    %v2407 = vpow.pop %v2406
    %v2408 = vadd.f32 %v2405, 1.0
    %v2409 = vadd.f32 %v2407, 1.0
    %v2410 = vrcp.pop %v2408
    %v2411 = vmul.f32 1.0, %v2410
    %v2412 = vrcp.pop %v2409
    %v2413 = vmul.f32 1.0, %v2412
    %v2414 = vadd.f32 %v2370, %v996
    %v2415 = vadd.f32 %v2372, %v1000
    %v2418 = vrot.slane %v2414, 3
    %v2419 = vrot.slane %v2415, 3
    %v2422 = vmul.f32 %v2391, %v2418
    %v2423 = vmul.f32 %v2393, %v2419
    %v2424 = vadd.f32 %v536, %v2422
    %v2425 = vadd.f32 %v538, %v2423
    %v2426 = vtanh.pop %v2424
    %v2427 = vtanh.pop %v2425
    %v2428 = vsub.f32 1.0, %v2411
    %v2429 = vsub.f32 1.0, %v2413
    %v2430 = vmul.f32 %v2428, %v2426
    %v2431 = vmul.f32 %v2429, %v2427
    %v2432 = vrot.slane %v2153, 7
    %v2433 = vrot.slane %v2154, 7
    %v2436 = vmul.f32 %v2411, %v2432
    %v2437 = vmul.f32 %v2413, %v2433
    %v2438 = vadd.f32 %v2430, %v2436
    %v2439 = vadd.f32 %v2431, %v2437
    %v2442 = vrot.slane %v2438, 5
    %v2443 = vrot.slane %v2439, 5
    %2446 = vmatprep.subr.mxu0 %v637
    %2447 = vmatpush1.msra.mxu0 %v636
    %2448 = vmatprep.subr.mxu0 %v631
    %2449 = vmatpush1.msra.mxu0 %v630
    %2450 = vmatprep.subr.mxu0 %v625
    %2451 = vmatpush1.msra.mxu0 %v624
    %2452 = vmatprep.subr.mxu0 %v619
    %2453 = vmatpush1.msra.mxu0 %v618
    %2454 = vmatprep.subr.mxu0 %v613
    %2455 = vmatpush1.msra.mxu0 %v612
    %2456 = vmatprep.subr.mxu0 %v607
    %2457 = vmatpush1.msra.mxu0 %v606
    %2458 = vmatprep.subr.mxu0 %v601
    %2459 = vmatpush1.msra.mxu0 %v600
    %2460 = vmatprep.subr.mxu0 %v595
    %2461 = vmatpush1.msra.mxu0 %v594
    %2462 = vmatprep.subr.mxu0 %v589
    %2463 = vmatpush1.msra.mxu0 %v588
    %2464 = vmatprep.subr.mxu0 %v583
    %2465 = vmatpush1.msra.mxu0 %v582
    %2466 = vmatprep.subr.mxu0 %v577
    %2467 = vmatpush1.msra.mxu0 %v576
    %2468 = vmatprep.subr.mxu0 %v571
    %2469 = vmatpush1.msra.mxu0 %v570
    %2470 = vmatprep.subr.mxu0 %v565
    %2471 = vmatpush1.msra.mxu0 %v564
    %2472 = vmatprep.subr.mxu0 %v559
    %2473 = vmatpush1.msra.mxu0 %v558
    %2474 = vmatprep.subr.mxu0 %v553
    %2475 = vmatpush1.msra.mxu0 %v552
    %2476 = vmatprep.subr.mxu0 %v547
    %2477 = vmatpush1.msra.mxu0 %v546
    %2478 = vmatprep.subr.mxu0 %v733
    %2479 = vmatpush2.msra.mxu0 %v732
    %2480 = vmatprep.subr.mxu0 %v727
    %2481 = vmatpush2.msra.mxu0 %v726
    %2482 = vmatprep.subr.mxu0 %v721
    %2483 = vmatpush2.msra.mxu0 %v720
    %2484 = vmatprep.subr.mxu0 %v715
    %2485 = vmatpush2.msra.mxu0 %v714
    %2486 = vmatprep.subr.mxu0 %v709
    %2487 = vmatpush2.msra.mxu0 %v708
    %2488 = vmatprep.subr.mxu0 %v703
    %2489 = vmatpush2.msra.mxu0 %v702
    %2490 = vmatprep.subr.mxu0 %v697
    %2491 = vmatpush2.msra.mxu0 %v696
    %2492 = vmatprep.subr.mxu0 %v691
    %2493 = vmatpush2.msra.mxu0 %v690
    %2494 = vmatprep.subr.mxu0 %v685
    %2495 = vmatpush2.msra.mxu0 %v684
    %2496 = vmatprep.subr.mxu0 %v679
    %2497 = vmatpush2.msra.mxu0 %v678
    %2498 = vmatprep.subr.mxu0 %v673
    %2499 = vmatpush2.msra.mxu0 %v672
    %2500 = vmatprep.subr.mxu0 %v667
    %2501 = vmatpush2.msra.mxu0 %v666
    %2502 = vmatprep.subr.mxu0 %v661
    %2503 = vmatpush2.msra.mxu0 %v660
    %2504 = vmatprep.subr.mxu0 %v655
    %2505 = vmatpush2.msra.mxu0 %v654
    %2506 = vmatprep.subr.mxu0 %v649
    %2507 = vmatpush2.msra.mxu0 %v648
    %2508 = vmatprep.subr.mxu0 %v643
    %2509 = vmatpush2.msra.mxu0 %v642
    %2510 = vmatprep.mubr.f32.mxu0 %v2443
    %2511 = vmatmul.mubr.f32.gmra.mxu0 %v2442
    %v2512 = vpop.f32.mrf.mxu0
    %v2513 = vadd.f32 0.0, %v2512
    %v2514 = vpop.f32.mrf.mxu0
    %v2515 = vadd.f32 0.0, %v2514
    %2516 = vdwg.mxu0
    %2517 = vmatprep.subr.mxu0 %v639
    %2518 = vmatpush1.msra.mxu0 %v638
    %2519 = vmatprep.subr.mxu0 %v633
    %2520 = vmatpush1.msra.mxu0 %v632
    %2521 = vmatprep.subr.mxu0 %v627
    %2522 = vmatpush1.msra.mxu0 %v626
    %2523 = vmatprep.subr.mxu0 %v621
    %2524 = vmatpush1.msra.mxu0 %v620
    %2525 = vmatprep.subr.mxu0 %v615
    %2526 = vmatpush1.msra.mxu0 %v614
    %2527 = vmatprep.subr.mxu0 %v609
    %2528 = vmatpush1.msra.mxu0 %v608
    %2529 = vmatprep.subr.mxu0 %v603
    %2530 = vmatpush1.msra.mxu0 %v602
    %2531 = vmatprep.subr.mxu0 %v597
    %2532 = vmatpush1.msra.mxu0 %v596
    %2533 = vmatprep.subr.mxu0 %v591
    %2534 = vmatpush1.msra.mxu0 %v590
    %2535 = vmatprep.subr.mxu0 %v585
    %2536 = vmatpush1.msra.mxu0 %v584
    %2537 = vmatprep.subr.mxu0 %v579
    %2538 = vmatpush1.msra.mxu0 %v578
    %2539 = vmatprep.subr.mxu0 %v573
    %2540 = vmatpush1.msra.mxu0 %v572
    %2541 = vmatprep.subr.mxu0 %v567
    %2542 = vmatpush1.msra.mxu0 %v566
    %2543 = vmatprep.subr.mxu0 %v561
    %2544 = vmatpush1.msra.mxu0 %v560
    %2545 = vmatprep.subr.mxu0 %v555
    %2546 = vmatpush1.msra.mxu0 %v554
    %2547 = vmatprep.subr.mxu0 %v549
    %2548 = vmatpush1.msra.mxu0 %v548
    %2549 = vmatprep.subr.mxu0 %v735
    %2550 = vmatpush2.msra.mxu0 %v734
    %2551 = vmatprep.subr.mxu0 %v729
    %2552 = vmatpush2.msra.mxu0 %v728
    %2553 = vmatprep.subr.mxu0 %v723
    %2554 = vmatpush2.msra.mxu0 %v722
    %2555 = vmatprep.subr.mxu0 %v717
    %2556 = vmatpush2.msra.mxu0 %v716
    %2557 = vmatprep.subr.mxu0 %v711
    %2558 = vmatpush2.msra.mxu0 %v710
    %2559 = vmatprep.subr.mxu0 %v705
    %2560 = vmatpush2.msra.mxu0 %v704
    %2561 = vmatprep.subr.mxu0 %v699
    %2562 = vmatpush2.msra.mxu0 %v698
    %2563 = vmatprep.subr.mxu0 %v693
    %2564 = vmatpush2.msra.mxu0 %v692
    %2565 = vmatprep.subr.mxu0 %v687
    %2566 = vmatpush2.msra.mxu0 %v686
    %2567 = vmatprep.subr.mxu0 %v681
    %2568 = vmatpush2.msra.mxu0 %v680
    %2569 = vmatprep.subr.mxu0 %v675
    %2570 = vmatpush2.msra.mxu0 %v674
    %2571 = vmatprep.subr.mxu0 %v669
    %2572 = vmatpush2.msra.mxu0 %v668
    %2573 = vmatprep.subr.mxu0 %v663
    %2574 = vmatpush2.msra.mxu0 %v662
    %2575 = vmatprep.subr.mxu0 %v657
    %2576 = vmatpush2.msra.mxu0 %v656
    %2577 = vmatprep.subr.mxu0 %v651
    %2578 = vmatpush2.msra.mxu0 %v650
    %2579 = vmatprep.subr.mxu0 %v645
    %2580 = vmatpush2.msra.mxu0 %v644
    %2581 = vmatprep.mubr.f32.mxu0 %v2443
    %2582 = vmatmul.mubr.f32.gmra.mxu0 %v2442
    %v2583 = vpop.f32.mrf.mxu0
    %v2584 = vadd.f32 0.0, %v2583
    %v2585 = vpop.f32.mrf.mxu0
    %v2586 = vadd.f32 0.0, %v2585
    %2587 = vdwg.mxu0
    %2588 = vmatprep.subr.mxu0 %v641
    %2589 = vmatpush1.msra.mxu0 %v640
    %2590 = vmatprep.subr.mxu0 %v635
    %2591 = vmatpush1.msra.mxu0 %v634
    %2592 = vmatprep.subr.mxu0 %v629
    %2593 = vmatpush1.msra.mxu0 %v628
    %2594 = vmatprep.subr.mxu0 %v623
    %2595 = vmatpush1.msra.mxu0 %v622
    %2596 = vmatprep.subr.mxu0 %v617
    %2597 = vmatpush1.msra.mxu0 %v616
    %2598 = vmatprep.subr.mxu0 %v611
    %2599 = vmatpush1.msra.mxu0 %v610
    %2600 = vmatprep.subr.mxu0 %v605
    %2601 = vmatpush1.msra.mxu0 %v604
    %2602 = vmatprep.subr.mxu0 %v599
    %2603 = vmatpush1.msra.mxu0 %v598
    %2604 = vmatprep.subr.mxu0 %v593
    %2605 = vmatpush1.msra.mxu0 %v592
    %2606 = vmatprep.subr.mxu0 %v587
    %2607 = vmatpush1.msra.mxu0 %v586
    %2608 = vmatprep.subr.mxu0 %v581
    %2609 = vmatpush1.msra.mxu0 %v580
    %2610 = vmatprep.subr.mxu0 %v575
    %2611 = vmatpush1.msra.mxu0 %v574
    %2612 = vmatprep.subr.mxu0 %v569
    %2613 = vmatpush1.msra.mxu0 %v568
    %2614 = vmatprep.subr.mxu0 %v563
    %2615 = vmatpush1.msra.mxu0 %v562
    %2616 = vmatprep.subr.mxu0 %v557
    %2617 = vmatpush1.msra.mxu0 %v556
    %2618 = vmatprep.subr.mxu0 %v551
    %2619 = vmatpush1.msra.mxu0 %v550
    %2620 = vmatprep.subr.mxu0 %v737
    %2621 = vmatpush2.msra.mxu0 %v736
    %2622 = vmatprep.subr.mxu0 %v731
    %2623 = vmatpush2.msra.mxu0 %v730
    %2624 = vmatprep.subr.mxu0 %v725
    %2625 = vmatpush2.msra.mxu0 %v724
    %2626 = vmatprep.subr.mxu0 %v719
    %2627 = vmatpush2.msra.mxu0 %v718
    %2628 = vmatprep.subr.mxu0 %v713
    %2629 = vmatpush2.msra.mxu0 %v712
    %2630 = vmatprep.subr.mxu0 %v707
    %2631 = vmatpush2.msra.mxu0 %v706
    %2632 = vmatprep.subr.mxu0 %v701
    %2633 = vmatpush2.msra.mxu0 %v700
    %2634 = vmatprep.subr.mxu0 %v695
    %2635 = vmatpush2.msra.mxu0 %v694
    %2636 = vmatprep.subr.mxu0 %v689
    %2637 = vmatpush2.msra.mxu0 %v688
    %2638 = vmatprep.subr.mxu0 %v683
    %2639 = vmatpush2.msra.mxu0 %v682
    %2640 = vmatprep.subr.mxu0 %v677
    %2641 = vmatpush2.msra.mxu0 %v676
    %2642 = vmatprep.subr.mxu0 %v671
    %2643 = vmatpush2.msra.mxu0 %v670
    %2644 = vmatprep.subr.mxu0 %v665
    %2645 = vmatpush2.msra.mxu0 %v664
    %2646 = vmatprep.subr.mxu0 %v659
    %2647 = vmatpush2.msra.mxu0 %v658
    %2648 = vmatprep.subr.mxu0 %v653
    %2649 = vmatpush2.msra.mxu0 %v652
    %2650 = vmatprep.subr.mxu0 %v647
    %2651 = vmatpush2.msra.mxu0 %v646
    %2652 = vmatprep.mubr.f32.mxu0 %v2443
    %2653 = vmatmul.mubr.f32.gmra.mxu0 %v2442
    %v2654 = vpop.f32.mrf.mxu0
    %v2655 = vadd.f32 0.0, %v2654
    %v2656 = vpop.f32.mrf.mxu0
    %v2657 = vadd.f32 0.0, %v2656
    %2658 = vdwg.mxu0
    %v2661 = vrot.slane %v2513, 2
    %v2662 = vrot.slane %v2515, 2
    %v2665 = vadd.f32 %v382, %v2661
    %v2666 = vadd.f32 %v384, %v2662
    %v2667 = vxor.u32 %v2665, 2147483648
    %v2668 = vxor.u32 %v2666, 2147483648
    %v2669 = vmul.f32 %v2667, 1.442695
    %v2670 = vpow.pop %v2669
    %v2671 = vmul.f32 %v2668, 1.442695
    %v2672 = vpow.pop %v2671
    %v2673 = vadd.f32 %v2670, 1.0
    %v2674 = vadd.f32 %v2672, 1.0
    %v2675 = vrcp.pop %v2673
    %v2676 = vmul.f32 1.0, %v2675
    %v2677 = vrcp.pop %v2674
    %v2678 = vmul.f32 1.0, %v2677
    %v2681 = vrot.slane %v2584, 2
    %v2682 = vrot.slane %v2586, 2
    %v2685 = vadd.f32 %v459, %v2681
    %v2686 = vadd.f32 %v461, %v2682
    %v2687 = vxor.u32 %v2685, 2147483648
    %v2688 = vxor.u32 %v2686, 2147483648
    %v2689 = vmul.f32 %v2687, 1.442695
    %v2690 = vpow.pop %v2689
    %v2691 = vmul.f32 %v2688, 1.442695
    %v2692 = vpow.pop %v2691
    %v2693 = vadd.f32 %v2690, 1.0
    %v2694 = vadd.f32 %v2692, 1.0
    %v2695 = vrcp.pop %v2693
    %v2696 = vmul.f32 1.0, %v2695
    %v2697 = vrcp.pop %v2694
    %v2698 = vmul.f32 1.0, %v2697
    %v2699 = vadd.f32 %v2655, %v996
    %v2700 = vadd.f32 %v2657, %v1000
    %v2703 = vrot.slane %v2699, 2
    %v2704 = vrot.slane %v2700, 2
    %v2707 = vmul.f32 %v2676, %v2703
    %v2708 = vmul.f32 %v2678, %v2704
    %v2709 = vadd.f32 %v536, %v2707
    %v2710 = vadd.f32 %v538, %v2708
    %v2711 = vtanh.pop %v2709
    %v2712 = vtanh.pop %v2710
    %v2713 = vsub.f32 1.0, %v2696
    %v2714 = vsub.f32 1.0, %v2698
    %v2715 = vmul.f32 %v2713, %v2711
    %v2716 = vmul.f32 %v2714, %v2712
    %v2717 = vrot.slane %v2438, 7
    %v2718 = vrot.slane %v2439, 7
    %v2721 = vmul.f32 %v2696, %v2717
    %v2722 = vmul.f32 %v2698, %v2718
    %v2723 = vadd.f32 %v2715, %v2721
    %v2724 = vadd.f32 %v2716, %v2722
    %v2727 = vrot.slane %v2723, 6
    %v2728 = vrot.slane %v2724, 6
    %2731 = vmatprep.subr.mxu0 %v637
    %2732 = vmatpush1.msra.mxu0 %v636
    %2733 = vmatprep.subr.mxu0 %v631
    %2734 = vmatpush1.msra.mxu0 %v630
    %2735 = vmatprep.subr.mxu0 %v625
    %2736 = vmatpush1.msra.mxu0 %v624
    %2737 = vmatprep.subr.mxu0 %v619
    %2738 = vmatpush1.msra.mxu0 %v618
    %2739 = vmatprep.subr.mxu0 %v613
    %2740 = vmatpush1.msra.mxu0 %v612
    %2741 = vmatprep.subr.mxu0 %v607
    %2742 = vmatpush1.msra.mxu0 %v606
    %2743 = vmatprep.subr.mxu0 %v601
    %2744 = vmatpush1.msra.mxu0 %v600
    %2745 = vmatprep.subr.mxu0 %v595
    %2746 = vmatpush1.msra.mxu0 %v594
    %2747 = vmatprep.subr.mxu0 %v589
    %2748 = vmatpush1.msra.mxu0 %v588
    %2749 = vmatprep.subr.mxu0 %v583
    %2750 = vmatpush1.msra.mxu0 %v582
    %2751 = vmatprep.subr.mxu0 %v577
    %2752 = vmatpush1.msra.mxu0 %v576
    %2753 = vmatprep.subr.mxu0 %v571
    %2754 = vmatpush1.msra.mxu0 %v570
    %2755 = vmatprep.subr.mxu0 %v565
    %2756 = vmatpush1.msra.mxu0 %v564
    %2757 = vmatprep.subr.mxu0 %v559
    %2758 = vmatpush1.msra.mxu0 %v558
    %2759 = vmatprep.subr.mxu0 %v553
    %2760 = vmatpush1.msra.mxu0 %v552
    %2761 = vmatprep.subr.mxu0 %v547
    %2762 = vmatpush1.msra.mxu0 %v546
    %2763 = vmatprep.subr.mxu0 %v733
    %2764 = vmatpush2.msra.mxu0 %v732
    %2765 = vmatprep.subr.mxu0 %v727
    %2766 = vmatpush2.msra.mxu0 %v726
    %2767 = vmatprep.subr.mxu0 %v721
    %2768 = vmatpush2.msra.mxu0 %v720
    %2769 = vmatprep.subr.mxu0 %v715
    %2770 = vmatpush2.msra.mxu0 %v714
    %2771 = vmatprep.subr.mxu0 %v709
    %2772 = vmatpush2.msra.mxu0 %v708
    %2773 = vmatprep.subr.mxu0 %v703
    %2774 = vmatpush2.msra.mxu0 %v702
    %2775 = vmatprep.subr.mxu0 %v697
    %2776 = vmatpush2.msra.mxu0 %v696
    %2777 = vmatprep.subr.mxu0 %v691
    %2778 = vmatpush2.msra.mxu0 %v690
    %2779 = vmatprep.subr.mxu0 %v685
    %2780 = vmatpush2.msra.mxu0 %v684
    %2781 = vmatprep.subr.mxu0 %v679
    %2782 = vmatpush2.msra.mxu0 %v678
    %2783 = vmatprep.subr.mxu0 %v673
    %2784 = vmatpush2.msra.mxu0 %v672
    %2785 = vmatprep.subr.mxu0 %v667
    %2786 = vmatpush2.msra.mxu0 %v666
    %2787 = vmatprep.subr.mxu0 %v661
    %2788 = vmatpush2.msra.mxu0 %v660
    %2789 = vmatprep.subr.mxu0 %v655
    %2790 = vmatpush2.msra.mxu0 %v654
    %2791 = vmatprep.subr.mxu0 %v649
    %2792 = vmatpush2.msra.mxu0 %v648
    %2793 = vmatprep.subr.mxu0 %v643
    %2794 = vmatpush2.msra.mxu0 %v642
    %2795 = vmatprep.mubr.f32.mxu0 %v2728
    %2796 = vmatmul.mubr.f32.gmra.mxu0 %v2727
    %v2797 = vpop.f32.mrf.mxu0
    %v2798 = vadd.f32 0.0, %v2797
    %v2799 = vpop.f32.mrf.mxu0
    %v2800 = vadd.f32 0.0, %v2799
    %2801 = vdwg.mxu0
    %2802 = vmatprep.subr.mxu0 %v639
    %2803 = vmatpush1.msra.mxu0 %v638
    %2804 = vmatprep.subr.mxu0 %v633
    %2805 = vmatpush1.msra.mxu0 %v632
    %2806 = vmatprep.subr.mxu0 %v627
    %2807 = vmatpush1.msra.mxu0 %v626
    %2808 = vmatprep.subr.mxu0 %v621
    %2809 = vmatpush1.msra.mxu0 %v620
    %2810 = vmatprep.subr.mxu0 %v615
    %2811 = vmatpush1.msra.mxu0 %v614
    %2812 = vmatprep.subr.mxu0 %v609
    %2813 = vmatpush1.msra.mxu0 %v608
    %2814 = vmatprep.subr.mxu0 %v603
    %2815 = vmatpush1.msra.mxu0 %v602
    %2816 = vmatprep.subr.mxu0 %v597
    %2817 = vmatpush1.msra.mxu0 %v596
    %2818 = vmatprep.subr.mxu0 %v591
    %2819 = vmatpush1.msra.mxu0 %v590
    %2820 = vmatprep.subr.mxu0 %v585
    %2821 = vmatpush1.msra.mxu0 %v584
    %2822 = vmatprep.subr.mxu0 %v579
    %2823 = vmatpush1.msra.mxu0 %v578
    %2824 = vmatprep.subr.mxu0 %v573
    %2825 = vmatpush1.msra.mxu0 %v572
    %2826 = vmatprep.subr.mxu0 %v567
    %2827 = vmatpush1.msra.mxu0 %v566
    %2828 = vmatprep.subr.mxu0 %v561
    %2829 = vmatpush1.msra.mxu0 %v560
    %2830 = vmatprep.subr.mxu0 %v555
    %2831 = vmatpush1.msra.mxu0 %v554
    %2832 = vmatprep.subr.mxu0 %v549
    %2833 = vmatpush1.msra.mxu0 %v548
    %2834 = vmatprep.subr.mxu0 %v735
    %2835 = vmatpush2.msra.mxu0 %v734
    %2836 = vmatprep.subr.mxu0 %v729
    %2837 = vmatpush2.msra.mxu0 %v728
    %2838 = vmatprep.subr.mxu0 %v723
    %2839 = vmatpush2.msra.mxu0 %v722
    %2840 = vmatprep.subr.mxu0 %v717
    %2841 = vmatpush2.msra.mxu0 %v716
    %2842 = vmatprep.subr.mxu0 %v711
    %2843 = vmatpush2.msra.mxu0 %v710
    %2844 = vmatprep.subr.mxu0 %v705
    %2845 = vmatpush2.msra.mxu0 %v704
    %2846 = vmatprep.subr.mxu0 %v699
    %2847 = vmatpush2.msra.mxu0 %v698
    %2848 = vmatprep.subr.mxu0 %v693
    %2849 = vmatpush2.msra.mxu0 %v692
    %2850 = vmatprep.subr.mxu0 %v687
    %2851 = vmatpush2.msra.mxu0 %v686
    %2852 = vmatprep.subr.mxu0 %v681
    %2853 = vmatpush2.msra.mxu0 %v680
    %2854 = vmatprep.subr.mxu0 %v675
    %2855 = vmatpush2.msra.mxu0 %v674
    %2856 = vmatprep.subr.mxu0 %v669
    %2857 = vmatpush2.msra.mxu0 %v668
    %2858 = vmatprep.subr.mxu0 %v663
    %2859 = vmatpush2.msra.mxu0 %v662
    %2860 = vmatprep.subr.mxu0 %v657
    %2861 = vmatpush2.msra.mxu0 %v656
    %2862 = vmatprep.subr.mxu0 %v651
    %2863 = vmatpush2.msra.mxu0 %v650
    %2864 = vmatprep.subr.mxu0 %v645
    %2865 = vmatpush2.msra.mxu0 %v644
    %2866 = vmatprep.mubr.f32.mxu0 %v2728
    %2867 = vmatmul.mubr.f32.gmra.mxu0 %v2727
    %v2868 = vpop.f32.mrf.mxu0
    %v2869 = vadd.f32 0.0, %v2868
    %v2870 = vpop.f32.mrf.mxu0
    %v2871 = vadd.f32 0.0, %v2870
    %2872 = vdwg.mxu0
    %2873 = vmatprep.subr.mxu0 %v641
    %2874 = vmatpush1.msra.mxu0 %v640
    %2875 = vmatprep.subr.mxu0 %v635
    %2876 = vmatpush1.msra.mxu0 %v634
    %2877 = vmatprep.subr.mxu0 %v629
    %2878 = vmatpush1.msra.mxu0 %v628
    %2879 = vmatprep.subr.mxu0 %v623
    %2880 = vmatpush1.msra.mxu0 %v622
    %2881 = vmatprep.subr.mxu0 %v617
    %2882 = vmatpush1.msra.mxu0 %v616
    %2883 = vmatprep.subr.mxu0 %v611
    %2884 = vmatpush1.msra.mxu0 %v610
    %2885 = vmatprep.subr.mxu0 %v605
    %2886 = vmatpush1.msra.mxu0 %v604
    %2887 = vmatprep.subr.mxu0 %v599
    %2888 = vmatpush1.msra.mxu0 %v598
    %2889 = vmatprep.subr.mxu0 %v593
    %2890 = vmatpush1.msra.mxu0 %v592
    %2891 = vmatprep.subr.mxu0 %v587
    %2892 = vmatpush1.msra.mxu0 %v586
    %2893 = vmatprep.subr.mxu0 %v581
    %2894 = vmatpush1.msra.mxu0 %v580
    %2895 = vmatprep.subr.mxu0 %v575
    %2896 = vmatpush1.msra.mxu0 %v574
    %2897 = vmatprep.subr.mxu0 %v569
    %2898 = vmatpush1.msra.mxu0 %v568
    %2899 = vmatprep.subr.mxu0 %v563
    %2900 = vmatpush1.msra.mxu0 %v562
    %2901 = vmatprep.subr.mxu0 %v557
    %2902 = vmatpush1.msra.mxu0 %v556
    %2903 = vmatprep.subr.mxu0 %v551
    %2904 = vmatpush1.msra.mxu0 %v550
    %2905 = vmatprep.subr.mxu0 %v737
    %2906 = vmatpush2.msra.mxu0 %v736
    %2907 = vmatprep.subr.mxu0 %v731
    %2908 = vmatpush2.msra.mxu0 %v730
    %2909 = vmatprep.subr.mxu0 %v725
    %2910 = vmatpush2.msra.mxu0 %v724
    %2911 = vmatprep.subr.mxu0 %v719
    %2912 = vmatpush2.msra.mxu0 %v718
    %2913 = vmatprep.subr.mxu0 %v713
    %2914 = vmatpush2.msra.mxu0 %v712
    %2915 = vmatprep.subr.mxu0 %v707
    %2916 = vmatpush2.msra.mxu0 %v706
    %2917 = vmatprep.subr.mxu0 %v701
    %2918 = vmatpush2.msra.mxu0 %v700
    %2919 = vmatprep.subr.mxu0 %v695
    %2920 = vmatpush2.msra.mxu0 %v694
    %2921 = vmatprep.subr.mxu0 %v689
    %2922 = vmatpush2.msra.mxu0 %v688
    %2923 = vmatprep.subr.mxu0 %v683
    %2924 = vmatpush2.msra.mxu0 %v682
    %2925 = vmatprep.subr.mxu0 %v677
    %2926 = vmatpush2.msra.mxu0 %v676
    %2927 = vmatprep.subr.mxu0 %v671
    %2928 = vmatpush2.msra.mxu0 %v670
    %2929 = vmatprep.subr.mxu0 %v665
    %2930 = vmatpush2.msra.mxu0 %v664
    %2931 = vmatprep.subr.mxu0 %v659
    %2932 = vmatpush2.msra.mxu0 %v658
    %2933 = vmatprep.subr.mxu0 %v653
    %2934 = vmatpush2.msra.mxu0 %v652
    %2935 = vmatprep.subr.mxu0 %v647
    %2936 = vmatpush2.msra.mxu0 %v646
    %2937 = vmatprep.mubr.f32.mxu0 %v2728
    %2938 = vmatmul.mubr.f32.gmra.mxu0 %v2727
    %v2939 = vpop.f32.mrf.mxu0
    %v2940 = vadd.f32 0.0, %v2939
    %v2941 = vpop.f32.mrf.mxu0
    %v2942 = vadd.f32 0.0, %v2941
    %2943 = vdwg.mxu0
    %v2946 = vrot.slane %v2798, 1
    %v2947 = vrot.slane %v2800, 1
    %v2950 = vadd.f32 %v382, %v2946
    %v2951 = vadd.f32 %v384, %v2947
    %v2952 = vxor.u32 %v2950, 2147483648
    %v2953 = vxor.u32 %v2951, 2147483648
    %v2954 = vmul.f32 %v2952, 1.442695
    %v2955 = vpow.pop %v2954
    %v2956 = vmul.f32 %v2953, 1.442695
    %v2957 = vpow.pop %v2956
    %v2958 = vadd.f32 %v2955, 1.0
    %v2959 = vadd.f32 %v2957, 1.0
    %v2960 = vrcp.pop %v2958
    %v2961 = vmul.f32 1.0, %v2960
    %v2962 = vrcp.pop %v2959
    %v2963 = vmul.f32 1.0, %v2962
    %v2966 = vrot.slane %v2869, 1
    %v2967 = vrot.slane %v2871, 1
    %v2970 = vadd.f32 %v459, %v2966
    %v2971 = vadd.f32 %v461, %v2967
    %v2972 = vxor.u32 %v2970, 2147483648
    %v2973 = vxor.u32 %v2971, 2147483648
    %v2974 = vmul.f32 %v2972, 1.442695
    %v2975 = vpow.pop %v2974
    %v2976 = vmul.f32 %v2973, 1.442695
    %v2977 = vpow.pop %v2976
    %v2978 = vadd.f32 %v2975, 1.0
    %v2979 = vadd.f32 %v2977, 1.0
    %v2980 = vrcp.pop %v2978
    %v2981 = vmul.f32 1.0, %v2980
    %v2982 = vrcp.pop %v2979
    %v2983 = vmul.f32 1.0, %v2982
    %v2984 = vadd.f32 %v2940, %v996
    %v2985 = vadd.f32 %v2942, %v1000
    %v2988 = vrot.slane %v2984, 1
    %v2989 = vrot.slane %v2985, 1
    %v2992 = vmul.f32 %v2961, %v2988
    %v2993 = vmul.f32 %v2963, %v2989
    %v2994 = vadd.f32 %v536, %v2992
    %v2995 = vadd.f32 %v538, %v2993
    %v2996 = vtanh.pop %v2994
    %v2997 = vtanh.pop %v2995
    %v2998 = vsub.f32 1.0, %v2981
    %v2999 = vsub.f32 1.0, %v2983
    %v3000 = vmul.f32 %v2998, %v2996
    %v3001 = vmul.f32 %v2999, %v2997
    %v3002 = vrot.slane %v2723, 7
    %v3003 = vrot.slane %v2724, 7
    %v3006 = vmul.f32 %v2981, %v3002
    %v3007 = vmul.f32 %v2983, %v3003
    %v3008 = vadd.f32 %v3000, %v3006
    %v3009 = vadd.f32 %v3001, %v3007
    %v3012 = vrot.slane %v3008, 7
    %v3013 = vrot.slane %v3009, 7
    %3016 = vmatprep.subr.mxu0 %v637
    %3017 = vmatpush1.msra.mxu0 %v636
    %3018 = vmatprep.subr.mxu0 %v631
    %3019 = vmatpush1.msra.mxu0 %v630
    %3020 = vmatprep.subr.mxu0 %v625
    %3021 = vmatpush1.msra.mxu0 %v624
    %3022 = vmatprep.subr.mxu0 %v619
    %3023 = vmatpush1.msra.mxu0 %v618
    %3024 = vmatprep.subr.mxu0 %v613
    %3025 = vmatpush1.msra.mxu0 %v612
    %3026 = vmatprep.subr.mxu0 %v607
    %3027 = vmatpush1.msra.mxu0 %v606
    %3028 = vmatprep.subr.mxu0 %v601
    %3029 = vmatpush1.msra.mxu0 %v600
    %3030 = vmatprep.subr.mxu0 %v595
    %3031 = vmatpush1.msra.mxu0 %v594
    %3032 = vmatprep.subr.mxu0 %v589
    %3033 = vmatpush1.msra.mxu0 %v588
    %3034 = vmatprep.subr.mxu0 %v583
    %3035 = vmatpush1.msra.mxu0 %v582
    %3036 = vmatprep.subr.mxu0 %v577
    %3037 = vmatpush1.msra.mxu0 %v576
    %3038 = vmatprep.subr.mxu0 %v571
    %3039 = vmatpush1.msra.mxu0 %v570
    %3040 = vmatprep.subr.mxu0 %v565
    %3041 = vmatpush1.msra.mxu0 %v564
    %3042 = vmatprep.subr.mxu0 %v559
    %3043 = vmatpush1.msra.mxu0 %v558
    %3044 = vmatprep.subr.mxu0 %v553
    %3045 = vmatpush1.msra.mxu0 %v552
    %3046 = vmatprep.subr.mxu0 %v547
    %3047 = vmatpush1.msra.mxu0 %v546
    %3048 = vmatprep.subr.mxu0 %v733
    %3049 = vmatpush2.msra.mxu0 %v732
    %3050 = vmatprep.subr.mxu0 %v727
    %3051 = vmatpush2.msra.mxu0 %v726
    %3052 = vmatprep.subr.mxu0 %v721
    %3053 = vmatpush2.msra.mxu0 %v720
    %3054 = vmatprep.subr.mxu0 %v715
    %3055 = vmatpush2.msra.mxu0 %v714
    %3056 = vmatprep.subr.mxu0 %v709
    %3057 = vmatpush2.msra.mxu0 %v708
    %3058 = vmatprep.subr.mxu0 %v703
    %3059 = vmatpush2.msra.mxu0 %v702
    %3060 = vmatprep.subr.mxu0 %v697
    %3061 = vmatpush2.msra.mxu0 %v696
    %3062 = vmatprep.subr.mxu0 %v691
    %3063 = vmatpush2.msra.mxu0 %v690
    %3064 = vmatprep.subr.mxu0 %v685
    %3065 = vmatpush2.msra.mxu0 %v684
    %3066 = vmatprep.subr.mxu0 %v679
    %3067 = vmatpush2.msra.mxu0 %v678
    %3068 = vmatprep.subr.mxu0 %v673
    %3069 = vmatpush2.msra.mxu0 %v672
    %3070 = vmatprep.subr.mxu0 %v667
    %3071 = vmatpush2.msra.mxu0 %v666
    %3072 = vmatprep.subr.mxu0 %v661
    %3073 = vmatpush2.msra.mxu0 %v660
    %3074 = vmatprep.subr.mxu0 %v655
    %3075 = vmatpush2.msra.mxu0 %v654
    %3076 = vmatprep.subr.mxu0 %v649
    %3077 = vmatpush2.msra.mxu0 %v648
    %3078 = vmatprep.subr.mxu0 %v643
    %3079 = vmatpush2.msra.mxu0 %v642
    %3080 = vmatprep.mubr.f32.mxu0 %v3013
    %3081 = vmatmul.mubr.f32.gmra.mxu0 %v3012
    %v3082 = vpop.f32.mrf.mxu0
    %v3083 = vadd.f32 0.0, %v3082
    %v3084 = vpop.f32.mrf.mxu0
    %v3085 = vadd.f32 0.0, %v3084
    %3086 = vdwg.mxu0
    %3087 = vmatprep.subr.mxu0 %v639
    %3088 = vmatpush1.msra.mxu0 %v638
    %3089 = vmatprep.subr.mxu0 %v633
    %3090 = vmatpush1.msra.mxu0 %v632
    %3091 = vmatprep.subr.mxu0 %v627
    %3092 = vmatpush1.msra.mxu0 %v626
    %3093 = vmatprep.subr.mxu0 %v621
    %3094 = vmatpush1.msra.mxu0 %v620
    %3095 = vmatprep.subr.mxu0 %v615
    %3096 = vmatpush1.msra.mxu0 %v614
    %3097 = vmatprep.subr.mxu0 %v609
    %3098 = vmatpush1.msra.mxu0 %v608
    %3099 = vmatprep.subr.mxu0 %v603
    %3100 = vmatpush1.msra.mxu0 %v602
    %3101 = vmatprep.subr.mxu0 %v597
    %3102 = vmatpush1.msra.mxu0 %v596
    %3103 = vmatprep.subr.mxu0 %v591
    %3104 = vmatpush1.msra.mxu0 %v590
    %3105 = vmatprep.subr.mxu0 %v585
    %3106 = vmatpush1.msra.mxu0 %v584
    %3107 = vmatprep.subr.mxu0 %v579
    %3108 = vmatpush1.msra.mxu0 %v578
    %3109 = vmatprep.subr.mxu0 %v573
    %3110 = vmatpush1.msra.mxu0 %v572
    %3111 = vmatprep.subr.mxu0 %v567
    %3112 = vmatpush1.msra.mxu0 %v566
    %3113 = vmatprep.subr.mxu0 %v561
    %3114 = vmatpush1.msra.mxu0 %v560
    %3115 = vmatprep.subr.mxu0 %v555
    %3116 = vmatpush1.msra.mxu0 %v554
    %3117 = vmatprep.subr.mxu0 %v549
    %3118 = vmatpush1.msra.mxu0 %v548
    %3119 = vmatprep.subr.mxu0 %v735
    %3120 = vmatpush2.msra.mxu0 %v734
    %3121 = vmatprep.subr.mxu0 %v729
    %3122 = vmatpush2.msra.mxu0 %v728
    %3123 = vmatprep.subr.mxu0 %v723
    %3124 = vmatpush2.msra.mxu0 %v722
    %3125 = vmatprep.subr.mxu0 %v717
    %3126 = vmatpush2.msra.mxu0 %v716
    %3127 = vmatprep.subr.mxu0 %v711
    %3128 = vmatpush2.msra.mxu0 %v710
    %3129 = vmatprep.subr.mxu0 %v705
    %3130 = vmatpush2.msra.mxu0 %v704
    %3131 = vmatprep.subr.mxu0 %v699
    %3132 = vmatpush2.msra.mxu0 %v698
    %3133 = vmatprep.subr.mxu0 %v693
    %3134 = vmatpush2.msra.mxu0 %v692
    %3135 = vmatprep.subr.mxu0 %v687
    %3136 = vmatpush2.msra.mxu0 %v686
    %3137 = vmatprep.subr.mxu0 %v681
    %3138 = vmatpush2.msra.mxu0 %v680
    %3139 = vmatprep.subr.mxu0 %v675
    %3140 = vmatpush2.msra.mxu0 %v674
    %3141 = vmatprep.subr.mxu0 %v669
    %3142 = vmatpush2.msra.mxu0 %v668
    %3143 = vmatprep.subr.mxu0 %v663
    %3144 = vmatpush2.msra.mxu0 %v662
    %3145 = vmatprep.subr.mxu0 %v657
    %3146 = vmatpush2.msra.mxu0 %v656
    %3147 = vmatprep.subr.mxu0 %v651
    %3148 = vmatpush2.msra.mxu0 %v650
    %3149 = vmatprep.subr.mxu0 %v645
    %3150 = vmatpush2.msra.mxu0 %v644
    %3151 = vmatprep.mubr.f32.mxu0 %v3013
    %3152 = vmatmul.mubr.f32.gmra.mxu0 %v3012
    %v3153 = vpop.f32.mrf.mxu0
    %v3154 = vadd.f32 0.0, %v3153
    %v3155 = vpop.f32.mrf.mxu0
    %v3156 = vadd.f32 0.0, %v3155
    %3157 = vdwg.mxu0
    %3158 = vmatprep.subr.mxu0 %v641
    %3159 = vmatpush1.msra.mxu0 %v640
    %3160 = vmatprep.subr.mxu0 %v635
    %3161 = vmatpush1.msra.mxu0 %v634
    %3162 = vmatprep.subr.mxu0 %v629
    %3163 = vmatpush1.msra.mxu0 %v628
    %3164 = vmatprep.subr.mxu0 %v623
    %3165 = vmatpush1.msra.mxu0 %v622
    %3166 = vmatprep.subr.mxu0 %v617
    %3167 = vmatpush1.msra.mxu0 %v616
    %3168 = vmatprep.subr.mxu0 %v611
    %3169 = vmatpush1.msra.mxu0 %v610
    %3170 = vmatprep.subr.mxu0 %v605
    %3171 = vmatpush1.msra.mxu0 %v604
    %3172 = vmatprep.subr.mxu0 %v599
    %3173 = vmatpush1.msra.mxu0 %v598
    %3174 = vmatprep.subr.mxu0 %v593
    %3175 = vmatpush1.msra.mxu0 %v592
    %3176 = vmatprep.subr.mxu0 %v587
    %3177 = vmatpush1.msra.mxu0 %v586
    %3178 = vmatprep.subr.mxu0 %v581
    %3179 = vmatpush1.msra.mxu0 %v580
    %3180 = vmatprep.subr.mxu0 %v575
    %3181 = vmatpush1.msra.mxu0 %v574
    %3182 = vmatprep.subr.mxu0 %v569
    %3183 = vmatpush1.msra.mxu0 %v568
    %3184 = vmatprep.subr.mxu0 %v563
    %3185 = vmatpush1.msra.mxu0 %v562
    %3186 = vmatprep.subr.mxu0 %v557
    %3187 = vmatpush1.msra.mxu0 %v556
    %3188 = vmatprep.subr.mxu0 %v551
    %3189 = vmatpush1.msra.mxu0 %v550
    %3190 = vmatprep.subr.mxu0 %v737
    %3191 = vmatpush2.msra.mxu0 %v736
    %3192 = vmatprep.subr.mxu0 %v731
    %3193 = vmatpush2.msra.mxu0 %v730
    %3194 = vmatprep.subr.mxu0 %v725
    %3195 = vmatpush2.msra.mxu0 %v724
    %3196 = vmatprep.subr.mxu0 %v719
    %3197 = vmatpush2.msra.mxu0 %v718
    %3198 = vmatprep.subr.mxu0 %v713
    %3199 = vmatpush2.msra.mxu0 %v712
    %3200 = vmatprep.subr.mxu0 %v707
    %3201 = vmatpush2.msra.mxu0 %v706
    %3202 = vmatprep.subr.mxu0 %v701
    %3203 = vmatpush2.msra.mxu0 %v700
    %3204 = vmatprep.subr.mxu0 %v695
    %3205 = vmatpush2.msra.mxu0 %v694
    %3206 = vmatprep.subr.mxu0 %v689
    %3207 = vmatpush2.msra.mxu0 %v688
    %3208 = vmatprep.subr.mxu0 %v683
    %3209 = vmatpush2.msra.mxu0 %v682
    %3210 = vmatprep.subr.mxu0 %v677
    %3211 = vmatpush2.msra.mxu0 %v676
    %3212 = vmatprep.subr.mxu0 %v671
    %3213 = vmatpush2.msra.mxu0 %v670
    %3214 = vmatprep.subr.mxu0 %v665
    %3215 = vmatpush2.msra.mxu0 %v664
    %3216 = vmatprep.subr.mxu0 %v659
    %3217 = vmatpush2.msra.mxu0 %v658
    %3218 = vmatprep.subr.mxu0 %v653
    %3219 = vmatpush2.msra.mxu0 %v652
    %3220 = vmatprep.subr.mxu0 %v647
    %3221 = vmatpush2.msra.mxu0 %v646
    %3222 = vmatprep.mubr.f32.mxu0 %v3013
    %3223 = vmatmul.mubr.f32.gmra.mxu0 %v3012
    %v3224 = vpop.f32.mrf.mxu0
    %v3225 = vadd.f32 0.0, %v3224
    %v3226 = vpop.f32.mrf.mxu0
    %v3227 = vadd.f32 0.0, %v3226
    %3228 = vdwg.mxu0
    %v3229 = vadd.f32 %v388, %v3083
    %v3230 = vadd.f32 %v390, %v3085
    %v3231 = vxor.u32 %v3229, 2147483648
    %v3232 = vxor.u32 %v3230, 2147483648
    %v3233 = vmul.f32 %v3231, 1.442695
    %v3234 = vpow.pop %v3233
    %v3235 = vmul.f32 %v3232, 1.442695
    %v3236 = vpow.pop %v3235
    %v3237 = vadd.f32 %v3234, 1.0
    %v3238 = vadd.f32 %v3236, 1.0
    %v3239 = vrcp.pop %v3237
    %v3240 = vmul.f32 1.0, %v3239
    %v3241 = vrcp.pop %v3238
    %v3242 = vmul.f32 1.0, %v3241
    %v3243 = vadd.f32 %v465, %v3154
    %v3244 = vadd.f32 %v467, %v3156
    %v3245 = vxor.u32 %v3243, 2147483648
    %v3246 = vxor.u32 %v3244, 2147483648
    %v3247 = vmul.f32 %v3245, 1.442695
    %v3248 = vpow.pop %v3247
    %v3249 = vmul.f32 %v3246, 1.442695
    %v3250 = vpow.pop %v3249
    %v3251 = vadd.f32 %v3248, 1.0
    %v3252 = vadd.f32 %v3250, 1.0
    %v3253 = vrcp.pop %v3251
    %v3254 = vmul.f32 1.0, %v3253
    %v3255 = vrcp.pop %v3252
    %v3256 = vmul.f32 1.0, %v3255
    %v3257 = vadd.f32 %v3225, %v996
    %v3258 = vadd.f32 %v3227, %v1000
    %v3259 = vmul.f32 %v3240, %v3257
    %v3260 = vmul.f32 %v3242, %v3258
    %v3261 = vadd.f32 %v542, %v3259
    %v3262 = vadd.f32 %v544, %v3260
    %v3263 = vtanh.pop %v3261
    %v3264 = vtanh.pop %v3262
    %v3265 = vsub.f32 1.0, %v3254
    %v3266 = vsub.f32 1.0, %v3256
    %v3267 = vmul.f32 %v3265, %v3263
    %v3268 = vmul.f32 %v3266, %v3264
    %v3269 = vmul.f32 %v3254, %v3012
    %v3270 = vmul.f32 %v3256, %v3013
    %v3271 = vadd.f32 %v3267, %v3269
    %v3272 = vadd.f32 %v3268, %v3270
    %3273 = vmatprep.subr.mxu0 %v637
    %3274 = vmatpush1.msra.mxu0 %v636
    %3275 = vmatprep.subr.mxu0 %v631
    %3276 = vmatpush1.msra.mxu0 %v630
    %3277 = vmatprep.subr.mxu0 %v625
    %3278 = vmatpush1.msra.mxu0 %v624
    %3279 = vmatprep.subr.mxu0 %v619
    %3280 = vmatpush1.msra.mxu0 %v618
    %3281 = vmatprep.subr.mxu0 %v613
    %3282 = vmatpush1.msra.mxu0 %v612
    %3283 = vmatprep.subr.mxu0 %v607
    %3284 = vmatpush1.msra.mxu0 %v606
    %3285 = vmatprep.subr.mxu0 %v601
    %3286 = vmatpush1.msra.mxu0 %v600
    %3287 = vmatprep.subr.mxu0 %v595
    %3288 = vmatpush1.msra.mxu0 %v594
    %3289 = vmatprep.subr.mxu0 %v589
    %3290 = vmatpush1.msra.mxu0 %v588
    %3291 = vmatprep.subr.mxu0 %v583
    %3292 = vmatpush1.msra.mxu0 %v582
    %3293 = vmatprep.subr.mxu0 %v577
    %3294 = vmatpush1.msra.mxu0 %v576
    %3295 = vmatprep.subr.mxu0 %v571
    %3296 = vmatpush1.msra.mxu0 %v570
    %3297 = vmatprep.subr.mxu0 %v565
    %3298 = vmatpush1.msra.mxu0 %v564
    %3299 = vmatprep.subr.mxu0 %v559
    %3300 = vmatpush1.msra.mxu0 %v558
    %3301 = vmatprep.subr.mxu0 %v553
    %3302 = vmatpush1.msra.mxu0 %v552
    %3303 = vmatprep.subr.mxu0 %v547
    %3304 = vmatpush1.msra.mxu0 %v546
    %3305 = vmatprep.subr.mxu0 %v733
    %3306 = vmatpush2.msra.mxu0 %v732
    %3307 = vmatprep.subr.mxu0 %v727
    %3308 = vmatpush2.msra.mxu0 %v726
    %3309 = vmatprep.subr.mxu0 %v721
    %3310 = vmatpush2.msra.mxu0 %v720
    %3311 = vmatprep.subr.mxu0 %v715
    %3312 = vmatpush2.msra.mxu0 %v714
    %3313 = vmatprep.subr.mxu0 %v709
    %3314 = vmatpush2.msra.mxu0 %v708
    %3315 = vmatprep.subr.mxu0 %v703
    %3316 = vmatpush2.msra.mxu0 %v702
    %3317 = vmatprep.subr.mxu0 %v697
    %3318 = vmatpush2.msra.mxu0 %v696
    %3319 = vmatprep.subr.mxu0 %v691
    %3320 = vmatpush2.msra.mxu0 %v690
    %3321 = vmatprep.subr.mxu0 %v685
    %3322 = vmatpush2.msra.mxu0 %v684
    %3323 = vmatprep.subr.mxu0 %v679
    %3324 = vmatpush2.msra.mxu0 %v678
    %3325 = vmatprep.subr.mxu0 %v673
    %3326 = vmatpush2.msra.mxu0 %v672
    %3327 = vmatprep.subr.mxu0 %v667
    %3328 = vmatpush2.msra.mxu0 %v666
    %3329 = vmatprep.subr.mxu0 %v661
    %3330 = vmatpush2.msra.mxu0 %v660
    %3331 = vmatprep.subr.mxu0 %v655
    %3332 = vmatpush2.msra.mxu0 %v654
    %3333 = vmatprep.subr.mxu0 %v649
    %3334 = vmatpush2.msra.mxu0 %v648
    %3335 = vmatprep.subr.mxu0 %v643
    %3336 = vmatpush2.msra.mxu0 %v642
    %3337 = vmatprep.mubr.f32.mxu0 %v3272
    %3338 = vmatmul.mubr.f32.gmra.mxu0 %v3271
    %v3339 = vpop.f32.mrf.mxu0
    %v3340 = vadd.f32 0.0, %v3339
    %v3341 = vpop.f32.mrf.mxu0
    %v3342 = vadd.f32 0.0, %v3341
    %3343 = vdwg.mxu0
    %3344 = vmatprep.subr.mxu0 %v639
    %3345 = vmatpush1.msra.mxu0 %v638
    %3346 = vmatprep.subr.mxu0 %v633
    %3347 = vmatpush1.msra.mxu0 %v632
    %3348 = vmatprep.subr.mxu0 %v627
    %3349 = vmatpush1.msra.mxu0 %v626
    %3350 = vmatprep.subr.mxu0 %v621
    %3351 = vmatpush1.msra.mxu0 %v620
    %3352 = vmatprep.subr.mxu0 %v615
    %3353 = vmatpush1.msra.mxu0 %v614
    %3354 = vmatprep.subr.mxu0 %v609
    %3355 = vmatpush1.msra.mxu0 %v608
    %3356 = vmatprep.subr.mxu0 %v603
    %3357 = vmatpush1.msra.mxu0 %v602
    %3358 = vmatprep.subr.mxu0 %v597
    %3359 = vmatpush1.msra.mxu0 %v596
    %3360 = vmatprep.subr.mxu0 %v591
    %3361 = vmatpush1.msra.mxu0 %v590
    %3362 = vmatprep.subr.mxu0 %v585
    %3363 = vmatpush1.msra.mxu0 %v584
    %3364 = vmatprep.subr.mxu0 %v579
    %3365 = vmatpush1.msra.mxu0 %v578
    %3366 = vmatprep.subr.mxu0 %v573
    %3367 = vmatpush1.msra.mxu0 %v572
    %3368 = vmatprep.subr.mxu0 %v567
    %3369 = vmatpush1.msra.mxu0 %v566
    %3370 = vmatprep.subr.mxu0 %v561
    %3371 = vmatpush1.msra.mxu0 %v560
    %3372 = vmatprep.subr.mxu0 %v555
    %3373 = vmatpush1.msra.mxu0 %v554
    %3374 = vmatprep.subr.mxu0 %v549
    %3375 = vmatpush1.msra.mxu0 %v548
    %3376 = vmatprep.subr.mxu0 %v735
    %3377 = vmatpush2.msra.mxu0 %v734
    %3378 = vmatprep.subr.mxu0 %v729
    %3379 = vmatpush2.msra.mxu0 %v728
    %3380 = vmatprep.subr.mxu0 %v723
    %3381 = vmatpush2.msra.mxu0 %v722
    %3382 = vmatprep.subr.mxu0 %v717
    %3383 = vmatpush2.msra.mxu0 %v716
    %3384 = vmatprep.subr.mxu0 %v711
    %3385 = vmatpush2.msra.mxu0 %v710
    %3386 = vmatprep.subr.mxu0 %v705
    %3387 = vmatpush2.msra.mxu0 %v704
    %3388 = vmatprep.subr.mxu0 %v699
    %3389 = vmatpush2.msra.mxu0 %v698
    %3390 = vmatprep.subr.mxu0 %v693
    %3391 = vmatpush2.msra.mxu0 %v692
    %3392 = vmatprep.subr.mxu0 %v687
    %3393 = vmatpush2.msra.mxu0 %v686
    %3394 = vmatprep.subr.mxu0 %v681
    %3395 = vmatpush2.msra.mxu0 %v680
    %3396 = vmatprep.subr.mxu0 %v675
    %3397 = vmatpush2.msra.mxu0 %v674
    %3398 = vmatprep.subr.mxu0 %v669
    %3399 = vmatpush2.msra.mxu0 %v668
    %3400 = vmatprep.subr.mxu0 %v663
    %3401 = vmatpush2.msra.mxu0 %v662
    %3402 = vmatprep.subr.mxu0 %v657
    %3403 = vmatpush2.msra.mxu0 %v656
    %3404 = vmatprep.subr.mxu0 %v651
    %3405 = vmatpush2.msra.mxu0 %v650
    %3406 = vmatprep.subr.mxu0 %v645
    %3407 = vmatpush2.msra.mxu0 %v644
    %3408 = vmatprep.mubr.f32.mxu0 %v3272
    %3409 = vmatmul.mubr.f32.gmra.mxu0 %v3271
    %v3410 = vpop.f32.mrf.mxu0
    %v3411 = vadd.f32 0.0, %v3410
    %v3412 = vpop.f32.mrf.mxu0
    %v3413 = vadd.f32 0.0, %v3412
    %3414 = vdwg.mxu0
    %3415 = vmatprep.subr.mxu0 %v641
    %3416 = vmatpush1.msra.mxu0 %v640
    %3417 = vmatprep.subr.mxu0 %v635
    %3418 = vmatpush1.msra.mxu0 %v634
    %3419 = vmatprep.subr.mxu0 %v629
    %3420 = vmatpush1.msra.mxu0 %v628
    %3421 = vmatprep.subr.mxu0 %v623
    %3422 = vmatpush1.msra.mxu0 %v622
    %3423 = vmatprep.subr.mxu0 %v617
    %3424 = vmatpush1.msra.mxu0 %v616
    %3425 = vmatprep.subr.mxu0 %v611
    %3426 = vmatpush1.msra.mxu0 %v610
    %3427 = vmatprep.subr.mxu0 %v605
    %3428 = vmatpush1.msra.mxu0 %v604
    %3429 = vmatprep.subr.mxu0 %v599
    %3430 = vmatpush1.msra.mxu0 %v598
    %3431 = vmatprep.subr.mxu0 %v593
    %3432 = vmatpush1.msra.mxu0 %v592
    %3433 = vmatprep.subr.mxu0 %v587
    %3434 = vmatpush1.msra.mxu0 %v586
    %3435 = vmatprep.subr.mxu0 %v581
    %3436 = vmatpush1.msra.mxu0 %v580
    %3437 = vmatprep.subr.mxu0 %v575
    %3438 = vmatpush1.msra.mxu0 %v574
    %3439 = vmatprep.subr.mxu0 %v569
    %3440 = vmatpush1.msra.mxu0 %v568
    %3441 = vmatprep.subr.mxu0 %v563
    %3442 = vmatpush1.msra.mxu0 %v562
    %3443 = vmatprep.subr.mxu0 %v557
    %3444 = vmatpush1.msra.mxu0 %v556
    %3445 = vmatprep.subr.mxu0 %v551
    %3446 = vmatpush1.msra.mxu0 %v550
    %3447 = vmatprep.subr.mxu0 %v737
    %3448 = vmatpush2.msra.mxu0 %v736
    %3449 = vmatprep.subr.mxu0 %v731
    %3450 = vmatpush2.msra.mxu0 %v730
    %3451 = vmatprep.subr.mxu0 %v725
    %3452 = vmatpush2.msra.mxu0 %v724
    %3453 = vmatprep.subr.mxu0 %v719
    %3454 = vmatpush2.msra.mxu0 %v718
    %3455 = vmatprep.subr.mxu0 %v713
    %3456 = vmatpush2.msra.mxu0 %v712
    %3457 = vmatprep.subr.mxu0 %v707
    %3458 = vmatpush2.msra.mxu0 %v706
    %3459 = vmatprep.subr.mxu0 %v701
    %3460 = vmatpush2.msra.mxu0 %v700
    %3461 = vmatprep.subr.mxu0 %v695
    %3462 = vmatpush2.msra.mxu0 %v694
    %3463 = vmatprep.subr.mxu0 %v689
    %3464 = vmatpush2.msra.mxu0 %v688
    %3465 = vmatprep.subr.mxu0 %v683
    %3466 = vmatpush2.msra.mxu0 %v682
    %3467 = vmatprep.subr.mxu0 %v677
    %3468 = vmatpush2.msra.mxu0 %v676
    %3469 = vmatprep.subr.mxu0 %v671
    %3470 = vmatpush2.msra.mxu0 %v670
    %3471 = vmatprep.subr.mxu0 %v665
    %3472 = vmatpush2.msra.mxu0 %v664
    %3473 = vmatprep.subr.mxu0 %v659
    %3474 = vmatpush2.msra.mxu0 %v658
    %3475 = vmatprep.subr.mxu0 %v653
    %3476 = vmatpush2.msra.mxu0 %v652
    %3477 = vmatprep.subr.mxu0 %v647
    %3478 = vmatpush2.msra.mxu0 %v646
    %3479 = vmatprep.mubr.f32.mxu0 %v3272
    %3480 = vmatmul.mubr.f32.gmra.mxu0 %v3271
    %v3481 = vpop.f32.mrf.mxu0
    %v3482 = vadd.f32 0.0, %v3481
    %v3483 = vpop.f32.mrf.mxu0
    %v3484 = vadd.f32 0.0, %v3483
    %3485 = vdwg.mxu0
    %v3488 = vrot.slane %v3340, 7
    %v3489 = vrot.slane %v3342, 7
    %v3492 = vadd.f32 %v388, %v3488
    %v3493 = vadd.f32 %v390, %v3489
    %v3494 = vxor.u32 %v3492, 2147483648
    %v3495 = vxor.u32 %v3493, 2147483648
    %v3496 = vmul.f32 %v3494, 1.442695
    %v3497 = vpow.pop %v3496
    %v3498 = vmul.f32 %v3495, 1.442695
    %v3499 = vpow.pop %v3498
    %v3500 = vadd.f32 %v3497, 1.0
    %v3501 = vadd.f32 %v3499, 1.0
    %v3502 = vrcp.pop %v3500
    %v3503 = vmul.f32 1.0, %v3502
    %v3504 = vrcp.pop %v3501
    %v3505 = vmul.f32 1.0, %v3504
    %v3508 = vrot.slane %v3411, 7
    %v3509 = vrot.slane %v3413, 7
    %v3512 = vadd.f32 %v465, %v3508
    %v3513 = vadd.f32 %v467, %v3509
    %v3514 = vxor.u32 %v3512, 2147483648
    %v3515 = vxor.u32 %v3513, 2147483648
    %v3516 = vmul.f32 %v3514, 1.442695
    %v3517 = vpow.pop %v3516
    %v3518 = vmul.f32 %v3515, 1.442695
    %v3519 = vpow.pop %v3518
    %v3520 = vadd.f32 %v3517, 1.0
    %v3521 = vadd.f32 %v3519, 1.0
    %v3522 = vrcp.pop %v3520
    %v3523 = vmul.f32 1.0, %v3522
    %v3524 = vrcp.pop %v3521
    %v3525 = vmul.f32 1.0, %v3524
    %v3526 = vadd.f32 %v3482, %v996
    %v3527 = vadd.f32 %v3484, %v1000
    %v3530 = vrot.slane %v3526, 7
    %v3531 = vrot.slane %v3527, 7
    %v3534 = vmul.f32 %v3503, %v3530
    %v3535 = vmul.f32 %v3505, %v3531
    %v3536 = vadd.f32 %v542, %v3534
    %v3537 = vadd.f32 %v544, %v3535
    %v3538 = vtanh.pop %v3536
    %v3539 = vtanh.pop %v3537
    %v3540 = vsub.f32 1.0, %v3523
    %v3541 = vsub.f32 1.0, %v3525
    %v3542 = vmul.f32 %v3540, %v3538
    %v3543 = vmul.f32 %v3541, %v3539
    %v3546 = vrot.slane %v3271, 7
    %v3547 = vrot.slane %v3272, 7
    %v3550 = vmul.f32 %v3523, %v3546
    %v3551 = vmul.f32 %v3525, %v3547
    %v3552 = vadd.f32 %v3542, %v3550
    %v3553 = vadd.f32 %v3543, %v3551
    %v3556 = vrot.slane %v3552, 1
    %v3557 = vrot.slane %v3553, 1
    %3560 = vmatprep.subr.mxu0 %v637
    %3561 = vmatpush1.msra.mxu0 %v636
    %3562 = vmatprep.subr.mxu0 %v631
    %3563 = vmatpush1.msra.mxu0 %v630
    %3564 = vmatprep.subr.mxu0 %v625
    %3565 = vmatpush1.msra.mxu0 %v624
    %3566 = vmatprep.subr.mxu0 %v619
    %3567 = vmatpush1.msra.mxu0 %v618
    %3568 = vmatprep.subr.mxu0 %v613
    %3569 = vmatpush1.msra.mxu0 %v612
    %3570 = vmatprep.subr.mxu0 %v607
    %3571 = vmatpush1.msra.mxu0 %v606
    %3572 = vmatprep.subr.mxu0 %v601
    %3573 = vmatpush1.msra.mxu0 %v600
    %3574 = vmatprep.subr.mxu0 %v595
    %3575 = vmatpush1.msra.mxu0 %v594
    %3576 = vmatprep.subr.mxu0 %v589
    %3577 = vmatpush1.msra.mxu0 %v588
    %3578 = vmatprep.subr.mxu0 %v583
    %3579 = vmatpush1.msra.mxu0 %v582
    %3580 = vmatprep.subr.mxu0 %v577
    %3581 = vmatpush1.msra.mxu0 %v576
    %3582 = vmatprep.subr.mxu0 %v571
    %3583 = vmatpush1.msra.mxu0 %v570
    %3584 = vmatprep.subr.mxu0 %v565
    %3585 = vmatpush1.msra.mxu0 %v564
    %3586 = vmatprep.subr.mxu0 %v559
    %3587 = vmatpush1.msra.mxu0 %v558
    %3588 = vmatprep.subr.mxu0 %v553
    %3589 = vmatpush1.msra.mxu0 %v552
    %3590 = vmatprep.subr.mxu0 %v547
    %3591 = vmatpush1.msra.mxu0 %v546
    %3592 = vmatprep.subr.mxu0 %v733
    %3593 = vmatpush2.msra.mxu0 %v732
    %3594 = vmatprep.subr.mxu0 %v727
    %3595 = vmatpush2.msra.mxu0 %v726
    %3596 = vmatprep.subr.mxu0 %v721
    %3597 = vmatpush2.msra.mxu0 %v720
    %3598 = vmatprep.subr.mxu0 %v715
    %3599 = vmatpush2.msra.mxu0 %v714
    %3600 = vmatprep.subr.mxu0 %v709
    %3601 = vmatpush2.msra.mxu0 %v708
    %3602 = vmatprep.subr.mxu0 %v703
    %3603 = vmatpush2.msra.mxu0 %v702
    %3604 = vmatprep.subr.mxu0 %v697
    %3605 = vmatpush2.msra.mxu0 %v696
    %3606 = vmatprep.subr.mxu0 %v691
    %3607 = vmatpush2.msra.mxu0 %v690
    %3608 = vmatprep.subr.mxu0 %v685
    %3609 = vmatpush2.msra.mxu0 %v684
    %3610 = vmatprep.subr.mxu0 %v679
    %3611 = vmatpush2.msra.mxu0 %v678
    %3612 = vmatprep.subr.mxu0 %v673
    %3613 = vmatpush2.msra.mxu0 %v672
    %3614 = vmatprep.subr.mxu0 %v667
    %3615 = vmatpush2.msra.mxu0 %v666
    %3616 = vmatprep.subr.mxu0 %v661
    %3617 = vmatpush2.msra.mxu0 %v660
    %3618 = vmatprep.subr.mxu0 %v655
    %3619 = vmatpush2.msra.mxu0 %v654
    %3620 = vmatprep.subr.mxu0 %v649
    %3621 = vmatpush2.msra.mxu0 %v648
    %3622 = vmatprep.subr.mxu0 %v643
    %3623 = vmatpush2.msra.mxu0 %v642
    %3624 = vmatprep.mubr.f32.mxu0 %v3557
    %3625 = vmatmul.mubr.f32.gmra.mxu0 %v3556
    %v3626 = vpop.f32.mrf.mxu0
    %v3627 = vadd.f32 0.0, %v3626
    %v3628 = vpop.f32.mrf.mxu0
    %v3629 = vadd.f32 0.0, %v3628
    %3630 = vdwg.mxu0
    %3631 = vmatprep.subr.mxu0 %v639
    %3632 = vmatpush1.msra.mxu0 %v638
    %3633 = vmatprep.subr.mxu0 %v633
    %3634 = vmatpush1.msra.mxu0 %v632
    %3635 = vmatprep.subr.mxu0 %v627
    %3636 = vmatpush1.msra.mxu0 %v626
    %3637 = vmatprep.subr.mxu0 %v621
    %3638 = vmatpush1.msra.mxu0 %v620
    %3639 = vmatprep.subr.mxu0 %v615
    %3640 = vmatpush1.msra.mxu0 %v614
    %3641 = vmatprep.subr.mxu0 %v609
    %3642 = vmatpush1.msra.mxu0 %v608
    %3643 = vmatprep.subr.mxu0 %v603
    %3644 = vmatpush1.msra.mxu0 %v602
    %3645 = vmatprep.subr.mxu0 %v597
    %3646 = vmatpush1.msra.mxu0 %v596
    %3647 = vmatprep.subr.mxu0 %v591
    %3648 = vmatpush1.msra.mxu0 %v590
    %3649 = vmatprep.subr.mxu0 %v585
    %3650 = vmatpush1.msra.mxu0 %v584
    %3651 = vmatprep.subr.mxu0 %v579
    %3652 = vmatpush1.msra.mxu0 %v578
    %3653 = vmatprep.subr.mxu0 %v573
    %3654 = vmatpush1.msra.mxu0 %v572
    %3655 = vmatprep.subr.mxu0 %v567
    %3656 = vmatpush1.msra.mxu0 %v566
    %3657 = vmatprep.subr.mxu0 %v561
    %3658 = vmatpush1.msra.mxu0 %v560
    %3659 = vmatprep.subr.mxu0 %v555
    %3660 = vmatpush1.msra.mxu0 %v554
    %3661 = vmatprep.subr.mxu0 %v549
    %3662 = vmatpush1.msra.mxu0 %v548
    %3663 = vmatprep.subr.mxu0 %v735
    %3664 = vmatpush2.msra.mxu0 %v734
    %3665 = vmatprep.subr.mxu0 %v729
    %3666 = vmatpush2.msra.mxu0 %v728
    %3667 = vmatprep.subr.mxu0 %v723
    %3668 = vmatpush2.msra.mxu0 %v722
    %3669 = vmatprep.subr.mxu0 %v717
    %3670 = vmatpush2.msra.mxu0 %v716
    %3671 = vmatprep.subr.mxu0 %v711
    %3672 = vmatpush2.msra.mxu0 %v710
    %3673 = vmatprep.subr.mxu0 %v705
    %3674 = vmatpush2.msra.mxu0 %v704
    %3675 = vmatprep.subr.mxu0 %v699
    %3676 = vmatpush2.msra.mxu0 %v698
    %3677 = vmatprep.subr.mxu0 %v693
    %3678 = vmatpush2.msra.mxu0 %v692
    %3679 = vmatprep.subr.mxu0 %v687
    %3680 = vmatpush2.msra.mxu0 %v686
    %3681 = vmatprep.subr.mxu0 %v681
    %3682 = vmatpush2.msra.mxu0 %v680
    %3683 = vmatprep.subr.mxu0 %v675
    %3684 = vmatpush2.msra.mxu0 %v674
    %3685 = vmatprep.subr.mxu0 %v669
    %3686 = vmatpush2.msra.mxu0 %v668
    %3687 = vmatprep.subr.mxu0 %v663
    %3688 = vmatpush2.msra.mxu0 %v662
    %3689 = vmatprep.subr.mxu0 %v657
    %3690 = vmatpush2.msra.mxu0 %v656
    %3691 = vmatprep.subr.mxu0 %v651
    %3692 = vmatpush2.msra.mxu0 %v650
    %3693 = vmatprep.subr.mxu0 %v645
    %3694 = vmatpush2.msra.mxu0 %v644
    %3695 = vmatprep.mubr.f32.mxu0 %v3557
    %3696 = vmatmul.mubr.f32.gmra.mxu0 %v3556
    %v3697 = vpop.f32.mrf.mxu0
    %v3698 = vadd.f32 0.0, %v3697
    %v3699 = vpop.f32.mrf.mxu0
    %v3700 = vadd.f32 0.0, %v3699
    %3701 = vdwg.mxu0
    %3702 = vmatprep.subr.mxu0 %v641
    %3703 = vmatpush1.msra.mxu0 %v640
    %3704 = vmatprep.subr.mxu0 %v635
    %3705 = vmatpush1.msra.mxu0 %v634
    %3706 = vmatprep.subr.mxu0 %v629
    %3707 = vmatpush1.msra.mxu0 %v628
    %3708 = vmatprep.subr.mxu0 %v623
    %3709 = vmatpush1.msra.mxu0 %v622
    %3710 = vmatprep.subr.mxu0 %v617
    %3711 = vmatpush1.msra.mxu0 %v616
    %3712 = vmatprep.subr.mxu0 %v611
    %3713 = vmatpush1.msra.mxu0 %v610
    %3714 = vmatprep.subr.mxu0 %v605
    %3715 = vmatpush1.msra.mxu0 %v604
    %3716 = vmatprep.subr.mxu0 %v599
    %3717 = vmatpush1.msra.mxu0 %v598
    %3718 = vmatprep.subr.mxu0 %v593
    %3719 = vmatpush1.msra.mxu0 %v592
    %3720 = vmatprep.subr.mxu0 %v587
    %3721 = vmatpush1.msra.mxu0 %v586
    %3722 = vmatprep.subr.mxu0 %v581
    %3723 = vmatpush1.msra.mxu0 %v580
    %3724 = vmatprep.subr.mxu0 %v575
    %3725 = vmatpush1.msra.mxu0 %v574
    %3726 = vmatprep.subr.mxu0 %v569
    %3727 = vmatpush1.msra.mxu0 %v568
    %3728 = vmatprep.subr.mxu0 %v563
    %3729 = vmatpush1.msra.mxu0 %v562
    %3730 = vmatprep.subr.mxu0 %v557
    %3731 = vmatpush1.msra.mxu0 %v556
    %3732 = vmatprep.subr.mxu0 %v551
    %3733 = vmatpush1.msra.mxu0 %v550
    %3734 = vmatprep.subr.mxu0 %v737
    %3735 = vmatpush2.msra.mxu0 %v736
    %3736 = vmatprep.subr.mxu0 %v731
    %3737 = vmatpush2.msra.mxu0 %v730
    %3738 = vmatprep.subr.mxu0 %v725
    %3739 = vmatpush2.msra.mxu0 %v724
    %3740 = vmatprep.subr.mxu0 %v719
    %3741 = vmatpush2.msra.mxu0 %v718
    %3742 = vmatprep.subr.mxu0 %v713
    %3743 = vmatpush2.msra.mxu0 %v712
    %3744 = vmatprep.subr.mxu0 %v707
    %3745 = vmatpush2.msra.mxu0 %v706
    %3746 = vmatprep.subr.mxu0 %v701
    %3747 = vmatpush2.msra.mxu0 %v700
    %3748 = vmatprep.subr.mxu0 %v695
    %3749 = vmatpush2.msra.mxu0 %v694
    %3750 = vmatprep.subr.mxu0 %v689
    %3751 = vmatpush2.msra.mxu0 %v688
    %3752 = vmatprep.subr.mxu0 %v683
    %3753 = vmatpush2.msra.mxu0 %v682
    %3754 = vmatprep.subr.mxu0 %v677
    %3755 = vmatpush2.msra.mxu0 %v676
    %3756 = vmatprep.subr.mxu0 %v671
    %3757 = vmatpush2.msra.mxu0 %v670
    %3758 = vmatprep.subr.mxu0 %v665
    %3759 = vmatpush2.msra.mxu0 %v664
    %3760 = vmatprep.subr.mxu0 %v659
    %3761 = vmatpush2.msra.mxu0 %v658
    %3762 = vmatprep.subr.mxu0 %v653
    %3763 = vmatpush2.msra.mxu0 %v652
    %3764 = vmatprep.subr.mxu0 %v647
    %3765 = vmatpush2.msra.mxu0 %v646
    %3766 = vmatprep.mubr.f32.mxu0 %v3557
    %3767 = vmatmul.mubr.f32.gmra.mxu0 %v3556
    %v3768 = vpop.f32.mrf.mxu0
    %v3769 = vadd.f32 0.0, %v3768
    %v3770 = vpop.f32.mrf.mxu0
    %v3771 = vadd.f32 0.0, %v3770
    %3772 = vdwg.mxu0
    %v3775 = vrot.slane %v3627, 6
    %v3776 = vrot.slane %v3629, 6
    %v3779 = vadd.f32 %v388, %v3775
    %v3780 = vadd.f32 %v390, %v3776
    %v3781 = vxor.u32 %v3779, 2147483648
    %v3782 = vxor.u32 %v3780, 2147483648
    %v3783 = vmul.f32 %v3781, 1.442695
    %v3784 = vpow.pop %v3783
    %v3785 = vmul.f32 %v3782, 1.442695
    %v3786 = vpow.pop %v3785
    %v3787 = vadd.f32 %v3784, 1.0
    %v3788 = vadd.f32 %v3786, 1.0
    %v3789 = vrcp.pop %v3787
    %v3790 = vmul.f32 1.0, %v3789
    %v3791 = vrcp.pop %v3788
    %v3792 = vmul.f32 1.0, %v3791
    %v3795 = vrot.slane %v3698, 6
    %v3796 = vrot.slane %v3700, 6
    %v3799 = vadd.f32 %v465, %v3795
    %v3800 = vadd.f32 %v467, %v3796
    %v3801 = vxor.u32 %v3799, 2147483648
    %v3802 = vxor.u32 %v3800, 2147483648
    %v3803 = vmul.f32 %v3801, 1.442695
    %v3804 = vpow.pop %v3803
    %v3805 = vmul.f32 %v3802, 1.442695
    %v3806 = vpow.pop %v3805
    %v3807 = vadd.f32 %v3804, 1.0
    %v3808 = vadd.f32 %v3806, 1.0
    %v3809 = vrcp.pop %v3807
    %v3810 = vmul.f32 1.0, %v3809
    %v3811 = vrcp.pop %v3808
    %v3812 = vmul.f32 1.0, %v3811
    %v3813 = vadd.f32 %v3769, %v996
    %v3814 = vadd.f32 %v3771, %v1000
    %v3817 = vrot.slane %v3813, 6
    %v3818 = vrot.slane %v3814, 6
    %v3821 = vmul.f32 %v3790, %v3817
    %v3822 = vmul.f32 %v3792, %v3818
    %v3823 = vadd.f32 %v542, %v3821
    %v3824 = vadd.f32 %v544, %v3822
    %v3825 = vtanh.pop %v3823
    %v3826 = vtanh.pop %v3824
    %v3827 = vsub.f32 1.0, %v3810
    %v3828 = vsub.f32 1.0, %v3812
    %v3829 = vmul.f32 %v3827, %v3825
    %v3830 = vmul.f32 %v3828, %v3826
    %v3831 = vrot.slane %v3552, 7
    %v3832 = vrot.slane %v3553, 7
    %v3835 = vmul.f32 %v3810, %v3831
    %v3836 = vmul.f32 %v3812, %v3832
    %v3837 = vadd.f32 %v3829, %v3835
    %v3838 = vadd.f32 %v3830, %v3836
    %v3841 = vrot.slane %v3837, 2
    %v3842 = vrot.slane %v3838, 2
    %3845 = vmatprep.subr.mxu0 %v637
    %3846 = vmatpush1.msra.mxu0 %v636
    %3847 = vmatprep.subr.mxu0 %v631
    %3848 = vmatpush1.msra.mxu0 %v630
    %3849 = vmatprep.subr.mxu0 %v625
    %3850 = vmatpush1.msra.mxu0 %v624
    %3851 = vmatprep.subr.mxu0 %v619
    %3852 = vmatpush1.msra.mxu0 %v618
    %3853 = vmatprep.subr.mxu0 %v613
    %3854 = vmatpush1.msra.mxu0 %v612
    %3855 = vmatprep.subr.mxu0 %v607
    %3856 = vmatpush1.msra.mxu0 %v606
    %3857 = vmatprep.subr.mxu0 %v601
    %3858 = vmatpush1.msra.mxu0 %v600
    %3859 = vmatprep.subr.mxu0 %v595
    %3860 = vmatpush1.msra.mxu0 %v594
    %3861 = vmatprep.subr.mxu0 %v589
    %3862 = vmatpush1.msra.mxu0 %v588
    %3863 = vmatprep.subr.mxu0 %v583
    %3864 = vmatpush1.msra.mxu0 %v582
    %3865 = vmatprep.subr.mxu0 %v577
    %3866 = vmatpush1.msra.mxu0 %v576
    %3867 = vmatprep.subr.mxu0 %v571
    %3868 = vmatpush1.msra.mxu0 %v570
    %3869 = vmatprep.subr.mxu0 %v565
    %3870 = vmatpush1.msra.mxu0 %v564
    %3871 = vmatprep.subr.mxu0 %v559
    %3872 = vmatpush1.msra.mxu0 %v558
    %3873 = vmatprep.subr.mxu0 %v553
    %3874 = vmatpush1.msra.mxu0 %v552
    %3875 = vmatprep.subr.mxu0 %v547
    %3876 = vmatpush1.msra.mxu0 %v546
    %3877 = vmatprep.subr.mxu0 %v733
    %3878 = vmatpush2.msra.mxu0 %v732
    %3879 = vmatprep.subr.mxu0 %v727
    %3880 = vmatpush2.msra.mxu0 %v726
    %3881 = vmatprep.subr.mxu0 %v721
    %3882 = vmatpush2.msra.mxu0 %v720
    %3883 = vmatprep.subr.mxu0 %v715
    %3884 = vmatpush2.msra.mxu0 %v714
    %3885 = vmatprep.subr.mxu0 %v709
    %3886 = vmatpush2.msra.mxu0 %v708
    %3887 = vmatprep.subr.mxu0 %v703
    %3888 = vmatpush2.msra.mxu0 %v702
    %3889 = vmatprep.subr.mxu0 %v697
    %3890 = vmatpush2.msra.mxu0 %v696
    %3891 = vmatprep.subr.mxu0 %v691
    %3892 = vmatpush2.msra.mxu0 %v690
    %3893 = vmatprep.subr.mxu0 %v685
    %3894 = vmatpush2.msra.mxu0 %v684
    %3895 = vmatprep.subr.mxu0 %v679
    %3896 = vmatpush2.msra.mxu0 %v678
    %3897 = vmatprep.subr.mxu0 %v673
    %3898 = vmatpush2.msra.mxu0 %v672
    %3899 = vmatprep.subr.mxu0 %v667
    %3900 = vmatpush2.msra.mxu0 %v666
    %3901 = vmatprep.subr.mxu0 %v661
    %3902 = vmatpush2.msra.mxu0 %v660
    %3903 = vmatprep.subr.mxu0 %v655
    %3904 = vmatpush2.msra.mxu0 %v654
    %3905 = vmatprep.subr.mxu0 %v649
    %3906 = vmatpush2.msra.mxu0 %v648
    %3907 = vmatprep.subr.mxu0 %v643
    %3908 = vmatpush2.msra.mxu0 %v642
    %3909 = vmatprep.mubr.f32.mxu0 %v3842
    %3910 = vmatmul.mubr.f32.gmra.mxu0 %v3841
    %v3911 = vpop.f32.mrf.mxu0
    %v3912 = vadd.f32 0.0, %v3911
    %v3913 = vpop.f32.mrf.mxu0
    %v3914 = vadd.f32 0.0, %v3913
    %3915 = vdwg.mxu0
    %3916 = vmatprep.subr.mxu0 %v639
    %3917 = vmatpush1.msra.mxu0 %v638
    %3918 = vmatprep.subr.mxu0 %v633
    %3919 = vmatpush1.msra.mxu0 %v632
    %3920 = vmatprep.subr.mxu0 %v627
    %3921 = vmatpush1.msra.mxu0 %v626
    %3922 = vmatprep.subr.mxu0 %v621
    %3923 = vmatpush1.msra.mxu0 %v620
    %3924 = vmatprep.subr.mxu0 %v615
    %3925 = vmatpush1.msra.mxu0 %v614
    %3926 = vmatprep.subr.mxu0 %v609
    %3927 = vmatpush1.msra.mxu0 %v608
    %3928 = vmatprep.subr.mxu0 %v603
    %3929 = vmatpush1.msra.mxu0 %v602
    %3930 = vmatprep.subr.mxu0 %v597
    %3931 = vmatpush1.msra.mxu0 %v596
    %3932 = vmatprep.subr.mxu0 %v591
    %3933 = vmatpush1.msra.mxu0 %v590
    %3934 = vmatprep.subr.mxu0 %v585
    %3935 = vmatpush1.msra.mxu0 %v584
    %3936 = vmatprep.subr.mxu0 %v579
    %3937 = vmatpush1.msra.mxu0 %v578
    %3938 = vmatprep.subr.mxu0 %v573
    %3939 = vmatpush1.msra.mxu0 %v572
    %3940 = vmatprep.subr.mxu0 %v567
    %3941 = vmatpush1.msra.mxu0 %v566
    %3942 = vmatprep.subr.mxu0 %v561
    %3943 = vmatpush1.msra.mxu0 %v560
    %3944 = vmatprep.subr.mxu0 %v555
    %3945 = vmatpush1.msra.mxu0 %v554
    %3946 = vmatprep.subr.mxu0 %v549
    %3947 = vmatpush1.msra.mxu0 %v548
    %3948 = vmatprep.subr.mxu0 %v735
    %3949 = vmatpush2.msra.mxu0 %v734
    %3950 = vmatprep.subr.mxu0 %v729
    %3951 = vmatpush2.msra.mxu0 %v728
    %3952 = vmatprep.subr.mxu0 %v723
    %3953 = vmatpush2.msra.mxu0 %v722
    %3954 = vmatprep.subr.mxu0 %v717
    %3955 = vmatpush2.msra.mxu0 %v716
    %3956 = vmatprep.subr.mxu0 %v711
    %3957 = vmatpush2.msra.mxu0 %v710
    %3958 = vmatprep.subr.mxu0 %v705
    %3959 = vmatpush2.msra.mxu0 %v704
    %3960 = vmatprep.subr.mxu0 %v699
    %3961 = vmatpush2.msra.mxu0 %v698
    %3962 = vmatprep.subr.mxu0 %v693
    %3963 = vmatpush2.msra.mxu0 %v692
    %3964 = vmatprep.subr.mxu0 %v687
    %3965 = vmatpush2.msra.mxu0 %v686
    %3966 = vmatprep.subr.mxu0 %v681
    %3967 = vmatpush2.msra.mxu0 %v680
    %3968 = vmatprep.subr.mxu0 %v675
    %3969 = vmatpush2.msra.mxu0 %v674
    %3970 = vmatprep.subr.mxu0 %v669
    %3971 = vmatpush2.msra.mxu0 %v668
    %3972 = vmatprep.subr.mxu0 %v663
    %3973 = vmatpush2.msra.mxu0 %v662
    %3974 = vmatprep.subr.mxu0 %v657
    %3975 = vmatpush2.msra.mxu0 %v656
    %3976 = vmatprep.subr.mxu0 %v651
    %3977 = vmatpush2.msra.mxu0 %v650
    %3978 = vmatprep.subr.mxu0 %v645
    %3979 = vmatpush2.msra.mxu0 %v644
    %3980 = vmatprep.mubr.f32.mxu0 %v3842
    %3981 = vmatmul.mubr.f32.gmra.mxu0 %v3841
    %v3982 = vpop.f32.mrf.mxu0
    %v3983 = vadd.f32 0.0, %v3982
    %v3984 = vpop.f32.mrf.mxu0
    %v3985 = vadd.f32 0.0, %v3984
    %3986 = vdwg.mxu0
    %3987 = vmatprep.subr.mxu0 %v641
    %3988 = vmatpush1.msra.mxu0 %v640
    %3989 = vmatprep.subr.mxu0 %v635
    %3990 = vmatpush1.msra.mxu0 %v634
    %3991 = vmatprep.subr.mxu0 %v629
    %3992 = vmatpush1.msra.mxu0 %v628
    %3993 = vmatprep.subr.mxu0 %v623
    %3994 = vmatpush1.msra.mxu0 %v622
    %3995 = vmatprep.subr.mxu0 %v617
    %3996 = vmatpush1.msra.mxu0 %v616
    %3997 = vmatprep.subr.mxu0 %v611
    %3998 = vmatpush1.msra.mxu0 %v610
    %3999 = vmatprep.subr.mxu0 %v605
    %4000 = vmatpush1.msra.mxu0 %v604
    %4001 = vmatprep.subr.mxu0 %v599
    %4002 = vmatpush1.msra.mxu0 %v598
    %4003 = vmatprep.subr.mxu0 %v593
    %4004 = vmatpush1.msra.mxu0 %v592
    %4005 = vmatprep.subr.mxu0 %v587
    %4006 = vmatpush1.msra.mxu0 %v586
    %4007 = vmatprep.subr.mxu0 %v581
    %4008 = vmatpush1.msra.mxu0 %v580
    %4009 = vmatprep.subr.mxu0 %v575
    %4010 = vmatpush1.msra.mxu0 %v574
    %4011 = vmatprep.subr.mxu0 %v569
    %4012 = vmatpush1.msra.mxu0 %v568
    %4013 = vmatprep.subr.mxu0 %v563
    %4014 = vmatpush1.msra.mxu0 %v562
    %4015 = vmatprep.subr.mxu0 %v557
    %4016 = vmatpush1.msra.mxu0 %v556
    %4017 = vmatprep.subr.mxu0 %v551
    %4018 = vmatpush1.msra.mxu0 %v550
    %4019 = vmatprep.subr.mxu0 %v737
    %4020 = vmatpush2.msra.mxu0 %v736
    %4021 = vmatprep.subr.mxu0 %v731
    %4022 = vmatpush2.msra.mxu0 %v730
    %4023 = vmatprep.subr.mxu0 %v725
    %4024 = vmatpush2.msra.mxu0 %v724
    %4025 = vmatprep.subr.mxu0 %v719
    %4026 = vmatpush2.msra.mxu0 %v718
    %4027 = vmatprep.subr.mxu0 %v713
    %4028 = vmatpush2.msra.mxu0 %v712
    %4029 = vmatprep.subr.mxu0 %v707
    %4030 = vmatpush2.msra.mxu0 %v706
    %4031 = vmatprep.subr.mxu0 %v701
    %4032 = vmatpush2.msra.mxu0 %v700
    %4033 = vmatprep.subr.mxu0 %v695
    %4034 = vmatpush2.msra.mxu0 %v694
    %4035 = vmatprep.subr.mxu0 %v689
    %4036 = vmatpush2.msra.mxu0 %v688
    %4037 = vmatprep.subr.mxu0 %v683
    %4038 = vmatpush2.msra.mxu0 %v682
    %4039 = vmatprep.subr.mxu0 %v677
    %4040 = vmatpush2.msra.mxu0 %v676
    %4041 = vmatprep.subr.mxu0 %v671
    %4042 = vmatpush2.msra.mxu0 %v670
    %4043 = vmatprep.subr.mxu0 %v665
    %4044 = vmatpush2.msra.mxu0 %v664
    %4045 = vmatprep.subr.mxu0 %v659
    %4046 = vmatpush2.msra.mxu0 %v658
    %4047 = vmatprep.subr.mxu0 %v653
    %4048 = vmatpush2.msra.mxu0 %v652
    %4049 = vmatprep.subr.mxu0 %v647
    %4050 = vmatpush2.msra.mxu0 %v646
    %4051 = vmatprep.mubr.f32.mxu0 %v3842
    %4052 = vmatmul.mubr.f32.gmra.mxu0 %v3841
    %v4053 = vpop.f32.mrf.mxu0
    %v4054 = vadd.f32 0.0, %v4053
    %v4055 = vpop.f32.mrf.mxu0
    %v4056 = vadd.f32 0.0, %v4055
    %4057 = vdwg.mxu0
    %v4060 = vrot.slane %v3912, 5
    %v4061 = vrot.slane %v3914, 5
    %v4064 = vadd.f32 %v388, %v4060
    %v4065 = vadd.f32 %v390, %v4061
    %v4066 = vxor.u32 %v4064, 2147483648
    %v4067 = vxor.u32 %v4065, 2147483648
    %v4068 = vmul.f32 %v4066, 1.442695
    %v4069 = vpow.pop %v4068
    %v4070 = vmul.f32 %v4067, 1.442695
    %v4071 = vpow.pop %v4070
    %v4072 = vadd.f32 %v4069, 1.0
    %v4073 = vadd.f32 %v4071, 1.0
    %v4074 = vrcp.pop %v4072
    %v4075 = vmul.f32 1.0, %v4074
    %v4076 = vrcp.pop %v4073
    %v4077 = vmul.f32 1.0, %v4076
    %v4080 = vrot.slane %v3983, 5
    %v4081 = vrot.slane %v3985, 5
    %v4084 = vadd.f32 %v465, %v4080
    %v4085 = vadd.f32 %v467, %v4081
    %v4086 = vxor.u32 %v4084, 2147483648
    %v4087 = vxor.u32 %v4085, 2147483648
    %v4088 = vmul.f32 %v4086, 1.442695
    %v4089 = vpow.pop %v4088
    %v4090 = vmul.f32 %v4087, 1.442695
    %v4091 = vpow.pop %v4090
    %v4092 = vadd.f32 %v4089, 1.0
    %v4093 = vadd.f32 %v4091, 1.0
    %v4094 = vrcp.pop %v4092
    %v4095 = vmul.f32 1.0, %v4094
    %v4096 = vrcp.pop %v4093
    %v4097 = vmul.f32 1.0, %v4096
    %v4098 = vadd.f32 %v4054, %v996
    %v4099 = vadd.f32 %v4056, %v1000
    %v4102 = vrot.slane %v4098, 5
    %v4103 = vrot.slane %v4099, 5
    %v4106 = vmul.f32 %v4075, %v4102
    %v4107 = vmul.f32 %v4077, %v4103
    %v4108 = vadd.f32 %v542, %v4106
    %v4109 = vadd.f32 %v544, %v4107
    %v4110 = vtanh.pop %v4108
    %v4111 = vtanh.pop %v4109
    %v4112 = vsub.f32 1.0, %v4095
    %v4113 = vsub.f32 1.0, %v4097
    %v4114 = vmul.f32 %v4112, %v4110
    %v4115 = vmul.f32 %v4113, %v4111
    %v4116 = vrot.slane %v3837, 7
    %v4117 = vrot.slane %v3838, 7
    %v4120 = vmul.f32 %v4095, %v4116
    %v4121 = vmul.f32 %v4097, %v4117
    %v4122 = vadd.f32 %v4114, %v4120
    %v4123 = vadd.f32 %v4115, %v4121
    %v4126 = vrot.slane %v4122, 3
    %v4127 = vrot.slane %v4123, 3
    %4130 = vmatprep.subr.mxu0 %v637
    %4131 = vmatpush1.msra.mxu0 %v636
    %4132 = vmatprep.subr.mxu0 %v631
    %4133 = vmatpush1.msra.mxu0 %v630
    %4134 = vmatprep.subr.mxu0 %v625
    %4135 = vmatpush1.msra.mxu0 %v624
    %4136 = vmatprep.subr.mxu0 %v619
    %4137 = vmatpush1.msra.mxu0 %v618
    %4138 = vmatprep.subr.mxu0 %v613
    %4139 = vmatpush1.msra.mxu0 %v612
    %4140 = vmatprep.subr.mxu0 %v607
    %4141 = vmatpush1.msra.mxu0 %v606
    %4142 = vmatprep.subr.mxu0 %v601
    %4143 = vmatpush1.msra.mxu0 %v600
    %4144 = vmatprep.subr.mxu0 %v595
    %4145 = vmatpush1.msra.mxu0 %v594
    %4146 = vmatprep.subr.mxu0 %v589
    %4147 = vmatpush1.msra.mxu0 %v588
    %4148 = vmatprep.subr.mxu0 %v583
    %4149 = vmatpush1.msra.mxu0 %v582
    %4150 = vmatprep.subr.mxu0 %v577
    %4151 = vmatpush1.msra.mxu0 %v576
    %4152 = vmatprep.subr.mxu0 %v571
    %4153 = vmatpush1.msra.mxu0 %v570
    %4154 = vmatprep.subr.mxu0 %v565
    %4155 = vmatpush1.msra.mxu0 %v564
    %4156 = vmatprep.subr.mxu0 %v559
    %4157 = vmatpush1.msra.mxu0 %v558
    %4158 = vmatprep.subr.mxu0 %v553
    %4159 = vmatpush1.msra.mxu0 %v552
    %4160 = vmatprep.subr.mxu0 %v547
    %4161 = vmatpush1.msra.mxu0 %v546
    %4162 = vmatprep.subr.mxu0 %v733
    %4163 = vmatpush2.msra.mxu0 %v732
    %4164 = vmatprep.subr.mxu0 %v727
    %4165 = vmatpush2.msra.mxu0 %v726
    %4166 = vmatprep.subr.mxu0 %v721
    %4167 = vmatpush2.msra.mxu0 %v720
    %4168 = vmatprep.subr.mxu0 %v715
    %4169 = vmatpush2.msra.mxu0 %v714
    %4170 = vmatprep.subr.mxu0 %v709
    %4171 = vmatpush2.msra.mxu0 %v708
    %4172 = vmatprep.subr.mxu0 %v703
    %4173 = vmatpush2.msra.mxu0 %v702
    %4174 = vmatprep.subr.mxu0 %v697
    %4175 = vmatpush2.msra.mxu0 %v696
    %4176 = vmatprep.subr.mxu0 %v691
    %4177 = vmatpush2.msra.mxu0 %v690
    %4178 = vmatprep.subr.mxu0 %v685
    %4179 = vmatpush2.msra.mxu0 %v684
    %4180 = vmatprep.subr.mxu0 %v679
    %4181 = vmatpush2.msra.mxu0 %v678
    %4182 = vmatprep.subr.mxu0 %v673
    %4183 = vmatpush2.msra.mxu0 %v672
    %4184 = vmatprep.subr.mxu0 %v667
    %4185 = vmatpush2.msra.mxu0 %v666
    %4186 = vmatprep.subr.mxu0 %v661
    %4187 = vmatpush2.msra.mxu0 %v660
    %4188 = vmatprep.subr.mxu0 %v655
    %4189 = vmatpush2.msra.mxu0 %v654
    %4190 = vmatprep.subr.mxu0 %v649
    %4191 = vmatpush2.msra.mxu0 %v648
    %4192 = vmatprep.subr.mxu0 %v643
    %4193 = vmatpush2.msra.mxu0 %v642
    %4194 = vmatprep.mubr.f32.mxu0 %v4127
    %4195 = vmatmul.mubr.f32.gmra.mxu0 %v4126
    %v4196 = vpop.f32.mrf.mxu0
    %v4197 = vadd.f32 0.0, %v4196
    %v4198 = vpop.f32.mrf.mxu0
    %v4199 = vadd.f32 0.0, %v4198
    %4200 = vdwg.mxu0
    %4201 = vmatprep.subr.mxu0 %v639
    %4202 = vmatpush1.msra.mxu0 %v638
    %4203 = vmatprep.subr.mxu0 %v633
    %4204 = vmatpush1.msra.mxu0 %v632
    %4205 = vmatprep.subr.mxu0 %v627
    %4206 = vmatpush1.msra.mxu0 %v626
    %4207 = vmatprep.subr.mxu0 %v621
    %4208 = vmatpush1.msra.mxu0 %v620
    %4209 = vmatprep.subr.mxu0 %v615
    %4210 = vmatpush1.msra.mxu0 %v614
    %4211 = vmatprep.subr.mxu0 %v609
    %4212 = vmatpush1.msra.mxu0 %v608
    %4213 = vmatprep.subr.mxu0 %v603
    %4214 = vmatpush1.msra.mxu0 %v602
    %4215 = vmatprep.subr.mxu0 %v597
    %4216 = vmatpush1.msra.mxu0 %v596
    %4217 = vmatprep.subr.mxu0 %v591
    %4218 = vmatpush1.msra.mxu0 %v590
    %4219 = vmatprep.subr.mxu0 %v585
    %4220 = vmatpush1.msra.mxu0 %v584
    %4221 = vmatprep.subr.mxu0 %v579
    %4222 = vmatpush1.msra.mxu0 %v578
    %4223 = vmatprep.subr.mxu0 %v573
    %4224 = vmatpush1.msra.mxu0 %v572
    %4225 = vmatprep.subr.mxu0 %v567
    %4226 = vmatpush1.msra.mxu0 %v566
    %4227 = vmatprep.subr.mxu0 %v561
    %4228 = vmatpush1.msra.mxu0 %v560
    %4229 = vmatprep.subr.mxu0 %v555
    %4230 = vmatpush1.msra.mxu0 %v554
    %4231 = vmatprep.subr.mxu0 %v549
    %4232 = vmatpush1.msra.mxu0 %v548
    %4233 = vmatprep.subr.mxu0 %v735
    %4234 = vmatpush2.msra.mxu0 %v734
    %4235 = vmatprep.subr.mxu0 %v729
    %4236 = vmatpush2.msra.mxu0 %v728
    %4237 = vmatprep.subr.mxu0 %v723
    %4238 = vmatpush2.msra.mxu0 %v722
    %4239 = vmatprep.subr.mxu0 %v717
    %4240 = vmatpush2.msra.mxu0 %v716
    %4241 = vmatprep.subr.mxu0 %v711
    %4242 = vmatpush2.msra.mxu0 %v710
    %4243 = vmatprep.subr.mxu0 %v705
    %4244 = vmatpush2.msra.mxu0 %v704
    %4245 = vmatprep.subr.mxu0 %v699
    %4246 = vmatpush2.msra.mxu0 %v698
    %4247 = vmatprep.subr.mxu0 %v693
    %4248 = vmatpush2.msra.mxu0 %v692
    %4249 = vmatprep.subr.mxu0 %v687
    %4250 = vmatpush2.msra.mxu0 %v686
    %4251 = vmatprep.subr.mxu0 %v681
    %4252 = vmatpush2.msra.mxu0 %v680
    %4253 = vmatprep.subr.mxu0 %v675
    %4254 = vmatpush2.msra.mxu0 %v674
    %4255 = vmatprep.subr.mxu0 %v669
    %4256 = vmatpush2.msra.mxu0 %v668
    %4257 = vmatprep.subr.mxu0 %v663
    %4258 = vmatpush2.msra.mxu0 %v662
    %4259 = vmatprep.subr.mxu0 %v657
    %4260 = vmatpush2.msra.mxu0 %v656
    %4261 = vmatprep.subr.mxu0 %v651
    %4262 = vmatpush2.msra.mxu0 %v650
    %4263 = vmatprep.subr.mxu0 %v645
    %4264 = vmatpush2.msra.mxu0 %v644
    %4265 = vmatprep.mubr.f32.mxu0 %v4127
    %4266 = vmatmul.mubr.f32.gmra.mxu0 %v4126
    %v4267 = vpop.f32.mrf.mxu0
    %v4268 = vadd.f32 0.0, %v4267
    %v4269 = vpop.f32.mrf.mxu0
    %v4270 = vadd.f32 0.0, %v4269
    %4271 = vdwg.mxu0
    %4272 = vmatprep.subr.mxu0 %v641
    %4273 = vmatpush1.msra.mxu0 %v640
    %4274 = vmatprep.subr.mxu0 %v635
    %4275 = vmatpush1.msra.mxu0 %v634
    %4276 = vmatprep.subr.mxu0 %v629
    %4277 = vmatpush1.msra.mxu0 %v628
    %4278 = vmatprep.subr.mxu0 %v623
    %4279 = vmatpush1.msra.mxu0 %v622
    %4280 = vmatprep.subr.mxu0 %v617
    %4281 = vmatpush1.msra.mxu0 %v616
    %4282 = vmatprep.subr.mxu0 %v611
    %4283 = vmatpush1.msra.mxu0 %v610
    %4284 = vmatprep.subr.mxu0 %v605
    %4285 = vmatpush1.msra.mxu0 %v604
    %4286 = vmatprep.subr.mxu0 %v599
    %4287 = vmatpush1.msra.mxu0 %v598
    %4288 = vmatprep.subr.mxu0 %v593
    %4289 = vmatpush1.msra.mxu0 %v592
    %4290 = vmatprep.subr.mxu0 %v587
    %4291 = vmatpush1.msra.mxu0 %v586
    %4292 = vmatprep.subr.mxu0 %v581
    %4293 = vmatpush1.msra.mxu0 %v580
    %4294 = vmatprep.subr.mxu0 %v575
    %4295 = vmatpush1.msra.mxu0 %v574
    %4296 = vmatprep.subr.mxu0 %v569
    %4297 = vmatpush1.msra.mxu0 %v568
    %4298 = vmatprep.subr.mxu0 %v563
    %4299 = vmatpush1.msra.mxu0 %v562
    %4300 = vmatprep.subr.mxu0 %v557
    %4301 = vmatpush1.msra.mxu0 %v556
    %4302 = vmatprep.subr.mxu0 %v551
    %4303 = vmatpush1.msra.mxu0 %v550
    %4304 = vmatprep.subr.mxu0 %v737
    %4305 = vmatpush2.msra.mxu0 %v736
    %4306 = vmatprep.subr.mxu0 %v731
    %4307 = vmatpush2.msra.mxu0 %v730
    %4308 = vmatprep.subr.mxu0 %v725
    %4309 = vmatpush2.msra.mxu0 %v724
    %4310 = vmatprep.subr.mxu0 %v719
    %4311 = vmatpush2.msra.mxu0 %v718
    %4312 = vmatprep.subr.mxu0 %v713
    %4313 = vmatpush2.msra.mxu0 %v712
    %4314 = vmatprep.subr.mxu0 %v707
    %4315 = vmatpush2.msra.mxu0 %v706
    %4316 = vmatprep.subr.mxu0 %v701
    %4317 = vmatpush2.msra.mxu0 %v700
    %4318 = vmatprep.subr.mxu0 %v695
    %4319 = vmatpush2.msra.mxu0 %v694
    %4320 = vmatprep.subr.mxu0 %v689
    %4321 = vmatpush2.msra.mxu0 %v688
    %4322 = vmatprep.subr.mxu0 %v683
    %4323 = vmatpush2.msra.mxu0 %v682
    %4324 = vmatprep.subr.mxu0 %v677
    %4325 = vmatpush2.msra.mxu0 %v676
    %4326 = vmatprep.subr.mxu0 %v671
    %4327 = vmatpush2.msra.mxu0 %v670
    %4328 = vmatprep.subr.mxu0 %v665
    %4329 = vmatpush2.msra.mxu0 %v664
    %4330 = vmatprep.subr.mxu0 %v659
    %4331 = vmatpush2.msra.mxu0 %v658
    %4332 = vmatprep.subr.mxu0 %v653
    %4333 = vmatpush2.msra.mxu0 %v652
    %4334 = vmatprep.subr.mxu0 %v647
    %4335 = vmatpush2.msra.mxu0 %v646
    %4336 = vmatprep.mubr.f32.mxu0 %v4127
    %4337 = vmatmul.mubr.f32.gmra.mxu0 %v4126
    %v4338 = vpop.f32.mrf.mxu0
    %v4339 = vadd.f32 0.0, %v4338
    %v4340 = vpop.f32.mrf.mxu0
    %v4341 = vadd.f32 0.0, %v4340
    %4342 = vdwg.mxu0
    %v4345 = vrot.slane %v4197, 4
    %v4346 = vrot.slane %v4199, 4
    %v4349 = vadd.f32 %v388, %v4345
    %v4350 = vadd.f32 %v390, %v4346
    %v4351 = vxor.u32 %v4349, 2147483648
    %v4352 = vxor.u32 %v4350, 2147483648
    %v4353 = vmul.f32 %v4351, 1.442695
    %v4354 = vpow.pop %v4353
    %v4355 = vmul.f32 %v4352, 1.442695
    %v4356 = vpow.pop %v4355
    %v4357 = vadd.f32 %v4354, 1.0
    %v4358 = vadd.f32 %v4356, 1.0
    %v4359 = vrcp.pop %v4357
    %v4360 = vmul.f32 1.0, %v4359
    %v4361 = vrcp.pop %v4358
    %v4362 = vmul.f32 1.0, %v4361
    %v4365 = vrot.slane %v4268, 4
    %v4366 = vrot.slane %v4270, 4
    %v4369 = vadd.f32 %v465, %v4365
    %v4370 = vadd.f32 %v467, %v4366
    %v4371 = vxor.u32 %v4369, 2147483648
    %v4372 = vxor.u32 %v4370, 2147483648
    %v4373 = vmul.f32 %v4371, 1.442695
    %v4374 = vpow.pop %v4373
    %v4375 = vmul.f32 %v4372, 1.442695
    %v4376 = vpow.pop %v4375
    %v4377 = vadd.f32 %v4374, 1.0
    %v4378 = vadd.f32 %v4376, 1.0
    %v4379 = vrcp.pop %v4377
    %v4380 = vmul.f32 1.0, %v4379
    %v4381 = vrcp.pop %v4378
    %v4382 = vmul.f32 1.0, %v4381
    %v4383 = vadd.f32 %v4339, %v996
    %v4384 = vadd.f32 %v4341, %v1000
    %v4387 = vrot.slane %v4383, 4
    %v4388 = vrot.slane %v4384, 4
    %v4391 = vmul.f32 %v4360, %v4387
    %v4392 = vmul.f32 %v4362, %v4388
    %v4393 = vadd.f32 %v542, %v4391
    %v4394 = vadd.f32 %v544, %v4392
    %v4395 = vtanh.pop %v4393
    %v4396 = vtanh.pop %v4394
    %v4397 = vsub.f32 1.0, %v4380
    %v4398 = vsub.f32 1.0, %v4382
    %v4399 = vmul.f32 %v4397, %v4395
    %v4400 = vmul.f32 %v4398, %v4396
    %v4401 = vrot.slane %v4122, 7
    %v4402 = vrot.slane %v4123, 7
    %v4405 = vmul.f32 %v4380, %v4401
    %v4406 = vmul.f32 %v4382, %v4402
    %v4407 = vadd.f32 %v4399, %v4405
    %v4408 = vadd.f32 %v4400, %v4406
    %v4411 = vrot.slane %v4407, 4
    %v4412 = vrot.slane %v4408, 4
    %4415 = vmatprep.subr.mxu0 %v637
    %4416 = vmatpush1.msra.mxu0 %v636
    %4417 = vmatprep.subr.mxu0 %v631
    %4418 = vmatpush1.msra.mxu0 %v630
    %4419 = vmatprep.subr.mxu0 %v625
    %4420 = vmatpush1.msra.mxu0 %v624
    %4421 = vmatprep.subr.mxu0 %v619
    %4422 = vmatpush1.msra.mxu0 %v618
    %4423 = vmatprep.subr.mxu0 %v613
    %4424 = vmatpush1.msra.mxu0 %v612
    %4425 = vmatprep.subr.mxu0 %v607
    %4426 = vmatpush1.msra.mxu0 %v606
    %4427 = vmatprep.subr.mxu0 %v601
    %4428 = vmatpush1.msra.mxu0 %v600
    %4429 = vmatprep.subr.mxu0 %v595
    %4430 = vmatpush1.msra.mxu0 %v594
    %4431 = vmatprep.subr.mxu0 %v589
    %4432 = vmatpush1.msra.mxu0 %v588
    %4433 = vmatprep.subr.mxu0 %v583
    %4434 = vmatpush1.msra.mxu0 %v582
    %4435 = vmatprep.subr.mxu0 %v577
    %4436 = vmatpush1.msra.mxu0 %v576
    %4437 = vmatprep.subr.mxu0 %v571
    %4438 = vmatpush1.msra.mxu0 %v570
    %4439 = vmatprep.subr.mxu0 %v565
    %4440 = vmatpush1.msra.mxu0 %v564
    %4441 = vmatprep.subr.mxu0 %v559
    %4442 = vmatpush1.msra.mxu0 %v558
    %4443 = vmatprep.subr.mxu0 %v553
    %4444 = vmatpush1.msra.mxu0 %v552
    %4445 = vmatprep.subr.mxu0 %v547
    %4446 = vmatpush1.msra.mxu0 %v546
    %4447 = vmatprep.subr.mxu0 %v733
    %4448 = vmatpush2.msra.mxu0 %v732
    %4449 = vmatprep.subr.mxu0 %v727
    %4450 = vmatpush2.msra.mxu0 %v726
    %4451 = vmatprep.subr.mxu0 %v721
    %4452 = vmatpush2.msra.mxu0 %v720
    %4453 = vmatprep.subr.mxu0 %v715
    %4454 = vmatpush2.msra.mxu0 %v714
    %4455 = vmatprep.subr.mxu0 %v709
    %4456 = vmatpush2.msra.mxu0 %v708
    %4457 = vmatprep.subr.mxu0 %v703
    %4458 = vmatpush2.msra.mxu0 %v702
    %4459 = vmatprep.subr.mxu0 %v697
    %4460 = vmatpush2.msra.mxu0 %v696
    %4461 = vmatprep.subr.mxu0 %v691
    %4462 = vmatpush2.msra.mxu0 %v690
    %4463 = vmatprep.subr.mxu0 %v685
    %4464 = vmatpush2.msra.mxu0 %v684
    %4465 = vmatprep.subr.mxu0 %v679
    %4466 = vmatpush2.msra.mxu0 %v678
    %4467 = vmatprep.subr.mxu0 %v673
    %4468 = vmatpush2.msra.mxu0 %v672
    %4469 = vmatprep.subr.mxu0 %v667
    %4470 = vmatpush2.msra.mxu0 %v666
    %4471 = vmatprep.subr.mxu0 %v661
    %4472 = vmatpush2.msra.mxu0 %v660
    %4473 = vmatprep.subr.mxu0 %v655
    %4474 = vmatpush2.msra.mxu0 %v654
    %4475 = vmatprep.subr.mxu0 %v649
    %4476 = vmatpush2.msra.mxu0 %v648
    %4477 = vmatprep.subr.mxu0 %v643
    %4478 = vmatpush2.msra.mxu0 %v642
    %4479 = vmatprep.mubr.f32.mxu0 %v4412
    %4480 = vmatmul.mubr.f32.gmra.mxu0 %v4411
    %v4481 = vpop.f32.mrf.mxu0
    %v4482 = vadd.f32 0.0, %v4481
    %v4483 = vpop.f32.mrf.mxu0
    %v4484 = vadd.f32 0.0, %v4483
    %4485 = vdwg.mxu0
    %4486 = vmatprep.subr.mxu0 %v639
    %4487 = vmatpush1.msra.mxu0 %v638
    %4488 = vmatprep.subr.mxu0 %v633
    %4489 = vmatpush1.msra.mxu0 %v632
    %4490 = vmatprep.subr.mxu0 %v627
    %4491 = vmatpush1.msra.mxu0 %v626
    %4492 = vmatprep.subr.mxu0 %v621
    %4493 = vmatpush1.msra.mxu0 %v620
    %4494 = vmatprep.subr.mxu0 %v615
    %4495 = vmatpush1.msra.mxu0 %v614
    %4496 = vmatprep.subr.mxu0 %v609
    %4497 = vmatpush1.msra.mxu0 %v608
    %4498 = vmatprep.subr.mxu0 %v603
    %4499 = vmatpush1.msra.mxu0 %v602
    %4500 = vmatprep.subr.mxu0 %v597
    %4501 = vmatpush1.msra.mxu0 %v596
    %4502 = vmatprep.subr.mxu0 %v591
    %4503 = vmatpush1.msra.mxu0 %v590
    %4504 = vmatprep.subr.mxu0 %v585
    %4505 = vmatpush1.msra.mxu0 %v584
    %4506 = vmatprep.subr.mxu0 %v579
    %4507 = vmatpush1.msra.mxu0 %v578
    %4508 = vmatprep.subr.mxu0 %v573
    %4509 = vmatpush1.msra.mxu0 %v572
    %4510 = vmatprep.subr.mxu0 %v567
    %4511 = vmatpush1.msra.mxu0 %v566
    %4512 = vmatprep.subr.mxu0 %v561
    %4513 = vmatpush1.msra.mxu0 %v560
    %4514 = vmatprep.subr.mxu0 %v555
    %4515 = vmatpush1.msra.mxu0 %v554
    %4516 = vmatprep.subr.mxu0 %v549
    %4517 = vmatpush1.msra.mxu0 %v548
    %4518 = vmatprep.subr.mxu0 %v735
    %4519 = vmatpush2.msra.mxu0 %v734
    %4520 = vmatprep.subr.mxu0 %v729
    %4521 = vmatpush2.msra.mxu0 %v728
    %4522 = vmatprep.subr.mxu0 %v723
    %4523 = vmatpush2.msra.mxu0 %v722
    %4524 = vmatprep.subr.mxu0 %v717
    %4525 = vmatpush2.msra.mxu0 %v716
    %4526 = vmatprep.subr.mxu0 %v711
    %4527 = vmatpush2.msra.mxu0 %v710
    %4528 = vmatprep.subr.mxu0 %v705
    %4529 = vmatpush2.msra.mxu0 %v704
    %4530 = vmatprep.subr.mxu0 %v699
    %4531 = vmatpush2.msra.mxu0 %v698
    %4532 = vmatprep.subr.mxu0 %v693
    %4533 = vmatpush2.msra.mxu0 %v692
    %4534 = vmatprep.subr.mxu0 %v687
    %4535 = vmatpush2.msra.mxu0 %v686
    %4536 = vmatprep.subr.mxu0 %v681
    %4537 = vmatpush2.msra.mxu0 %v680
    %4538 = vmatprep.subr.mxu0 %v675
    %4539 = vmatpush2.msra.mxu0 %v674
    %4540 = vmatprep.subr.mxu0 %v669
    %4541 = vmatpush2.msra.mxu0 %v668
    %4542 = vmatprep.subr.mxu0 %v663
    %4543 = vmatpush2.msra.mxu0 %v662
    %4544 = vmatprep.subr.mxu0 %v657
    %4545 = vmatpush2.msra.mxu0 %v656
    %4546 = vmatprep.subr.mxu0 %v651
    %4547 = vmatpush2.msra.mxu0 %v650
    %4548 = vmatprep.subr.mxu0 %v645
    %4549 = vmatpush2.msra.mxu0 %v644
    %4550 = vmatprep.mubr.f32.mxu0 %v4412
    %4551 = vmatmul.mubr.f32.gmra.mxu0 %v4411
    %v4552 = vpop.f32.mrf.mxu0
    %v4553 = vadd.f32 0.0, %v4552
    %v4554 = vpop.f32.mrf.mxu0
    %v4555 = vadd.f32 0.0, %v4554
    %4556 = vdwg.mxu0
    %4557 = vmatprep.subr.mxu0 %v641
    %4558 = vmatpush1.msra.mxu0 %v640
    %4559 = vmatprep.subr.mxu0 %v635
    %4560 = vmatpush1.msra.mxu0 %v634
    %4561 = vmatprep.subr.mxu0 %v629
    %4562 = vmatpush1.msra.mxu0 %v628
    %4563 = vmatprep.subr.mxu0 %v623
    %4564 = vmatpush1.msra.mxu0 %v622
    %4565 = vmatprep.subr.mxu0 %v617
    %4566 = vmatpush1.msra.mxu0 %v616
    %4567 = vmatprep.subr.mxu0 %v611
    %4568 = vmatpush1.msra.mxu0 %v610
    %4569 = vmatprep.subr.mxu0 %v605
    %4570 = vmatpush1.msra.mxu0 %v604
    %4571 = vmatprep.subr.mxu0 %v599
    %4572 = vmatpush1.msra.mxu0 %v598
    %4573 = vmatprep.subr.mxu0 %v593
    %4574 = vmatpush1.msra.mxu0 %v592
    %4575 = vmatprep.subr.mxu0 %v587
    %4576 = vmatpush1.msra.mxu0 %v586
    %4577 = vmatprep.subr.mxu0 %v581
    %4578 = vmatpush1.msra.mxu0 %v580
    %4579 = vmatprep.subr.mxu0 %v575
    %4580 = vmatpush1.msra.mxu0 %v574
    %4581 = vmatprep.subr.mxu0 %v569
    %4582 = vmatpush1.msra.mxu0 %v568
    %4583 = vmatprep.subr.mxu0 %v563
    %4584 = vmatpush1.msra.mxu0 %v562
    %4585 = vmatprep.subr.mxu0 %v557
    %4586 = vmatpush1.msra.mxu0 %v556
    %4587 = vmatprep.subr.mxu0 %v551
    %4588 = vmatpush1.msra.mxu0 %v550
    %4589 = vmatprep.subr.mxu0 %v737
    %4590 = vmatpush2.msra.mxu0 %v736
    %4591 = vmatprep.subr.mxu0 %v731
    %4592 = vmatpush2.msra.mxu0 %v730
    %4593 = vmatprep.subr.mxu0 %v725
    %4594 = vmatpush2.msra.mxu0 %v724
    %4595 = vmatprep.subr.mxu0 %v719
    %4596 = vmatpush2.msra.mxu0 %v718
    %4597 = vmatprep.subr.mxu0 %v713
    %4598 = vmatpush2.msra.mxu0 %v712
    %4599 = vmatprep.subr.mxu0 %v707
    %4600 = vmatpush2.msra.mxu0 %v706
    %4601 = vmatprep.subr.mxu0 %v701
    %4602 = vmatpush2.msra.mxu0 %v700
    %4603 = vmatprep.subr.mxu0 %v695
    %4604 = vmatpush2.msra.mxu0 %v694
    %4605 = vmatprep.subr.mxu0 %v689
    %4606 = vmatpush2.msra.mxu0 %v688
    %4607 = vmatprep.subr.mxu0 %v683
    %4608 = vmatpush2.msra.mxu0 %v682
    %4609 = vmatprep.subr.mxu0 %v677
    %4610 = vmatpush2.msra.mxu0 %v676
    %4611 = vmatprep.subr.mxu0 %v671
    %4612 = vmatpush2.msra.mxu0 %v670
    %4613 = vmatprep.subr.mxu0 %v665
    %4614 = vmatpush2.msra.mxu0 %v664
    %4615 = vmatprep.subr.mxu0 %v659
    %4616 = vmatpush2.msra.mxu0 %v658
    %4617 = vmatprep.subr.mxu0 %v653
    %4618 = vmatpush2.msra.mxu0 %v652
    %4619 = vmatprep.subr.mxu0 %v647
    %4620 = vmatpush2.msra.mxu0 %v646
    %4621 = vmatprep.mubr.f32.mxu0 %v4412
    %4622 = vmatmul.mubr.f32.gmra.mxu0 %v4411
    %v4623 = vpop.f32.mrf.mxu0
    %v4624 = vadd.f32 0.0, %v4623
    %v4625 = vpop.f32.mrf.mxu0
    %v4626 = vadd.f32 0.0, %v4625
    %4627 = vdwg.mxu0
    %v4630 = vrot.slane %v4482, 3
    %v4631 = vrot.slane %v4484, 3
    %v4634 = vadd.f32 %v388, %v4630
    %v4635 = vadd.f32 %v390, %v4631
    %v4636 = vxor.u32 %v4634, 2147483648
    %v4637 = vxor.u32 %v4635, 2147483648
    %v4638 = vmul.f32 %v4636, 1.442695
    %v4639 = vpow.pop %v4638
    %v4640 = vmul.f32 %v4637, 1.442695
    %v4641 = vpow.pop %v4640
    %v4642 = vadd.f32 %v4639, 1.0
    %v4643 = vadd.f32 %v4641, 1.0
    %v4644 = vrcp.pop %v4642
    %v4645 = vmul.f32 1.0, %v4644
    %v4646 = vrcp.pop %v4643
    %v4647 = vmul.f32 1.0, %v4646
    %v4650 = vrot.slane %v4553, 3
    %v4651 = vrot.slane %v4555, 3
    %v4654 = vadd.f32 %v465, %v4650
    %v4655 = vadd.f32 %v467, %v4651
    %v4656 = vxor.u32 %v4654, 2147483648
    %v4657 = vxor.u32 %v4655, 2147483648
    %v4658 = vmul.f32 %v4656, 1.442695
    %v4659 = vpow.pop %v4658
    %v4660 = vmul.f32 %v4657, 1.442695
    %v4661 = vpow.pop %v4660
    %v4662 = vadd.f32 %v4659, 1.0
    %v4663 = vadd.f32 %v4661, 1.0
    %v4664 = vrcp.pop %v4662
    %v4665 = vmul.f32 1.0, %v4664
    %v4666 = vrcp.pop %v4663
    %v4667 = vmul.f32 1.0, %v4666
    %v4668 = vadd.f32 %v4624, %v996
    %v4669 = vadd.f32 %v4626, %v1000
    %v4672 = vrot.slane %v4668, 3
    %v4673 = vrot.slane %v4669, 3
    %v4676 = vmul.f32 %v4645, %v4672
    %v4677 = vmul.f32 %v4647, %v4673
    %v4678 = vadd.f32 %v542, %v4676
    %v4679 = vadd.f32 %v544, %v4677
    %v4680 = vtanh.pop %v4678
    %v4681 = vtanh.pop %v4679
    %v4682 = vsub.f32 1.0, %v4665
    %v4683 = vsub.f32 1.0, %v4667
    %v4684 = vmul.f32 %v4682, %v4680
    %v4685 = vmul.f32 %v4683, %v4681
    %v4686 = vrot.slane %v4407, 7
    %v4687 = vrot.slane %v4408, 7
    %v4690 = vmul.f32 %v4665, %v4686
    %v4691 = vmul.f32 %v4667, %v4687
    %v4692 = vadd.f32 %v4684, %v4690
    %v4693 = vadd.f32 %v4685, %v4691
    %v4696 = vrot.slane %v4692, 5
    %v4697 = vrot.slane %v4693, 5
    %4700 = vmatprep.subr.mxu0 %v637
    %4701 = vmatpush1.msra.mxu0 %v636
    %4702 = vmatprep.subr.mxu0 %v631
    %4703 = vmatpush1.msra.mxu0 %v630
    %4704 = vmatprep.subr.mxu0 %v625
    %4705 = vmatpush1.msra.mxu0 %v624
    %4706 = vmatprep.subr.mxu0 %v619
    %4707 = vmatpush1.msra.mxu0 %v618
    %4708 = vmatprep.subr.mxu0 %v613
    %4709 = vmatpush1.msra.mxu0 %v612
    %4710 = vmatprep.subr.mxu0 %v607
    %4711 = vmatpush1.msra.mxu0 %v606
    %4712 = vmatprep.subr.mxu0 %v601
    %4713 = vmatpush1.msra.mxu0 %v600
    %4714 = vmatprep.subr.mxu0 %v595
    %4715 = vmatpush1.msra.mxu0 %v594
    %4716 = vmatprep.subr.mxu0 %v589
    %4717 = vmatpush1.msra.mxu0 %v588
    %4718 = vmatprep.subr.mxu0 %v583
    %4719 = vmatpush1.msra.mxu0 %v582
    %4720 = vmatprep.subr.mxu0 %v577
    %4721 = vmatpush1.msra.mxu0 %v576
    %4722 = vmatprep.subr.mxu0 %v571
    %4723 = vmatpush1.msra.mxu0 %v570
    %4724 = vmatprep.subr.mxu0 %v565
    %4725 = vmatpush1.msra.mxu0 %v564
    %4726 = vmatprep.subr.mxu0 %v559
    %4727 = vmatpush1.msra.mxu0 %v558
    %4728 = vmatprep.subr.mxu0 %v553
    %4729 = vmatpush1.msra.mxu0 %v552
    %4730 = vmatprep.subr.mxu0 %v547
    %4731 = vmatpush1.msra.mxu0 %v546
    %4732 = vmatprep.subr.mxu0 %v733
    %4733 = vmatpush2.msra.mxu0 %v732
    %4734 = vmatprep.subr.mxu0 %v727
    %4735 = vmatpush2.msra.mxu0 %v726
    %4736 = vmatprep.subr.mxu0 %v721
    %4737 = vmatpush2.msra.mxu0 %v720
    %4738 = vmatprep.subr.mxu0 %v715
    %4739 = vmatpush2.msra.mxu0 %v714
    %4740 = vmatprep.subr.mxu0 %v709
    %4741 = vmatpush2.msra.mxu0 %v708
    %4742 = vmatprep.subr.mxu0 %v703
    %4743 = vmatpush2.msra.mxu0 %v702
    %4744 = vmatprep.subr.mxu0 %v697
    %4745 = vmatpush2.msra.mxu0 %v696
    %4746 = vmatprep.subr.mxu0 %v691
    %4747 = vmatpush2.msra.mxu0 %v690
    %4748 = vmatprep.subr.mxu0 %v685
    %4749 = vmatpush2.msra.mxu0 %v684
    %4750 = vmatprep.subr.mxu0 %v679
    %4751 = vmatpush2.msra.mxu0 %v678
    %4752 = vmatprep.subr.mxu0 %v673
    %4753 = vmatpush2.msra.mxu0 %v672
    %4754 = vmatprep.subr.mxu0 %v667
    %4755 = vmatpush2.msra.mxu0 %v666
    %4756 = vmatprep.subr.mxu0 %v661
    %4757 = vmatpush2.msra.mxu0 %v660
    %4758 = vmatprep.subr.mxu0 %v655
    %4759 = vmatpush2.msra.mxu0 %v654
    %4760 = vmatprep.subr.mxu0 %v649
    %4761 = vmatpush2.msra.mxu0 %v648
    %4762 = vmatprep.subr.mxu0 %v643
    %4763 = vmatpush2.msra.mxu0 %v642
    %4764 = vmatprep.mubr.f32.mxu0 %v4697
    %4765 = vmatmul.mubr.f32.gmra.mxu0 %v4696
    %v4766 = vpop.f32.mrf.mxu0
    %v4767 = vadd.f32 0.0, %v4766
    %v4768 = vpop.f32.mrf.mxu0
    %v4769 = vadd.f32 0.0, %v4768
    %4770 = vdwg.mxu0
    %4771 = vmatprep.subr.mxu0 %v639
    %4772 = vmatpush1.msra.mxu0 %v638
    %4773 = vmatprep.subr.mxu0 %v633
    %4774 = vmatpush1.msra.mxu0 %v632
    %4775 = vmatprep.subr.mxu0 %v627
    %4776 = vmatpush1.msra.mxu0 %v626
    %4777 = vmatprep.subr.mxu0 %v621
    %4778 = vmatpush1.msra.mxu0 %v620
    %4779 = vmatprep.subr.mxu0 %v615
    %4780 = vmatpush1.msra.mxu0 %v614
    %4781 = vmatprep.subr.mxu0 %v609
    %4782 = vmatpush1.msra.mxu0 %v608
    %4783 = vmatprep.subr.mxu0 %v603
    %4784 = vmatpush1.msra.mxu0 %v602
    %4785 = vmatprep.subr.mxu0 %v597
    %4786 = vmatpush1.msra.mxu0 %v596
    %4787 = vmatprep.subr.mxu0 %v591
    %4788 = vmatpush1.msra.mxu0 %v590
    %4789 = vmatprep.subr.mxu0 %v585
    %4790 = vmatpush1.msra.mxu0 %v584
    %4791 = vmatprep.subr.mxu0 %v579
    %4792 = vmatpush1.msra.mxu0 %v578
    %4793 = vmatprep.subr.mxu0 %v573
    %4794 = vmatpush1.msra.mxu0 %v572
    %4795 = vmatprep.subr.mxu0 %v567
    %4796 = vmatpush1.msra.mxu0 %v566
    %4797 = vmatprep.subr.mxu0 %v561
    %4798 = vmatpush1.msra.mxu0 %v560
    %4799 = vmatprep.subr.mxu0 %v555
    %4800 = vmatpush1.msra.mxu0 %v554
    %4801 = vmatprep.subr.mxu0 %v549
    %4802 = vmatpush1.msra.mxu0 %v548
    %4803 = vmatprep.subr.mxu0 %v735
    %4804 = vmatpush2.msra.mxu0 %v734
    %4805 = vmatprep.subr.mxu0 %v729
    %4806 = vmatpush2.msra.mxu0 %v728
    %4807 = vmatprep.subr.mxu0 %v723
    %4808 = vmatpush2.msra.mxu0 %v722
    %4809 = vmatprep.subr.mxu0 %v717
    %4810 = vmatpush2.msra.mxu0 %v716
    %4811 = vmatprep.subr.mxu0 %v711
    %4812 = vmatpush2.msra.mxu0 %v710
    %4813 = vmatprep.subr.mxu0 %v705
    %4814 = vmatpush2.msra.mxu0 %v704
    %4815 = vmatprep.subr.mxu0 %v699
    %4816 = vmatpush2.msra.mxu0 %v698
    %4817 = vmatprep.subr.mxu0 %v693
    %4818 = vmatpush2.msra.mxu0 %v692
    %4819 = vmatprep.subr.mxu0 %v687
    %4820 = vmatpush2.msra.mxu0 %v686
    %4821 = vmatprep.subr.mxu0 %v681
    %4822 = vmatpush2.msra.mxu0 %v680
    %4823 = vmatprep.subr.mxu0 %v675
    %4824 = vmatpush2.msra.mxu0 %v674
    %4825 = vmatprep.subr.mxu0 %v669
    %4826 = vmatpush2.msra.mxu0 %v668
    %4827 = vmatprep.subr.mxu0 %v663
    %4828 = vmatpush2.msra.mxu0 %v662
    %4829 = vmatprep.subr.mxu0 %v657
    %4830 = vmatpush2.msra.mxu0 %v656
    %4831 = vmatprep.subr.mxu0 %v651
    %4832 = vmatpush2.msra.mxu0 %v650
    %4833 = vmatprep.subr.mxu0 %v645
    %4834 = vmatpush2.msra.mxu0 %v644
    %4835 = vmatprep.mubr.f32.mxu0 %v4697
    %4836 = vmatmul.mubr.f32.gmra.mxu0 %v4696
    %v4837 = vpop.f32.mrf.mxu0
    %v4838 = vadd.f32 0.0, %v4837
    %v4839 = vpop.f32.mrf.mxu0
    %v4840 = vadd.f32 0.0, %v4839
    %4841 = vdwg.mxu0
    %4842 = vmatprep.subr.mxu0 %v641
    %4843 = vmatpush1.msra.mxu0 %v640
    %4844 = vmatprep.subr.mxu0 %v635
    %4845 = vmatpush1.msra.mxu0 %v634
    %4846 = vmatprep.subr.mxu0 %v629
    %4847 = vmatpush1.msra.mxu0 %v628
    %4848 = vmatprep.subr.mxu0 %v623
    %4849 = vmatpush1.msra.mxu0 %v622
    %4850 = vmatprep.subr.mxu0 %v617
    %4851 = vmatpush1.msra.mxu0 %v616
    %4852 = vmatprep.subr.mxu0 %v611
    %4853 = vmatpush1.msra.mxu0 %v610
    %4854 = vmatprep.subr.mxu0 %v605
    %4855 = vmatpush1.msra.mxu0 %v604
    %4856 = vmatprep.subr.mxu0 %v599
    %4857 = vmatpush1.msra.mxu0 %v598
    %4858 = vmatprep.subr.mxu0 %v593
    %4859 = vmatpush1.msra.mxu0 %v592
    %4860 = vmatprep.subr.mxu0 %v587
    %4861 = vmatpush1.msra.mxu0 %v586
    %4862 = vmatprep.subr.mxu0 %v581
    %4863 = vmatpush1.msra.mxu0 %v580
    %4864 = vmatprep.subr.mxu0 %v575
    %4865 = vmatpush1.msra.mxu0 %v574
    %4866 = vmatprep.subr.mxu0 %v569
    %4867 = vmatpush1.msra.mxu0 %v568
    %4868 = vmatprep.subr.mxu0 %v563
    %4869 = vmatpush1.msra.mxu0 %v562
    %4870 = vmatprep.subr.mxu0 %v557
    %4871 = vmatpush1.msra.mxu0 %v556
    %4872 = vmatprep.subr.mxu0 %v551
    %4873 = vmatpush1.msra.mxu0 %v550
    %4874 = vmatprep.subr.mxu0 %v737
    %4875 = vmatpush2.msra.mxu0 %v736
    %4876 = vmatprep.subr.mxu0 %v731
    %4877 = vmatpush2.msra.mxu0 %v730
    %4878 = vmatprep.subr.mxu0 %v725
    %4879 = vmatpush2.msra.mxu0 %v724
    %4880 = vmatprep.subr.mxu0 %v719
    %4881 = vmatpush2.msra.mxu0 %v718
    %4882 = vmatprep.subr.mxu0 %v713
    %4883 = vmatpush2.msra.mxu0 %v712
    %4884 = vmatprep.subr.mxu0 %v707
    %4885 = vmatpush2.msra.mxu0 %v706
    %4886 = vmatprep.subr.mxu0 %v701
    %4887 = vmatpush2.msra.mxu0 %v700
    %4888 = vmatprep.subr.mxu0 %v695
    %4889 = vmatpush2.msra.mxu0 %v694
    %4890 = vmatprep.subr.mxu0 %v689
    %4891 = vmatpush2.msra.mxu0 %v688
    %4892 = vmatprep.subr.mxu0 %v683
    %4893 = vmatpush2.msra.mxu0 %v682
    %4894 = vmatprep.subr.mxu0 %v677
    %4895 = vmatpush2.msra.mxu0 %v676
    %4896 = vmatprep.subr.mxu0 %v671
    %4897 = vmatpush2.msra.mxu0 %v670
    %4898 = vmatprep.subr.mxu0 %v665
    %4899 = vmatpush2.msra.mxu0 %v664
    %4900 = vmatprep.subr.mxu0 %v659
    %4901 = vmatpush2.msra.mxu0 %v658
    %4902 = vmatprep.subr.mxu0 %v653
    %4903 = vmatpush2.msra.mxu0 %v652
    %4904 = vmatprep.subr.mxu0 %v647
    %4905 = vmatpush2.msra.mxu0 %v646
    %4906 = vmatprep.mubr.f32.mxu0 %v4697
    %4907 = vmatmul.mubr.f32.gmra.mxu0 %v4696
    %v4908 = vpop.f32.mrf.mxu0
    %v4909 = vadd.f32 0.0, %v4908
    %v4910 = vpop.f32.mrf.mxu0
    %v4911 = vadd.f32 0.0, %v4910
    %4912 = vdwg.mxu0
    %v4915 = vrot.slane %v4767, 2
    %v4916 = vrot.slane %v4769, 2
    %v4919 = vadd.f32 %v388, %v4915
    %v4920 = vadd.f32 %v390, %v4916
    %v4921 = vxor.u32 %v4919, 2147483648
    %v4922 = vxor.u32 %v4920, 2147483648
    %v4923 = vmul.f32 %v4921, 1.442695
    %v4924 = vpow.pop %v4923
    %v4925 = vmul.f32 %v4922, 1.442695
    %v4926 = vpow.pop %v4925
    %v4927 = vadd.f32 %v4924, 1.0
    %v4928 = vadd.f32 %v4926, 1.0
    %v4929 = vrcp.pop %v4927
    %v4930 = vmul.f32 1.0, %v4929
    %v4931 = vrcp.pop %v4928
    %v4932 = vmul.f32 1.0, %v4931
    %v4935 = vrot.slane %v4838, 2
    %v4936 = vrot.slane %v4840, 2
    %v4939 = vadd.f32 %v465, %v4935
    %v4940 = vadd.f32 %v467, %v4936
    %v4941 = vxor.u32 %v4939, 2147483648
    %v4942 = vxor.u32 %v4940, 2147483648
    %v4943 = vmul.f32 %v4941, 1.442695
    %v4944 = vpow.pop %v4943
    %v4945 = vmul.f32 %v4942, 1.442695
    %v4946 = vpow.pop %v4945
    %v4947 = vadd.f32 %v4944, 1.0
    %v4948 = vadd.f32 %v4946, 1.0
    %v4949 = vrcp.pop %v4947
    %v4950 = vmul.f32 1.0, %v4949
    %v4951 = vrcp.pop %v4948
    %v4952 = vmul.f32 1.0, %v4951
    %v4953 = vadd.f32 %v4909, %v996
    %v4954 = vadd.f32 %v4911, %v1000
    %v4957 = vrot.slane %v4953, 2
    %v4958 = vrot.slane %v4954, 2
    %v4961 = vmul.f32 %v4930, %v4957
    %v4962 = vmul.f32 %v4932, %v4958
    %v4963 = vadd.f32 %v542, %v4961
    %v4964 = vadd.f32 %v544, %v4962
    %v4965 = vtanh.pop %v4963
    %v4966 = vtanh.pop %v4964
    %v4967 = vsub.f32 1.0, %v4950
    %v4968 = vsub.f32 1.0, %v4952
    %v4969 = vmul.f32 %v4967, %v4965
    %v4970 = vmul.f32 %v4968, %v4966
    %v4971 = vrot.slane %v4692, 7
    %v4972 = vrot.slane %v4693, 7
    %v4975 = vmul.f32 %v4950, %v4971
    %v4976 = vmul.f32 %v4952, %v4972
    %v4977 = vadd.f32 %v4969, %v4975
    %v4978 = vadd.f32 %v4970, %v4976
    %v4981 = vrot.slane %v4977, 6
    %v4982 = vrot.slane %v4978, 6
    %4985 = vmatprep.subr.mxu0 %v637
    %4986 = vmatpush1.msra.mxu0 %v636
    %4987 = vmatprep.subr.mxu0 %v631
    %4988 = vmatpush1.msra.mxu0 %v630
    %4989 = vmatprep.subr.mxu0 %v625
    %4990 = vmatpush1.msra.mxu0 %v624
    %4991 = vmatprep.subr.mxu0 %v619
    %4992 = vmatpush1.msra.mxu0 %v618
    %4993 = vmatprep.subr.mxu0 %v613
    %4994 = vmatpush1.msra.mxu0 %v612
    %4995 = vmatprep.subr.mxu0 %v607
    %4996 = vmatpush1.msra.mxu0 %v606
    %4997 = vmatprep.subr.mxu0 %v601
    %4998 = vmatpush1.msra.mxu0 %v600
    %4999 = vmatprep.subr.mxu0 %v595
    %5000 = vmatpush1.msra.mxu0 %v594
    %5001 = vmatprep.subr.mxu0 %v589
    %5002 = vmatpush1.msra.mxu0 %v588
    %5003 = vmatprep.subr.mxu0 %v583
    %5004 = vmatpush1.msra.mxu0 %v582
    %5005 = vmatprep.subr.mxu0 %v577
    %5006 = vmatpush1.msra.mxu0 %v576
    %5007 = vmatprep.subr.mxu0 %v571
    %5008 = vmatpush1.msra.mxu0 %v570
    %5009 = vmatprep.subr.mxu0 %v565
    %5010 = vmatpush1.msra.mxu0 %v564
    %5011 = vmatprep.subr.mxu0 %v559
    %5012 = vmatpush1.msra.mxu0 %v558
    %5013 = vmatprep.subr.mxu0 %v553
    %5014 = vmatpush1.msra.mxu0 %v552
    %5015 = vmatprep.subr.mxu0 %v547
    %5016 = vmatpush1.msra.mxu0 %v546
    %5017 = vmatprep.subr.mxu0 %v733
    %5018 = vmatpush2.msra.mxu0 %v732
    %5019 = vmatprep.subr.mxu0 %v727
    %5020 = vmatpush2.msra.mxu0 %v726
    %5021 = vmatprep.subr.mxu0 %v721
    %5022 = vmatpush2.msra.mxu0 %v720
    %5023 = vmatprep.subr.mxu0 %v715
    %5024 = vmatpush2.msra.mxu0 %v714
    %5025 = vmatprep.subr.mxu0 %v709
    %5026 = vmatpush2.msra.mxu0 %v708
    %5027 = vmatprep.subr.mxu0 %v703
    %5028 = vmatpush2.msra.mxu0 %v702
    %5029 = vmatprep.subr.mxu0 %v697
    %5030 = vmatpush2.msra.mxu0 %v696
    %5031 = vmatprep.subr.mxu0 %v691
    %5032 = vmatpush2.msra.mxu0 %v690
    %5033 = vmatprep.subr.mxu0 %v685
    %5034 = vmatpush2.msra.mxu0 %v684
    %5035 = vmatprep.subr.mxu0 %v679
    %5036 = vmatpush2.msra.mxu0 %v678
    %5037 = vmatprep.subr.mxu0 %v673
    %5038 = vmatpush2.msra.mxu0 %v672
    %5039 = vmatprep.subr.mxu0 %v667
    %5040 = vmatpush2.msra.mxu0 %v666
    %5041 = vmatprep.subr.mxu0 %v661
    %5042 = vmatpush2.msra.mxu0 %v660
    %5043 = vmatprep.subr.mxu0 %v655
    %5044 = vmatpush2.msra.mxu0 %v654
    %5045 = vmatprep.subr.mxu0 %v649
    %5046 = vmatpush2.msra.mxu0 %v648
    %5047 = vmatprep.subr.mxu0 %v643
    %5048 = vmatpush2.msra.mxu0 %v642
    %5049 = vmatprep.mubr.f32.mxu0 %v4982
    %5050 = vmatmul.mubr.f32.gmra.mxu0 %v4981
    %v5051 = vpop.f32.mrf.mxu0
    %v5052 = vadd.f32 0.0, %v5051
    %v5053 = vpop.f32.mrf.mxu0
    %v5054 = vadd.f32 0.0, %v5053
    %5055 = vdwg.mxu0
    %5056 = vmatprep.subr.mxu0 %v639
    %5057 = vmatpush1.msra.mxu0 %v638
    %5058 = vmatprep.subr.mxu0 %v633
    %5059 = vmatpush1.msra.mxu0 %v632
    %5060 = vmatprep.subr.mxu0 %v627
    %5061 = vmatpush1.msra.mxu0 %v626
    %5062 = vmatprep.subr.mxu0 %v621
    %5063 = vmatpush1.msra.mxu0 %v620
    %5064 = vmatprep.subr.mxu0 %v615
    %5065 = vmatpush1.msra.mxu0 %v614
    %5066 = vmatprep.subr.mxu0 %v609
    %5067 = vmatpush1.msra.mxu0 %v608
    %5068 = vmatprep.subr.mxu0 %v603
    %5069 = vmatpush1.msra.mxu0 %v602
    %5070 = vmatprep.subr.mxu0 %v597
    %5071 = vmatpush1.msra.mxu0 %v596
    %5072 = vmatprep.subr.mxu0 %v591
    %5073 = vmatpush1.msra.mxu0 %v590
    %5074 = vmatprep.subr.mxu0 %v585
    %5075 = vmatpush1.msra.mxu0 %v584
    %5076 = vmatprep.subr.mxu0 %v579
    %5077 = vmatpush1.msra.mxu0 %v578
    %5078 = vmatprep.subr.mxu0 %v573
    %5079 = vmatpush1.msra.mxu0 %v572
    %5080 = vmatprep.subr.mxu0 %v567
    %5081 = vmatpush1.msra.mxu0 %v566
    %5082 = vmatprep.subr.mxu0 %v561
    %5083 = vmatpush1.msra.mxu0 %v560
    %5084 = vmatprep.subr.mxu0 %v555
    %5085 = vmatpush1.msra.mxu0 %v554
    %5086 = vmatprep.subr.mxu0 %v549
    %5087 = vmatpush1.msra.mxu0 %v548
    %5088 = vmatprep.subr.mxu0 %v735
    %5089 = vmatpush2.msra.mxu0 %v734
    %5090 = vmatprep.subr.mxu0 %v729
    %5091 = vmatpush2.msra.mxu0 %v728
    %5092 = vmatprep.subr.mxu0 %v723
    %5093 = vmatpush2.msra.mxu0 %v722
    %5094 = vmatprep.subr.mxu0 %v717
    %5095 = vmatpush2.msra.mxu0 %v716
    %5096 = vmatprep.subr.mxu0 %v711
    %5097 = vmatpush2.msra.mxu0 %v710
    %5098 = vmatprep.subr.mxu0 %v705
    %5099 = vmatpush2.msra.mxu0 %v704
    %5100 = vmatprep.subr.mxu0 %v699
    %5101 = vmatpush2.msra.mxu0 %v698
    %5102 = vmatprep.subr.mxu0 %v693
    %5103 = vmatpush2.msra.mxu0 %v692
    %5104 = vmatprep.subr.mxu0 %v687
    %5105 = vmatpush2.msra.mxu0 %v686
    %5106 = vmatprep.subr.mxu0 %v681
    %5107 = vmatpush2.msra.mxu0 %v680
    %5108 = vmatprep.subr.mxu0 %v675
    %5109 = vmatpush2.msra.mxu0 %v674
    %5110 = vmatprep.subr.mxu0 %v669
    %5111 = vmatpush2.msra.mxu0 %v668
    %5112 = vmatprep.subr.mxu0 %v663
    %5113 = vmatpush2.msra.mxu0 %v662
    %5114 = vmatprep.subr.mxu0 %v657
    %5115 = vmatpush2.msra.mxu0 %v656
    %5116 = vmatprep.subr.mxu0 %v651
    %5117 = vmatpush2.msra.mxu0 %v650
    %5118 = vmatprep.subr.mxu0 %v645
    %5119 = vmatpush2.msra.mxu0 %v644
    %5120 = vmatprep.mubr.f32.mxu0 %v4982
    %5121 = vmatmul.mubr.f32.gmra.mxu0 %v4981
    %v5122 = vpop.f32.mrf.mxu0
    %v5123 = vadd.f32 0.0, %v5122
    %v5124 = vpop.f32.mrf.mxu0
    %v5125 = vadd.f32 0.0, %v5124
    %5126 = vdwg.mxu0
    %5127 = vmatprep.subr.mxu0 %v641
    %5128 = vmatpush1.msra.mxu0 %v640
    %5129 = vmatprep.subr.mxu0 %v635
    %5130 = vmatpush1.msra.mxu0 %v634
    %5131 = vmatprep.subr.mxu0 %v629
    %5132 = vmatpush1.msra.mxu0 %v628
    %5133 = vmatprep.subr.mxu0 %v623
    %5134 = vmatpush1.msra.mxu0 %v622
    %5135 = vmatprep.subr.mxu0 %v617
    %5136 = vmatpush1.msra.mxu0 %v616
    %5137 = vmatprep.subr.mxu0 %v611
    %5138 = vmatpush1.msra.mxu0 %v610
    %5139 = vmatprep.subr.mxu0 %v605
    %5140 = vmatpush1.msra.mxu0 %v604
    %5141 = vmatprep.subr.mxu0 %v599
    %5142 = vmatpush1.msra.mxu0 %v598
    %5143 = vmatprep.subr.mxu0 %v593
    %5144 = vmatpush1.msra.mxu0 %v592
    %5145 = vmatprep.subr.mxu0 %v587
    %5146 = vmatpush1.msra.mxu0 %v586
    %5147 = vmatprep.subr.mxu0 %v581
    %5148 = vmatpush1.msra.mxu0 %v580
    %5149 = vmatprep.subr.mxu0 %v575
    %5150 = vmatpush1.msra.mxu0 %v574
    %5151 = vmatprep.subr.mxu0 %v569
    %5152 = vmatpush1.msra.mxu0 %v568
    %5153 = vmatprep.subr.mxu0 %v563
    %5154 = vmatpush1.msra.mxu0 %v562
    %5155 = vmatprep.subr.mxu0 %v557
    %5156 = vmatpush1.msra.mxu0 %v556
    %5157 = vmatprep.subr.mxu0 %v551
    %5158 = vmatpush1.msra.mxu0 %v550
    %5159 = vmatprep.subr.mxu0 %v737
    %5160 = vmatpush2.msra.mxu0 %v736
    %5161 = vmatprep.subr.mxu0 %v731
    %5162 = vmatpush2.msra.mxu0 %v730
    %5163 = vmatprep.subr.mxu0 %v725
    %5164 = vmatpush2.msra.mxu0 %v724
    %5165 = vmatprep.subr.mxu0 %v719
    %5166 = vmatpush2.msra.mxu0 %v718
    %5167 = vmatprep.subr.mxu0 %v713
    %5168 = vmatpush2.msra.mxu0 %v712
    %5169 = vmatprep.subr.mxu0 %v707
    %5170 = vmatpush2.msra.mxu0 %v706
    %5171 = vmatprep.subr.mxu0 %v701
    %5172 = vmatpush2.msra.mxu0 %v700
    %5173 = vmatprep.subr.mxu0 %v695
    %5174 = vmatpush2.msra.mxu0 %v694
    %5175 = vmatprep.subr.mxu0 %v689
    %5176 = vmatpush2.msra.mxu0 %v688
    %5177 = vmatprep.subr.mxu0 %v683
    %5178 = vmatpush2.msra.mxu0 %v682
    %5179 = vmatprep.subr.mxu0 %v677
    %5180 = vmatpush2.msra.mxu0 %v676
    %5181 = vmatprep.subr.mxu0 %v671
    %5182 = vmatpush2.msra.mxu0 %v670
    %5183 = vmatprep.subr.mxu0 %v665
    %5184 = vmatpush2.msra.mxu0 %v664
    %5185 = vmatprep.subr.mxu0 %v659
    %5186 = vmatpush2.msra.mxu0 %v658
    %5187 = vmatprep.subr.mxu0 %v653
    %5188 = vmatpush2.msra.mxu0 %v652
    %5189 = vmatprep.subr.mxu0 %v647
    %5190 = vmatpush2.msra.mxu0 %v646
    %5191 = vmatprep.mubr.f32.mxu0 %v4982
    %5192 = vmatmul.mubr.f32.gmra.mxu0 %v4981
    %v5193 = vpop.f32.mrf.mxu0
    %v5194 = vadd.f32 0.0, %v5193
    %v5195 = vpop.f32.mrf.mxu0
    %v5196 = vadd.f32 0.0, %v5195
    %5197 = vdwg.mxu0
    %v5200 = vrot.slane %v5052, 1
    %v5201 = vrot.slane %v5054, 1
    %v5204 = vadd.f32 %v388, %v5200
    %v5205 = vadd.f32 %v390, %v5201
    %v5206 = vxor.u32 %v5204, 2147483648
    %v5207 = vxor.u32 %v5205, 2147483648
    %v5208 = vmul.f32 %v5206, 1.442695
    %v5209 = vpow.pop %v5208
    %v5210 = vmul.f32 %v5207, 1.442695
    %v5211 = vpow.pop %v5210
    %v5212 = vadd.f32 %v5209, 1.0
    %v5213 = vadd.f32 %v5211, 1.0
    %v5214 = vrcp.pop %v5212
    %v5215 = vmul.f32 1.0, %v5214
    %v5216 = vrcp.pop %v5213
    %v5217 = vmul.f32 1.0, %v5216
    %v5220 = vrot.slane %v5123, 1
    %v5221 = vrot.slane %v5125, 1
    %v5224 = vadd.f32 %v465, %v5220
    %v5225 = vadd.f32 %v467, %v5221
    %v5226 = vxor.u32 %v5224, 2147483648
    %v5227 = vxor.u32 %v5225, 2147483648
    %v5228 = vmul.f32 %v5226, 1.442695
    %v5229 = vpow.pop %v5228
    %v5230 = vmul.f32 %v5227, 1.442695
    %v5231 = vpow.pop %v5230
    %v5232 = vadd.f32 %v5229, 1.0
    %v5233 = vadd.f32 %v5231, 1.0
    %v5234 = vrcp.pop %v5232
    %v5235 = vmul.f32 1.0, %v5234
    %v5236 = vrcp.pop %v5233
    %v5237 = vmul.f32 1.0, %v5236
    %v5238 = vadd.f32 %v5194, %v996
    %v5239 = vadd.f32 %v5196, %v1000
    %v5242 = vrot.slane %v5238, 1
    %v5243 = vrot.slane %v5239, 1
    %v5246 = vmul.f32 %v5215, %v5242
    %v5247 = vmul.f32 %v5217, %v5243
    %v5248 = vadd.f32 %v542, %v5246
    %v5249 = vadd.f32 %v544, %v5247
    %v5250 = vtanh.pop %v5248
    %v5251 = vtanh.pop %v5249
    %v5252 = vsub.f32 1.0, %v5235
    %v5253 = vsub.f32 1.0, %v5237
    %v5254 = vmul.f32 %v5252, %v5250
    %v5255 = vmul.f32 %v5253, %v5251
    %v5256 = vrot.slane %v4977, 7
    %v5257 = vrot.slane %v4978, 7
    %v5260 = vmul.f32 %v5235, %v5256
    %v5261 = vmul.f32 %v5237, %v5257
    %v5262 = vadd.f32 %v5254, %v5260
    %v5263 = vadd.f32 %v5255, %v5261
    %vm5264 = vcmask 1040384
    %v5265 = vsel %vm5264, %v1017, %v1298
    %v5266 = vsel %vm5264, %v1018, %v1299
    %vm5267 = vcmask 1041408
    %v5268 = vsel %vm5267, %v5265, %v1583
    %v5269 = vsel %vm5267, %v5266, %v1584
    %vm5270 = vcmask 1042432
    %v5271 = vsel %vm5270, %v5268, %v1868
    %v5272 = vsel %vm5270, %v5269, %v1869
    %vm5273 = vcmask 1043456
    %v5274 = vsel %vm5273, %v5271, %v2153
    %v5275 = vsel %vm5273, %v5272, %v2154
    %vm5276 = vcmask 1044480
    %v5277 = vsel %vm5276, %v5274, %v2438
    %v5278 = vsel %vm5276, %v5275, %v2439
    %vm5279 = vcmask 1045504
    %v5280 = vsel %vm5279, %v5277, %v2723
    %v5281 = vsel %vm5279, %v5278, %v2724
    %vm5282 = vcmask 1046528
    %v5283 = vsel %vm5282, %v5280, %v3008
    %v5284 = vsel %vm5282, %v5281, %v3009
    %v5285 = vsel %vm5264, %v3271, %v3552
    %v5286 = vsel %vm5264, %v3272, %v3553
    %v5287 = vsel %vm5267, %v5285, %v3837
    %v5288 = vsel %vm5267, %v5286, %v3838
    %v5289 = vsel %vm5270, %v5287, %v4122
    %v5290 = vsel %vm5270, %v5288, %v4123
    %v5291 = vsel %vm5273, %v5289, %v4407
    %v5292 = vsel %vm5273, %v5290, %v4408
    %v5293 = vsel %vm5276, %v5291, %v4692
    %v5294 = vsel %vm5276, %v5292, %v4693
    %v5295 = vsel %vm5279, %v5293, %v4977
    %v5296 = vsel %vm5279, %v5294, %v4978
    %v5297 = vsel %vm5282, %v5295, %v5262
    %v5298 = vsel %vm5282, %v5296, %v5263
    %5299 = vst [vmem:[#allocation11] sm:$0xff] %v5283
    %5300 = vst [vmem:[#allocation11 + $0x8] sm:$0xff] %v5284
    %5301 = vst [vmem:[#allocation11 + $0x10] sm:$0xff] %v5297
    %5302 = vst [vmem:[#allocation11 + $0x18] sm:$0xff] %v5298
    %v5305 = vcombine.high %v5262, %v5263
    %v5307 = vunpack.c.l.s4 1966171168
    %v5308 = vunpack.c.0.s8 %v5307
    %v5309 = vlaneseq
    %v5310 = vshrl.u32 %v5309, 7
    %v5311 = vsub.s32 %v5308, %v5310
    %v5312 = vrot.slane %v5305, %v5311
    %v5313 = vcombine.high %v5312, %v5312
    %v5315 = vunpack.c.l.s4 1966171168
    %v5316 = vunpack.c.0.s8 %v5315
    %v5317 = vlaneseq
    %v5318 = vshrl.u32 %v5317, 7
    %v5319 = vsub.s32 %v5316, %v5318
    %v5320 = vrot.slane %v5313, %v5319
    %v5321 = vcombine.high %v5320, %v5320
    %v5323 = vlaneseq
    %vm5324 = vcmp.ge.s32.totalorder %v5323, 0
    %vm5325 = vcmp.lt.s32.totalorder %v5323, 256
    %vm5326 = vmand %vm5324, %vm5325
    %5327 = vst.msk [vmem:[#allocation2] sm:$0x3] %vm5326, %v5321
    // Predicated region
    $region46: #{tpu_custom_call.1} parent=1 // pred_check
      _
    $region47: #{tpu_custom_call.1} parent=1 // pred_check_branch
      %5329 = sbr.rel (0) target = $region49
    $region48: #{tpu_custom_call.1} parent=1 // pred_region
      %s5331 = ssub.s32 512, 512
      %5332 = vsyncadd [#allocation5], %s5331
      %s5333 = sshll.u32 [#allocation11], 4
      %s5334 = int_to_ptr.vmem [resolvable:$true] %s5333
      %5339 = dma.vmem_to_hbm [thread:$0]  %s5334, 512, %s6, [#allocation5], 256, 256, 16
    $region49: #{tpu_custom_call.1} parent=1 // pred_fallthru
      _
    // Predicated region
    $region50: #{tpu_custom_call.1} parent=1 // pred_check
      _
    $region51: #{tpu_custom_call.1} parent=1 // pred_check_branch
      %5341 = sbr.rel (0) target = $region53
    $region52: #{tpu_custom_call.1} parent=1 // pred_region
      %5342 = dma.done [#allocation5], 512
    $region53: #{tpu_custom_call.1} parent=1 // pred_fallthru
      _
    %5343 = vsyncpa [#allocation4], 1
    %5344 = vsyncpa [#allocation7], 1
    %5345 = vsyncpa [#allocation10], 1
    %5346 = vsyncpa [#allocation5], 1

</llo_original>
